<compile_context>
chip_gen: v5e
topology: v5e:2x2
jax: 0.10.0
libtpu: 0.0.40
codegen_flags: <defaults>
</compile_context>

<pallas_src>
import jax
import jax.numpy as jnp
from jax.experimental import pallas as pl
from jax.experimental.pallas import tpu as pltpu


# --------------------------------------------------------------------------- kernel
def grouped_conv_kernel(x_ref, w_ref, b_ref, o_ref):
    # x_ref: (1, H+2, W+2, Cin)   bf16 -- whole padded image, resident across row tiles
    # w_ref: (3, 3, Cin, Cout)    bf16 -- block-diagonal dense weights, resident
    # b_ref: (1, Cout)            f32
    # o_ref: (1, TILE_H, W, Cout) bf16
    _, th, w_out, cout = o_ref.shape
    cin = x_ref.shape[-1]
    row0 = pl.program_id(1) * th            # first output row of this tile

    # Local f32 accumulator seeded with the broadcast bias (no VMEM scratch,
    # no zero-fill, no separate bias pass).
    acc = jnp.broadcast_to(b_ref[...], (th * w_out, cout))

    # 9 taps; each is a (TILE_H*W, Cin) @ (Cin, Cout) MXU matmul with f32 accumulation.
    # All slices stay inside the resident VMEM image -> no extra HBM traffic.
    for kh in range(3):
        for kw in range(3):
            xs = x_ref[0, pl.ds(row0 + kh, th), pl.ds(kw, w_out), :]
            acc = acc + jnp.dot(xs.reshape(th * w_out, cin), w_ref[kh, kw],
                                preferred_element_type=jnp.float32)

    o_ref[...] = acc.reshape(1, th, w_out, cout).astype(o_ref.dtype)


# ----------------------------------------------------------------- one-time weight prep
def prepare_conv_params(w_oihw, bias, groups):
    """Build the block-diagonal dense weight ONCE (hoisted out of the hot path).

    w_oihw: (Cout, Cin//groups, 3, 3); bias: (Cout,)
    returns w_dense (3, 3, Cin, Cout) bf16 and bias2d (1, Cout) f32.
    """
    Cout, cig, KH, KW = w_oihw.shape
    Cin = cig * groups
    cog = Cout // groups
    w_g = w_oihw.reshape(groups, cog, cig, KH, KW).astype(jnp.float32)
    w_g = jnp.transpose(w_g, (3, 4, 0, 2, 1))                     # (KH, KW, G, cig, cog)
    w_bd = jnp.einsum("hwgic,gk->hwgikc", w_g,
                      jnp.eye(groups, dtype=jnp.float32))         # (KH, KW, G, cig, G, cog)
    w_dense = w_bd.reshape(KH, KW, Cin, Cout).astype(jnp.bfloat16)
    b2d = bias.reshape(1, Cout).astype(jnp.float32)
    return w_dense, b2d


# ----------------------------------------------------------------------- tiling helpers
def _round_up(x, m):
    return (x + m - 1) // m * m


def _pick_tile_h(H, W, N):
    divisors = [d for d in range(1, H + 1) if H % d == 0]
    tile = H
    for d in divisors:                 # smallest divisor giving >= ~2048 output rows
        if d * W >= 2048:              # per step (amortizes ~0.35us per-step overhead)
            tile = d
            break
    if N * (H // tile) < 2:            # keep >= 2 grid steps so both v7x TCs get work
        for d in reversed(divisors):
            if d < tile:
                tile = d
                break
    return tile


def _vmem_limit_bytes(H, W, Cin, Cout, th, KH=3, KW=3):
    # Double-buffered blocks + temporaries, worst-case (sublane, 128-lane) padding.
    in_img = (H + 2) * _round_up(W + 2, 16) * _round_up(Cin, 128) * 2      # bf16
    out_blk = th * _round_up(W, 16) * _round_up(Cout, 128) * 2             # bf16
    wts = KH * KW * _round_up(Cin, 16) * _round_up(Cout, 128) * 2          # bf16
    acc = th * _round_up(W, 8) * _round_up(Cout, 128) * 4                  # f32 temporaries
    total = 2 * (in_img + out_blk + wts + acc) + (4 << 20)                 # + headroom
    return int(min(max(total, 16 << 20), 64 << 20))                       # v7x-safe cap


# ------------------------------------------------------------------------ NHWC hot path
def grouped_conv2d_nhwc(x_nhwc, w_dense, bias2d, tile_h=None):
    """x_nhwc: (N, H, W, Cin); w_dense: (3,3,Cin,Cout) bf16; bias2d: (1,Cout) f32.
    Returns (N, H, W, Cout) bf16."""
    N, H, W, Cin = x_nhwc.shape
    KH, KW, _, Cout = w_dense.shape

    th = _pick_tile_h(H, W, N) if tile_h is None else tile_h
    assert H % th == 0, "tile_h must divide H"
    n_th = H // th

    # The only activation pre-pass: SAME pad (cheap).  One padded image must fit
    # double-buffered in VMEM; true for the module's 100x100 spatial.  Very large
    # images would need a manual-DMA halo pipeline instead.
    x_pad = jnp.pad(x_nhwc.astype(jnp.bfloat16), ((0, 0), (1, 1), (1, 1), (0, 0)))

    return pl.pallas_call(
        grouped_conv_kernel,
        out_shape=jax.ShapeDtypeStruct((N, H, W, Cout), jnp.bfloat16),
        grid_spec=pltpu.PrefetchScalarGridSpec(
            num_scalar_prefetch=0,
            grid=(N, n_th),
            in_specs=[
                # whole padded image; constant over t -> fetched once per n, resident
                pl.BlockSpec((1, H + 2, W + 2, Cin), lambda n, t: (n, 0, 0, 0)),
                # weights / bias constant over the whole grid -> fetched once, resident
                pl.BlockSpec((KH, KW, Cin, Cout), lambda n, t: (0, 0, 0, 0)),
                pl.BlockSpec((1, Cout), lambda n, t: (0, 0)),
            ],
            out_specs=pl.BlockSpec((1, th, W, Cout), lambda n, t: (n, t, 0, 0)),
        ),
        compiler_params=pltpu.CompilerParams(
            dimension_semantics=("parallel", "parallel"),
            vmem_limit_bytes=_vmem_limit_bytes(H, W, Cin, Cout, th)),
    )(x_pad, w_dense, bias2d)


# ------------------------------------------------------- NCHW boundary wrapper (module)
@jax.jit
def custom_grouped_conv2d(x_nchw, w_dense, bias2d):
    """Matches the PyTorch module's NCHW in / NCHW f32 out.  For production keep the
    model channels-last and call grouped_conv2d_nhwc directly (drops both transposes)."""
    x_nhwc = jnp.transpose(x_nchw, (0, 2, 3, 1))
    out_nhwc = grouped_conv2d_nhwc(x_nhwc, w_dense, bias2d)
    return jnp.transpose(out_nhwc, (0, 3, 1, 2)).astype(jnp.float32)


def reference_grouped_conv2d(x_nchw, w_oihw, bias, groups=16):
    out = jax.lax.conv_general_dilated(
        x_nchw, w_oihw, window_strides=(1, 1), padding="SAME",
        feature_group_count=groups,
        dimension_numbers=("NCHW", "OIHW", "NCHW"),
        precision=jax.lax.Precision.HIGHEST)
    return out + bias.reshape(1, -1, 1, 1)


if __name__ == "__main__":
    # Module-implied channel config (Cin=64, Cout=128, groups=16, 3x3, pad 1);
    # small spatial for the demo.
    N, Cin, Cout, G, H, W = 2, 64, 128, 16, 16, 16

    key = jax.random.PRNGKey(0)
    kx, kw, kb = jax.random.split(key, 3)
    x = jax.random.normal(kx, (N, Cin, H, W), dtype=jnp.float32)
    w = jax.random.normal(kw, (Cout, Cin // G, 3, 3), dtype=jnp.float32) * 0.1
    b = jax.random.normal(kb, (Cout,), dtype=jnp.float32) * 0.1

    # One-time parameter prep (hoisted out of the per-call hot path).
    w_dense, b2d = prepare_conv_params(w, b, groups=G)

    out = custom_grouped_conv2d(x, w_dense, b2d)
    out = jax.block_until_ready(out)

    # Kernel uses bf16 activations/weights (f32 accumulation, bf16 output), so compare
    # against a high-precision reference on the same bf16-rounded operands.
    x_r = x.astype(jnp.bfloat16).astype(jnp.float32)
    w_r = w.astype(jnp.bfloat16).astype(jnp.float32)
    ref = reference_grouped_conv2d(x_r, w_r, b, groups=G)

    assert out.shape == (N, Cout, H, W)
    assert jnp.allclose(out, ref, atol=2e-2, rtol=2e-2), "mismatch vs reference"

    print("KERNEL_OK")
</pallas_src>

<mosaic_0001>
module attributes {stable_mosaic.version = 11 : i64} {
  func.func @grouped_conv_kernel(%arg0: i32, %arg1: i32, %arg2: memref<1x18x18x64xbf16, #tpu.memory_space<vmem>>, %arg3: memref<3x3x64x128xbf16, #tpu.memory_space<vmem>>, %arg4: memref<1x128xf32, #tpu.memory_space<vmem>>, %arg5: memref<1x16x16x128xbf16, #tpu.memory_space<vmem>>) attributes {dimension_semantics = [#tpu.dimension_semantics<parallel>, #tpu.dimension_semantics<parallel>], iteration_bounds = array<i64: 2, 1>, scalar_prefetch = 0 : i64, scratch_operands = 0 : i64, tpu.core_type = #tpu.core_type<tc>, window_params = [{transform_indices = @transform_0, window_bounds = array<i64: 1, 18, 18, 64>}, {pipeline_mode = #tpu.pipeline_mode<synchronous>, transform_indices = @transform_1, window_bounds = array<i64: 3, 3, 64, 128>}, {pipeline_mode = #tpu.pipeline_mode<synchronous>, transform_indices = @transform_2, window_bounds = array<i64: 1, 128>}, {transform_indices = @transform_3, window_bounds = array<i64: 1, 16, 16, 128>}]} {
    %c16_i32 = arith.constant 16 : i32
    %0 = arith.muli %arg1, %c16_i32 : i32
    %c0 = arith.constant 0 : index
    %c0_0 = arith.constant 0 : index
    %1 = vector.load %arg4[%c0, %c0_0] : memref<1x128xf32, #tpu.memory_space<vmem>>, vector<1x128xf32>
    %2 = vector.shape_cast %1 : vector<1x128xf32> to vector<1x128xf32>
    %3 = vector.broadcast %2 : vector<1x128xf32> to vector<256x128xf32>
    %c0_i32 = arith.constant 0 : i32
    %4 = arith.addi %0, %c0_i32 : i32
    %c0_1 = arith.constant 0 : index
    %5 = arith.index_cast %4 : i32 to index
    %c0_2 = arith.constant 0 : index
    %c0_3 = arith.constant 0 : index
    %6 = vector.load %arg2[%c0_1, %5, %c0_2, %c0_3] : memref<1x18x18x64xbf16, #tpu.memory_space<vmem>>, vector<1x16x16x64xbf16>
    %7 = vector.shape_cast %6 : vector<1x16x16x64xbf16> to vector<16x16x64xbf16>
    %8 = vector.shape_cast %7 : vector<16x16x64xbf16> to vector<256x64xbf16>
    %c0_4 = arith.constant 0 : index
    %c0_5 = arith.constant 0 : index
    %c0_6 = arith.constant 0 : index
    %c0_7 = arith.constant 0 : index
    %9 = vector.load %arg3[%c0_4, %c0_5, %c0_6, %c0_7] : memref<3x3x64x128xbf16, #tpu.memory_space<vmem>>, vector<1x1x64x128xbf16>
    %10 = vector.shape_cast %9 : vector<1x1x64x128xbf16> to vector<64x128xbf16>
    %cst = arith.constant dense<0.000000e+00> : vector<256x128xf32>
    %11 = tpu.matmul %8, %10, %cst {dimension_numbers = #tpu.dot_dimension_numbers<[1], [0], [0], [1], [0, 0, 1, 1], [], []>} : vector<256x64xbf16>, vector<64x128xbf16>, vector<256x128xf32> -> vector<256x128xf32>
    %12 = arith.addf %3, %11 : vector<256x128xf32>
    %c0_i32_8 = arith.constant 0 : i32
    %13 = arith.addi %0, %c0_i32_8 : i32
    %c0_9 = arith.constant 0 : index
    %14 = arith.index_cast %13 : i32 to index
    %c1 = arith.constant 1 : index
    %c0_10 = arith.constant 0 : index
    %15 = vector.load %arg2[%c0_9, %14, %c1, %c0_10] : memref<1x18x18x64xbf16, #tpu.memory_space<vmem>>, vector<1x16x16x64xbf16>
    %16 = vector.shape_cast %15 : vector<1x16x16x64xbf16> to vector<16x16x64xbf16>
    %17 = vector.shape_cast %16 : vector<16x16x64xbf16> to vector<256x64xbf16>
    %c0_11 = arith.constant 0 : index
    %c1_12 = arith.constant 1 : index
    %c0_13 = arith.constant 0 : index
    %c0_14 = arith.constant 0 : index
    %18 = vector.load %arg3[%c0_11, %c1_12, %c0_13, %c0_14] : memref<3x3x64x128xbf16, #tpu.memory_space<vmem>>, vector<1x1x64x128xbf16>
    %19 = vector.shape_cast %18 : vector<1x1x64x128xbf16> to vector<64x128xbf16>
    %cst_15 = arith.constant dense<0.000000e+00> : vector<256x128xf32>
    %20 = tpu.matmul %17, %19, %cst_15 {dimension_numbers = #tpu.dot_dimension_numbers<[1], [0], [0], [1], [0, 0, 1, 1], [], []>} : vector<256x64xbf16>, vector<64x128xbf16>, vector<256x128xf32> -> vector<256x128xf32>
    %21 = arith.addf %12, %20 : vector<256x128xf32>
    %c0_i32_16 = arith.constant 0 : i32
    %22 = arith.addi %0, %c0_i32_16 : i32
    %c0_17 = arith.constant 0 : index
    %23 = arith.index_cast %22 : i32 to index
    %c2 = arith.constant 2 : index
    %c0_18 = arith.constant 0 : index
    %24 = vector.load %arg2[%c0_17, %23, %c2, %c0_18] : memref<1x18x18x64xbf16, #tpu.memory_space<vmem>>, vector<1x16x16x64xbf16>
    %25 = vector.shape_cast %24 : vector<1x16x16x64xbf16> to vector<16x16x64xbf16>
    %26 = vector.shape_cast %25 : vector<16x16x64xbf16> to vector<256x64xbf16>
    %c0_19 = arith.constant 0 : index
    %c2_20 = arith.constant 2 : index
    %c0_21 = arith.constant 0 : index
    %c0_22 = arith.constant 0 : index
    %27 = vector.load %arg3[%c0_19, %c2_20, %c0_21, %c0_22] : memref<3x3x64x128xbf16, #tpu.memory_space<vmem>>, vector<1x1x64x128xbf16>
    %28 = vector.shape_cast %27 : vector<1x1x64x128xbf16> to vector<64x128xbf16>
    %cst_23 = arith.constant dense<0.000000e+00> : vector<256x128xf32>
    %29 = tpu.matmul %26, %28, %cst_23 {dimension_numbers = #tpu.dot_dimension_numbers<[1], [0], [0], [1], [0, 0, 1, 1], [], []>} : vector<256x64xbf16>, vector<64x128xbf16>, vector<256x128xf32> -> vector<256x128xf32>
    %30 = arith.addf %21, %29 : vector<256x128xf32>
    %c1_i32 = arith.constant 1 : i32
    %31 = arith.addi %0, %c1_i32 : i32
    %c0_24 = arith.constant 0 : index
    %32 = arith.index_cast %31 : i32 to index
    %c0_25 = arith.constant 0 : index
    %c0_26 = arith.constant 0 : index
    %33 = vector.load %arg2[%c0_24, %32, %c0_25, %c0_26] : memref<1x18x18x64xbf16, #tpu.memory_space<vmem>>, vector<1x16x16x64xbf16>
    %34 = vector.shape_cast %33 : vector<1x16x16x64xbf16> to vector<16x16x64xbf16>
    %35 = vector.shape_cast %34 : vector<16x16x64xbf16> to vector<256x64xbf16>
    %c1_27 = arith.constant 1 : index
    %c0_28 = arith.constant 0 : index
    %c0_29 = arith.constant 0 : index
    %c0_30 = arith.constant 0 : index
    %36 = vector.load %arg3[%c1_27, %c0_28, %c0_29, %c0_30] : memref<3x3x64x128xbf16, #tpu.memory_space<vmem>>, vector<1x1x64x128xbf16>
    %37 = vector.shape_cast %36 : vector<1x1x64x128xbf16> to vector<64x128xbf16>
    %cst_31 = arith.constant dense<0.000000e+00> : vector<256x128xf32>
    %38 = tpu.matmul %35, %37, %cst_31 {dimension_numbers = #tpu.dot_dimension_numbers<[1], [0], [0], [1], [0, 0, 1, 1], [], []>} : vector<256x64xbf16>, vector<64x128xbf16>, vector<256x128xf32> -> vector<256x128xf32>
    %39 = arith.addf %30, %38 : vector<256x128xf32>
    %c1_i32_32 = arith.constant 1 : i32
    %40 = arith.addi %0, %c1_i32_32 : i32
    %c0_33 = arith.constant 0 : index
    %41 = arith.index_cast %40 : i32 to index
    %c1_34 = arith.constant 1 : index
    %c0_35 = arith.constant 0 : index
    %42 = vector.load %arg2[%c0_33, %41, %c1_34, %c0_35] : memref<1x18x18x64xbf16, #tpu.memory_space<vmem>>, vector<1x16x16x64xbf16>
    %43 = vector.shape_cast %42 : vector<1x16x16x64xbf16> to vector<16x16x64xbf16>
    %44 = vector.shape_cast %43 : vector<16x16x64xbf16> to vector<256x64xbf16>
    %c1_36 = arith.constant 1 : index
    %c1_37 = arith.constant 1 : index
    %c0_38 = arith.constant 0 : index
    %c0_39 = arith.constant 0 : index
    %45 = vector.load %arg3[%c1_36, %c1_37, %c0_38, %c0_39] : memref<3x3x64x128xbf16, #tpu.memory_space<vmem>>, vector<1x1x64x128xbf16>
    %46 = vector.shape_cast %45 : vector<1x1x64x128xbf16> to vector<64x128xbf16>
    %cst_40 = arith.constant dense<0.000000e+00> : vector<256x128xf32>
    %47 = tpu.matmul %44, %46, %cst_40 {dimension_numbers = #tpu.dot_dimension_numbers<[1], [0], [0], [1], [0, 0, 1, 1], [], []>} : vector<256x64xbf16>, vector<64x128xbf16>, vector<256x128xf32> -> vector<256x128xf32>
    %48 = arith.addf %39, %47 : vector<256x128xf32>
    %c1_i32_41 = arith.constant 1 : i32
    %49 = arith.addi %0, %c1_i32_41 : i32
    %c0_42 = arith.constant 0 : index
    %50 = arith.index_cast %49 : i32 to index
    %c2_43 = arith.constant 2 : index
    %c0_44 = arith.constant 0 : index
    %51 = vector.load %arg2[%c0_42, %50, %c2_43, %c0_44] : memref<1x18x18x64xbf16, #tpu.memory_space<vmem>>, vector<1x16x16x64xbf16>
    %52 = vector.shape_cast %51 : vector<1x16x16x64xbf16> to vector<16x16x64xbf16>
    %53 = vector.shape_cast %52 : vector<16x16x64xbf16> to vector<256x64xbf16>
    %c1_45 = arith.constant 1 : index
    %c2_46 = arith.constant 2 : index
    %c0_47 = arith.constant 0 : index
    %c0_48 = arith.constant 0 : index
    %54 = vector.load %arg3[%c1_45, %c2_46, %c0_47, %c0_48] : memref<3x3x64x128xbf16, #tpu.memory_space<vmem>>, vector<1x1x64x128xbf16>
    %55 = vector.shape_cast %54 : vector<1x1x64x128xbf16> to vector<64x128xbf16>
    %cst_49 = arith.constant dense<0.000000e+00> : vector<256x128xf32>
    %56 = tpu.matmul %53, %55, %cst_49 {dimension_numbers = #tpu.dot_dimension_numbers<[1], [0], [0], [1], [0, 0, 1, 1], [], []>} : vector<256x64xbf16>, vector<64x128xbf16>, vector<256x128xf32> -> vector<256x128xf32>
    %57 = arith.addf %48, %56 : vector<256x128xf32>
    %c2_i32 = arith.constant 2 : i32
    %58 = arith.addi %0, %c2_i32 : i32
    %c0_50 = arith.constant 0 : index
    %59 = arith.index_cast %58 : i32 to index
    %c0_51 = arith.constant 0 : index
    %c0_52 = arith.constant 0 : index
    %60 = vector.load %arg2[%c0_50, %59, %c0_51, %c0_52] : memref<1x18x18x64xbf16, #tpu.memory_space<vmem>>, vector<1x16x16x64xbf16>
    %61 = vector.shape_cast %60 : vector<1x16x16x64xbf16> to vector<16x16x64xbf16>
    %62 = vector.shape_cast %61 : vector<16x16x64xbf16> to vector<256x64xbf16>
    %c2_53 = arith.constant 2 : index
    %c0_54 = arith.constant 0 : index
    %c0_55 = arith.constant 0 : index
    %c0_56 = arith.constant 0 : index
    %63 = vector.load %arg3[%c2_53, %c0_54, %c0_55, %c0_56] : memref<3x3x64x128xbf16, #tpu.memory_space<vmem>>, vector<1x1x64x128xbf16>
    %64 = vector.shape_cast %63 : vector<1x1x64x128xbf16> to vector<64x128xbf16>
    %cst_57 = arith.constant dense<0.000000e+00> : vector<256x128xf32>
    %65 = tpu.matmul %62, %64, %cst_57 {dimension_numbers = #tpu.dot_dimension_numbers<[1], [0], [0], [1], [0, 0, 1, 1], [], []>} : vector<256x64xbf16>, vector<64x128xbf16>, vector<256x128xf32> -> vector<256x128xf32>
    %66 = arith.addf %57, %65 : vector<256x128xf32>
    %c2_i32_58 = arith.constant 2 : i32
    %67 = arith.addi %0, %c2_i32_58 : i32
    %c0_59 = arith.constant 0 : index
    %68 = arith.index_cast %67 : i32 to index
    %c1_60 = arith.constant 1 : index
    %c0_61 = arith.constant 0 : index
    %69 = vector.load %arg2[%c0_59, %68, %c1_60, %c0_61] : memref<1x18x18x64xbf16, #tpu.memory_space<vmem>>, vector<1x16x16x64xbf16>
    %70 = vector.shape_cast %69 : vector<1x16x16x64xbf16> to vector<16x16x64xbf16>
    %71 = vector.shape_cast %70 : vector<16x16x64xbf16> to vector<256x64xbf16>
    %c2_62 = arith.constant 2 : index
    %c1_63 = arith.constant 1 : index
    %c0_64 = arith.constant 0 : index
    %c0_65 = arith.constant 0 : index
    %72 = vector.load %arg3[%c2_62, %c1_63, %c0_64, %c0_65] : memref<3x3x64x128xbf16, #tpu.memory_space<vmem>>, vector<1x1x64x128xbf16>
    %73 = vector.shape_cast %72 : vector<1x1x64x128xbf16> to vector<64x128xbf16>
    %cst_66 = arith.constant dense<0.000000e+00> : vector<256x128xf32>
    %74 = tpu.matmul %71, %73, %cst_66 {dimension_numbers = #tpu.dot_dimension_numbers<[1], [0], [0], [1], [0, 0, 1, 1], [], []>} : vector<256x64xbf16>, vector<64x128xbf16>, vector<256x128xf32> -> vector<256x128xf32>
    %75 = arith.addf %66, %74 : vector<256x128xf32>
    %c2_i32_67 = arith.constant 2 : i32
    %76 = arith.addi %0, %c2_i32_67 : i32
    %c0_68 = arith.constant 0 : index
    %77 = arith.index_cast %76 : i32 to index
    %c2_69 = arith.constant 2 : index
    %c0_70 = arith.constant 0 : index
    %78 = vector.load %arg2[%c0_68, %77, %c2_69, %c0_70] : memref<1x18x18x64xbf16, #tpu.memory_space<vmem>>, vector<1x16x16x64xbf16>
    %79 = vector.shape_cast %78 : vector<1x16x16x64xbf16> to vector<16x16x64xbf16>
    %80 = vector.shape_cast %79 : vector<16x16x64xbf16> to vector<256x64xbf16>
    %c2_71 = arith.constant 2 : index
    %c2_72 = arith.constant 2 : index
    %c0_73 = arith.constant 0 : index
    %c0_74 = arith.constant 0 : index
    %81 = vector.load %arg3[%c2_71, %c2_72, %c0_73, %c0_74] : memref<3x3x64x128xbf16, #tpu.memory_space<vmem>>, vector<1x1x64x128xbf16>
    %82 = vector.shape_cast %81 : vector<1x1x64x128xbf16> to vector<64x128xbf16>
    %cst_75 = arith.constant dense<0.000000e+00> : vector<256x128xf32>
    %83 = tpu.matmul %80, %82, %cst_75 {dimension_numbers = #tpu.dot_dimension_numbers<[1], [0], [0], [1], [0, 0, 1, 1], [], []>} : vector<256x64xbf16>, vector<64x128xbf16>, vector<256x128xf32> -> vector<256x128xf32>
    %84 = arith.addf %75, %83 : vector<256x128xf32>
    %85 = vector.shape_cast %84 : vector<256x128xf32> to vector<1x16x16x128xf32>
    %86 = arith.truncf %85 : vector<1x16x16x128xf32> to vector<1x16x16x128xbf16>
    %c0_76 = arith.constant 0 : index
    %c0_77 = arith.constant 0 : index
    %c0_78 = arith.constant 0 : index
    %c0_79 = arith.constant 0 : index
    %87 = vector.load %arg5[%c0_76, %c0_77, %c0_78, %c0_79] : memref<1x16x16x128xbf16, #tpu.memory_space<vmem>>, vector<1x16x16x128xbf16>
    tpu.vector_store %arg5[%c0_76, %c0_77, %c0_78, %c0_79], %86 {strides = array<i32>} : memref<1x16x16x128xbf16, #tpu.memory_space<vmem>>, vector<1x16x16x128xbf16>,
    return
  }
  func.func @transform_0(%arg0: i32, %arg1: i32) -> (i32, i32, i32, i32) {
    %c0_i32 = arith.constant 0 : i32
    %c0_i32_0 = arith.constant 0 : i32
    %c0_i32_1 = arith.constant 0 : i32
    %c0_i32_2 = arith.constant 0 : i32
    return %arg0, %c0_i32, %c0_i32_0, %c0_i32_1 : i32, i32, i32, i32
  }
  func.func @transform_1(%arg0: i32, %arg1: i32) -> (i32, i32, i32, i32) {
    %c0_i32 = arith.constant 0 : i32
    %c0_i32_0 = arith.constant 0 : i32
    %c0_i32_1 = arith.constant 0 : i32
    %c0_i32_2 = arith.constant 0 : i32
    %c0_i32_3 = arith.constant 0 : i32
    return %c0_i32, %c0_i32_0, %c0_i32_1, %c0_i32_2 : i32, i32, i32, i32
  }
  func.func @transform_2(%arg0: i32, %arg1: i32) -> (i32, i32) {
    %c0_i32 = arith.constant 0 : i32
    %c0_i32_0 = arith.constant 0 : i32
    %c0_i32_1 = arith.constant 0 : i32
    return %c0_i32, %c0_i32_0 : i32, i32
  }
  func.func @transform_3(%arg0: i32, %arg1: i32) -> (i32, i32, i32, i32) {
    %c0_i32 = arith.constant 0 : i32
    %c0_i32_0 = arith.constant 0 : i32
    %c0_i32_1 = arith.constant 0 : i32
    return %arg0, %arg1, %c0_i32, %c0_i32_0 : i32, i32, i32, i32
  }
}

</mosaic_0001>

<llo_original>
// kernel: custom_grouped_conv2d.1
$region0: #{custom_grouped_conv2d.1}
  #allocation0 [shape = 'u32[]', space=smem, size = 0x4, offset = 0x4, fixed_abs, tag = 'smem constant byte address 0x4 - core index']
  #allocation1 [shape = 'u32[72,128]{1,0:T(1,128)}', space=vmem, size = 0x9000, scoped, tag = 'internal scratch']
  %s0 = inlined_call_operand.vmem [shape: bf16[2,18,18,64], index: 0, kind: input, shape index: {}]
  %s1 = inlined_call_operand.vmem [shape: bf16[3,3,64,128], index: 1, kind: input, shape index: {}]
  %s2 = inlined_call_operand.vmem [shape: f32[1,128], index: 2, kind: input, shape index: {}]
  %s3 = inlined_call_operand.vmem [shape: bf16[2,16,16,128], index: 3, kind: output, shape index: {}]
  %s4 = sld [smem:[#allocation0]]
  $region45: #{custom_grouped_conv2d.1} parent=0
    _
  %s6 = ssub.s32 1, %s4
  %s7 = scalar_select 0, %s6, %s4
  loop: start=0, step=1, limit=4
  $region2: #{custom_grouped_conv2d.1} parent=0 // loop_pre_header
    _
  $region3: #{custom_grouped_conv2d.1} parent=0 // loop_header
    %s9 = sphi 0, %s13
    %p10 = scmp.ge.s32.totalorder %s9, 4
    %s16 = sphi 0, %s28
    %s17 = sphi 0, %s24
    %s18 = sphi 0, %s16
    %s19 = sphi 0, %s17
    %s20 = sphi 0, %s18
    %s21 = sphi 0, %s19
    %s31 = sphi 0, %s33
    %s34 = sphi 0, %s31
    %s35 = sphi 0, %s34
    %s51 = sphi 0, %s35
    %s55 = sphi 0, %s55
    %s57 = sphi 0, %s55
    %s58 = sphi 0, %s57
    %s72 = sphi 0, %s58
    %s76 = sphi 0, %s76
    %s78 = sphi 0, %s76
    %s79 = sphi 0, %s78
    %s93 = sphi 0, %s79
    %s101 = sphi 0, %s103
    %s104 = sphi 0, %s101
    %s105 = sphi 0, %s104
    %s121 = sphi 0, %s105
  $region4: #{custom_grouped_conv2d.1} parent=0 // loop_header_branch
    %12 = sbr.rel (%p10) target = $region8
  $region5: #{custom_grouped_conv2d.1} parent=0 // loop_body
    %s14 = ssub.s32 %s9, 1
    %s15 = ssub.s32 %s9, 2
    %s22 = sadd.s32 1, %s17
    %p23 = scmp.ge.s32.totalorder %s22, 1
    %s24 = scalar_select %p23, 0, %s22
    %s25 = sadd.s32 1, %s16
    %s26 = scalar_select %p23, %s25, %s16
    %p27 = scmp.ge.s32.totalorder %s26, 2
    %s28 = scalar_select %p27, 0, %s26
    %s29 = ssub.s32 %s16, %s28
    %p30 = scmp.eq.s32.totalorder %s29, 0
    %s32 = sadd.s32 %s31, 1
    %s33 = scalar_select %p30, %s31, %s32
    %p36 = pneg %p30
    %p37 = scmp.eq.s32.totalorder %s9, 1
    %p38 = por %p36, %p37
    %p39 = scmp.ne.s32.totalorder %s31, %s34
    %p40 = scmp.eq.s32.totalorder %s9, 0
    %p41 = por %p39, %p40
    %p42 = scmp.ne.s32.totalorder %s31, %s34
    %p43 = scmp.eq.s32.totalorder %s14, 1
    %p44 = por %p42, %p43
    %p45 = scmp.ne.s32.totalorder %s34, %s35
    %p46 = scmp.eq.s32.totalorder %s14, 0
    %p47 = por %p45, %p46
    %p48 = scmp.ne.s32.totalorder %s34, %s35
    %p49 = scmp.eq.s32.totalorder %s15, 1
    %p50 = por %p48, %p49
    %p52 = scmp.ne.s32.totalorder %s35, %s51
    %p53 = scmp.eq.s32.totalorder %s15, 0
    %p54 = por %p52, %p53
    %s56 = sadd.s32 %s55, 1
    %p59 = scmp.eq.s32.totalorder %s9, 1
    %p60 = scmp.ne.s32.totalorder %s55, %s57
    %p61 = scmp.eq.s32.totalorder %s9, 0
    %p62 = por %p60, %p61
    %p63 = scmp.ne.s32.totalorder %s55, %s57
    %p64 = scmp.eq.s32.totalorder %s14, 1
    %p65 = por %p63, %p64
    %p66 = scmp.ne.s32.totalorder %s57, %s58
    %p67 = scmp.eq.s32.totalorder %s14, 0
    %p68 = por %p66, %p67
    %p69 = scmp.ne.s32.totalorder %s57, %s58
    %p70 = scmp.eq.s32.totalorder %s15, 1
    %p71 = por %p69, %p70
    %p73 = scmp.ne.s32.totalorder %s58, %s72
    %p74 = scmp.eq.s32.totalorder %s15, 0
    %p75 = por %p73, %p74
    %s77 = sadd.s32 %s76, 1
    %p80 = scmp.eq.s32.totalorder %s9, 1
    %p81 = scmp.ne.s32.totalorder %s76, %s78
    %p82 = scmp.eq.s32.totalorder %s9, 0
    %p83 = por %p81, %p82
    %p84 = scmp.ne.s32.totalorder %s76, %s78
    %p85 = scmp.eq.s32.totalorder %s14, 1
    %p86 = por %p84, %p85
    %p87 = scmp.ne.s32.totalorder %s78, %s79
    %p88 = scmp.eq.s32.totalorder %s14, 0
    %p89 = por %p87, %p88
    %p90 = scmp.ne.s32.totalorder %s78, %s79
    %p91 = scmp.eq.s32.totalorder %s15, 1
    %p92 = por %p90, %p91
    %p94 = scmp.ne.s32.totalorder %s79, %s93
    %p95 = scmp.eq.s32.totalorder %s15, 0
    %p96 = por %p94, %p95
    %s97 = ssub.s32 %s16, %s28
    %s98 = ssub.s32 %s17, %s24
    %s99 = sor.u32 %s97, %s98
    %p100 = scmp.eq.s32.totalorder %s99, 0
    %s102 = sadd.s32 %s101, 1
    %s103 = scalar_select %p100, %s101, %s102
    %p106 = pneg %p100
    %p107 = scmp.eq.s32.totalorder %s9, 1
    %p108 = por %p106, %p107
    %p109 = scmp.ne.s32.totalorder %s101, %s104
    %p110 = scmp.eq.s32.totalorder %s9, 0
    %p111 = por %p109, %p110
    %p112 = scmp.ne.s32.totalorder %s101, %s104
    %p113 = scmp.eq.s32.totalorder %s14, 1
    %p114 = por %p112, %p113
    %p115 = scmp.ne.s32.totalorder %s104, %s105
    %p116 = scmp.eq.s32.totalorder %s14, 0
    %p117 = por %p115, %p116
    %p118 = scmp.ne.s32.totalorder %s104, %s105
    %p119 = scmp.eq.s32.totalorder %s15, 1
    %p120 = por %p118, %p119
    %p122 = scmp.ne.s32.totalorder %s105, %s121
    %p123 = scmp.eq.s32.totalorder %s15, 0
    %p124 = por %p122, %p123
    %p125 = scmp.le.s32.totalorder 1, %s9
    %p126 = scmp.lt.s32.totalorder %s9, 3
    %p127 = pnand %p125, %p126
    %p128 = pneg %p127
    // Predicated region
    $region9: #{custom_grouped_conv2d.1} parent=5 // pred_check
      _
    $region10: #{custom_grouped_conv2d.1} parent=5 // pred_check_branch
      %130 = sbr.rel (%p127) target = $region12
    $region11: #{custom_grouped_conv2d.1} parent=5 // pred_region
      %s131 = ssub.s32 %s9, 1
      // Predicated region
      $region13: #{custom_grouped_conv2d.1} parent=11 // pred_check
        %p132 = pneg %p68
      $region14: #{custom_grouped_conv2d.1} parent=11 // pred_check_branch
        %134 = sbr.rel (%p132) target = $region16
      $region15: #{custom_grouped_conv2d.1} parent=11 // pred_region
        _
      $region16: #{custom_grouped_conv2d.1} parent=11 // pred_fallthru
        _
      // Predicated region
      $region17: #{custom_grouped_conv2d.1} parent=11 // pred_check
        %p135 = pneg %p89
      $region18: #{custom_grouped_conv2d.1} parent=11 // pred_check_branch
        %137 = sbr.rel (%p135) target = $region20
      $region19: #{custom_grouped_conv2d.1} parent=11 // pred_region
        _
      $region20: #{custom_grouped_conv2d.1} parent=11 // pred_fallthru
        _
    $region12: #{custom_grouped_conv2d.1} parent=5 // pred_fallthru
      _
    %p138 = scmp.lt.s32.totalorder %s9, 2
    // Predicated region
    $region21: #{custom_grouped_conv2d.1} parent=5 // pred_check
      %p139 = pneg %p138
    $region22: #{custom_grouped_conv2d.1} parent=5 // pred_check_branch
      %141 = sbr.rel (%p139) target = $region24
    $region23: #{custom_grouped_conv2d.1} parent=5 // pred_region
      // Predicated region
      $region25: #{custom_grouped_conv2d.1} parent=23 // pred_check
        %p142 = pneg %p41
      $region26: #{custom_grouped_conv2d.1} parent=23 // pred_check_branch
        %144 = sbr.rel (%p142) target = $region28
      $region27: #{custom_grouped_conv2d.1} parent=23 // pred_region
        %p145 = scmp.lt.s32.totalorder %s16, 1
        %s146 = scalar_select %p145, %s16, 1
        %s147 = smul.addr %s146, 54
        %s148 = smul.addr %s147, 4
        %s149 = scalar_lea.vmem %s0, %s148
      $region28: #{custom_grouped_conv2d.1} parent=23 // pred_fallthru
        _
    $region24: #{custom_grouped_conv2d.1} parent=5 // pred_fallthru
      _
    %p150 = scmp.le.s32.totalorder 1, %s9
    %p151 = scmp.lt.s32.totalorder %s9, 3
    %p152 = pnand %p150, %p151
    %p153 = pneg %p152
    // Predicated region
    $region29: #{custom_grouped_conv2d.1} parent=5 // pred_check
      _
    $region30: #{custom_grouped_conv2d.1} parent=5 // pred_check_branch
      %155 = sbr.rel (%p152) target = $region32
    $region31: #{custom_grouped_conv2d.1} parent=5 // pred_region
      %s156 = ssub.s32 %s9, 1
      %p157 = scmp.lt.s32.totalorder %s18, 1
      %s158 = scalar_select %p157, %s18, 1
      %s159 = smul.addr %s158, 54
      %s160 = smul.addr %s159, 4
      %s161 = scalar_lea.vmem %s0, %s160
      %p162 = pneg %p47
      %p163 = pneg %p44
      %p164 = pneg %p68
      %p165 = pneg %p65
      %p166 = pneg %p89
      %p167 = pneg %p86
      %p168 = pneg %p117
      %p169 = pneg %p114
      %s170 = smul.u32 16, %s19
      %p171 = scmp.lt.s32.totalorder %s18, 1
      %s172 = scalar_select %p171, %s18, 1
      %p173 = scmp.lt.s32.totalorder %s170, 15
      %s174 = scalar_select %p173, %s170, 15
      %s175 = smul.addr %s174, 2
      %s176 = smul.addr %s172, 32
      %s177 = sadd.s32 %s175, %s176
      %s178 = smul.addr %s177, 4
      %s179 = scalar_lea.vmem %s3, %s178
      %p180 = scmp.lt.s32.totalorder %s18, 1
      %s181 = scalar_select %p180, %s18, 1
      %s182 = smul.addr %s181, 54
      %s183 = smul.addr %s182, 4
      %s184 = scalar_lea.vmem %s0, %s183
      %s185 = smul.u32 16, %s19
      %p186 = scmp.lt.s32.totalorder %s18, 1
      %s187 = scalar_select %p186, %s18, 1
      %p188 = scmp.lt.s32.totalorder %s185, 15
      %s189 = scalar_select %p188, %s185, 15
      %s190 = smul.addr %s189, 2
      %s191 = smul.addr %s187, 32
      %s192 = sadd.s32 %s190, %s191
      %s193 = smul.addr %s192, 4
      %s194 = scalar_lea.vmem %s3, %s193
      %s195 = smul.u32 16, %s19
      %s197 = smul.u32 %s19, 16
      %v198 = vld [vmem:[%s2] sm:$0x1]
      %v200 = vperm.slane %v198, 0
      %s202 = smul.u32 %s197, 3
      %s203 = smul.addr %s202, 4
      %s204 = scalar_lea.vmem %s184, %s203
      %v205 = vld [vmem:[%s204] sm:$0xf]
      %v206 = vld [vmem:[%s204 + $0x4] sm:$0xf]
      %v207 = vld [vmem:[%s204 + $0xc] sm:$0xf]
      %v208 = vld [vmem:[%s204 + $0x10] sm:$0xf]
      %v209 = vld [vmem:[%s204 + $0x18] sm:$0xf]
      %v210 = vld [vmem:[%s204 + $0x1c] sm:$0xf]
      %v211 = vld [vmem:[%s204 + $0x24] sm:$0xf]
      %v212 = vld [vmem:[%s204 + $0x28] sm:$0xf]
      %v213 = vld [vmem:[%s204 + $0x30] sm:$0xf]
      %v214 = vld [vmem:[%s204 + $0x34] sm:$0xf]
      %v215 = vld [vmem:[%s204 + $0x3c] sm:$0xf]
      %v216 = vld [vmem:[%s204 + $0x40] sm:$0xf]
      %v217 = vld [vmem:[%s204 + $0x48] sm:$0xf]
      %v218 = vld [vmem:[%s204 + $0x4c] sm:$0xf]
      %v219 = vld [vmem:[%s204 + $0x54] sm:$0xf]
      %v220 = vld [vmem:[%s204 + $0x58] sm:$0xf]
      %v221 = vld [vmem:[%s204 + $0x60] sm:$0xf]
      %v222 = vld [vmem:[%s204 + $0x64] sm:$0xf]
      %v223 = vld [vmem:[%s204 + $0x6c] sm:$0xf]
      %v224 = vld [vmem:[%s204 + $0x70] sm:$0xf]
      %v225 = vld [vmem:[%s204 + $0x78] sm:$0xf]
      %v226 = vld [vmem:[%s204 + $0x7c] sm:$0xf]
      %v227 = vld [vmem:[%s204 + $0x84] sm:$0xf]
      %v228 = vld [vmem:[%s204 + $0x88] sm:$0xf]
      %v229 = vld [vmem:[%s204 + $0x90] sm:$0xf]
      %v230 = vld [vmem:[%s204 + $0x94] sm:$0xf]
      %v231 = vld [vmem:[%s204 + $0x9c] sm:$0xf]
      %v232 = vld [vmem:[%s204 + $0xa0] sm:$0xf]
      %v233 = vld [vmem:[%s204 + $0xa8] sm:$0xf]
      %v234 = vld [vmem:[%s204 + $0xac] sm:$0xf]
      %v235 = vld [vmem:[%s204 + $0xb4] sm:$0xf]
      %v236 = vld [vmem:[%s204 + $0xb8] sm:$0xf]
      %v237 = vld [vmem:[%s1] sm:$0xf]
      %v238 = vld [vmem:[%s1 + $0x4] sm:$0xf]
      %v239 = vld [vmem:[%s1 + $0x8] sm:$0xf]
      %v240 = vld [vmem:[%s1 + $0xc] sm:$0xf]
      %v241 = vld [vmem:[%s1 + $0x10] sm:$0xf]
      %v242 = vld [vmem:[%s1 + $0x14] sm:$0xf]
      %v243 = vld [vmem:[%s1 + $0x18] sm:$0xf]
      %v244 = vld [vmem:[%s1 + $0x1c] sm:$0xf]
      %v277 = vunpack.c.l.b16 %v205
      %v278 = vunpack.c.l.b16 %v206
      %v279 = vunpack.c.l.b16 %v207
      %v280 = vunpack.c.l.b16 %v208
      %v281 = vunpack.c.l.b16 %v209
      %v282 = vunpack.c.l.b16 %v210
      %v283 = vunpack.c.l.b16 %v211
      %v284 = vunpack.c.l.b16 %v212
      %v285 = vunpack.c.l.b16 %v213
      %v286 = vunpack.c.l.b16 %v214
      %v287 = vunpack.c.l.b16 %v215
      %v288 = vunpack.c.l.b16 %v216
      %v289 = vunpack.c.l.b16 %v217
      %v290 = vunpack.c.l.b16 %v218
      %v291 = vunpack.c.l.b16 %v219
      %v292 = vunpack.c.l.b16 %v220
      %v293 = vunpack.c.l.b16 %v221
      %v294 = vunpack.c.l.b16 %v222
      %v295 = vunpack.c.l.b16 %v223
      %v296 = vunpack.c.l.b16 %v224
      %v297 = vunpack.c.l.b16 %v225
      %v298 = vunpack.c.l.b16 %v226
      %v299 = vunpack.c.l.b16 %v227
      %v300 = vunpack.c.l.b16 %v228
      %v301 = vunpack.c.l.b16 %v229
      %v302 = vunpack.c.l.b16 %v230
      %v303 = vunpack.c.l.b16 %v231
      %v304 = vunpack.c.l.b16 %v232
      %v305 = vunpack.c.l.b16 %v233
      %v306 = vunpack.c.l.b16 %v234
      %v307 = vunpack.c.l.b16 %v235
      %v308 = vunpack.c.l.b16 %v236
      %v309 = vpack.c.b16 %v278, %v277
      %v310 = vpack.c.b16 %v280, %v279
      %v311 = vpack.c.b16 %v282, %v281
      %v312 = vpack.c.b16 %v284, %v283
      %v313 = vpack.c.b16 %v286, %v285
      %v314 = vpack.c.b16 %v288, %v287
      %v315 = vpack.c.b16 %v290, %v289
      %v316 = vpack.c.b16 %v292, %v291
      %v317 = vpack.c.b16 %v294, %v293
      %v318 = vpack.c.b16 %v296, %v295
      %v319 = vpack.c.b16 %v298, %v297
      %v320 = vpack.c.b16 %v300, %v299
      %v321 = vpack.c.b16 %v302, %v301
      %v322 = vpack.c.b16 %v304, %v303
      %v323 = vpack.c.b16 %v306, %v305
      %v324 = vpack.c.b16 %v308, %v307
      %v333 = vunpack.c.l.b16 %v237
      %v334 = vunpack.c.l.b16 %v238
      %v335 = vunpack.c.l.b16 %v239
      %v336 = vunpack.c.l.b16 %v240
      %v337 = vunpack.c.l.b16 %v241
      %v338 = vunpack.c.l.b16 %v242
      %v339 = vunpack.c.l.b16 %v243
      %v340 = vunpack.c.l.b16 %v244
      %v341 = vpack.c.b16 %v334, %v333
      %v342 = vpack.c.b16 %v336, %v335
      %v343 = vpack.c.b16 %v338, %v337
      %v344 = vpack.c.b16 %v340, %v339
      %vm349 = vcmask 523264
      %v351 = vsel %vm349, %v309, 0
      %v354 = vsel %vm349, %v310, 0
      %v357 = vsel %vm349, %v311, 0
      %v360 = vsel %vm349, %v312, 0
      %v363 = vsel %vm349, %v313, 0
      %v366 = vsel %vm349, %v314, 0
      %v369 = vsel %vm349, %v315, 0
      %v372 = vsel %vm349, %v316, 0
      %v375 = vsel %vm349, %v317, 0
      %v378 = vsel %vm349, %v318, 0
      %v381 = vsel %vm349, %v319, 0
      %v384 = vsel %vm349, %v320, 0
      %v387 = vsel %vm349, %v321, 0
      %v390 = vsel %vm349, %v322, 0
      %v393 = vsel %vm349, %v323, 0
      %v396 = vsel %vm349, %v324, 0
      %398 = vmatpush.bf16.msra.mxu0 0
      %399 = vmatpush.bf16.msra.mxu0 0
      %400 = vmatpush.bf16.msra.mxu0 0
      %401 = vmatpush.bf16.msra.mxu0 0
      %402 = vmatpush.bf16.msra.mxu0 %v344
      %403 = vmatpush.bf16.msra.mxu0 %v343
      %404 = vmatpush.bf16.msra.mxu0 %v342
      %405 = vmatpush.bf16.msra.mxu0 %v341
      %406 = vmatmul.bf16.gmra.mxu0 %v351
      %v407 = vpop.f32.mrf.mxu0
      %v408 = vadd.f32 0.0, %v407
      %v409 = vpop.f32.mrf.mxu0
      %v410 = vadd.f32 0.0, %v409
      %411 = vmatmul.bf16.gmra.mxu0 %v354
      %v412 = vpop.f32.mrf.mxu0
      %v413 = vadd.f32 0.0, %v412
      %v414 = vpop.f32.mrf.mxu0
      %v415 = vadd.f32 0.0, %v414
      %416 = vmatmul.bf16.gmra.mxu0 %v357
      %v417 = vpop.f32.mrf.mxu0
      %v418 = vadd.f32 0.0, %v417
      %v419 = vpop.f32.mrf.mxu0
      %v420 = vadd.f32 0.0, %v419
      %421 = vmatmul.bf16.gmra.mxu0 %v360
      %v422 = vpop.f32.mrf.mxu0
      %v423 = vadd.f32 0.0, %v422
      %v424 = vpop.f32.mrf.mxu0
      %v425 = vadd.f32 0.0, %v424
      %426 = vmatmul.bf16.gmra.mxu0 %v363
      %v427 = vpop.f32.mrf.mxu0
      %v428 = vadd.f32 0.0, %v427
      %v429 = vpop.f32.mrf.mxu0
      %v430 = vadd.f32 0.0, %v429
      %431 = vmatmul.bf16.gmra.mxu0 %v366
      %v432 = vpop.f32.mrf.mxu0
      %v433 = vadd.f32 0.0, %v432
      %v434 = vpop.f32.mrf.mxu0
      %v435 = vadd.f32 0.0, %v434
      %436 = vmatmul.bf16.gmra.mxu0 %v369
      %v437 = vpop.f32.mrf.mxu0
      %v438 = vadd.f32 0.0, %v437
      %v439 = vpop.f32.mrf.mxu0
      %v440 = vadd.f32 0.0, %v439
      %441 = vmatmul.bf16.gmra.mxu0 %v372
      %v442 = vpop.f32.mrf.mxu0
      %v443 = vadd.f32 0.0, %v442
      %v444 = vpop.f32.mrf.mxu0
      %v445 = vadd.f32 0.0, %v444
      %446 = vmatmul.bf16.gmra.mxu0 %v375
      %v447 = vpop.f32.mrf.mxu0
      %v448 = vadd.f32 0.0, %v447
      %v449 = vpop.f32.mrf.mxu0
      %v450 = vadd.f32 0.0, %v449
      %451 = vmatmul.bf16.gmra.mxu0 %v378
      %v452 = vpop.f32.mrf.mxu0
      %v453 = vadd.f32 0.0, %v452
      %v454 = vpop.f32.mrf.mxu0
      %v455 = vadd.f32 0.0, %v454
      %456 = vmatmul.bf16.gmra.mxu0 %v381
      %v457 = vpop.f32.mrf.mxu0
      %v458 = vadd.f32 0.0, %v457
      %v459 = vpop.f32.mrf.mxu0
      %v460 = vadd.f32 0.0, %v459
      %461 = vmatmul.bf16.gmra.mxu0 %v384
      %v462 = vpop.f32.mrf.mxu0
      %v463 = vadd.f32 0.0, %v462
      %v464 = vpop.f32.mrf.mxu0
      %v465 = vadd.f32 0.0, %v464
      %466 = vmatmul.bf16.gmra.mxu0 %v387
      %v467 = vpop.f32.mrf.mxu0
      %v468 = vadd.f32 0.0, %v467
      %v469 = vpop.f32.mrf.mxu0
      %v470 = vadd.f32 0.0, %v469
      %471 = vmatmul.bf16.gmra.mxu0 %v390
      %v472 = vpop.f32.mrf.mxu0
      %v473 = vadd.f32 0.0, %v472
      %v474 = vpop.f32.mrf.mxu0
      %v475 = vadd.f32 0.0, %v474
      %476 = vmatmul.bf16.gmra.mxu0 %v393
      %v477 = vpop.f32.mrf.mxu0
      %v478 = vadd.f32 0.0, %v477
      %v479 = vpop.f32.mrf.mxu0
      %v480 = vadd.f32 0.0, %v479
      %481 = vmatmul.bf16.gmra.mxu0 %v396
      %v482 = vpop.f32.mrf.mxu0
      %v483 = vadd.f32 0.0, %v482
      %v484 = vpop.f32.mrf.mxu0
      %v485 = vadd.f32 0.0, %v484
      %486 = vdwg.mxu0
      %v487 = vadd.f32 %v200, %v408
      %v488 = vadd.f32 %v200, %v410
      %v489 = vadd.f32 %v200, %v413
      %v490 = vadd.f32 %v200, %v415
      %v491 = vadd.f32 %v200, %v418
      %v492 = vadd.f32 %v200, %v420
      %v493 = vadd.f32 %v200, %v423
      %v494 = vadd.f32 %v200, %v425
      %v495 = vadd.f32 %v200, %v428
      %v496 = vadd.f32 %v200, %v430
      %v497 = vadd.f32 %v200, %v433
      %v498 = vadd.f32 %v200, %v435
      %v499 = vadd.f32 %v200, %v438
      %v500 = vadd.f32 %v200, %v440
      %v501 = vadd.f32 %v200, %v443
      %v502 = vadd.f32 %v200, %v445
      %v503 = vadd.f32 %v200, %v448
      %v504 = vadd.f32 %v200, %v450
      %v505 = vadd.f32 %v200, %v453
      %v506 = vadd.f32 %v200, %v455
      %v507 = vadd.f32 %v200, %v458
      %v508 = vadd.f32 %v200, %v460
      %v509 = vadd.f32 %v200, %v463
      %v510 = vadd.f32 %v200, %v465
      %v511 = vadd.f32 %v200, %v468
      %v512 = vadd.f32 %v200, %v470
      %v513 = vadd.f32 %v200, %v473
      %v514 = vadd.f32 %v200, %v475
      %v515 = vadd.f32 %v200, %v478
      %v516 = vadd.f32 %v200, %v480
      %v517 = vadd.f32 %v200, %v483
      %v518 = vadd.f32 %v200, %v485
      %v519 = vld [vmem:[%s204] sm:$0xf]
      %v520 = vld [vmem:[%s204 + $0x4] sm:$0xf]
      %v521 = vld [vmem:[%s204 + $0x8] sm:$0x1]
      %v522 = vld [vmem:[%s204 + $0xc] sm:$0xf]
      %v523 = vld [vmem:[%s204 + $0x10] sm:$0xf]
      %v524 = vld [vmem:[%s204 + $0x14] sm:$0x1]
      %v525 = vld [vmem:[%s204 + $0x18] sm:$0xf]
      %v526 = vld [vmem:[%s204 + $0x1c] sm:$0xf]
      %v527 = vld [vmem:[%s204 + $0x20] sm:$0x1]
      %v528 = vld [vmem:[%s204 + $0x24] sm:$0xf]
      %v529 = vld [vmem:[%s204 + $0x28] sm:$0xf]
      %v530 = vld [vmem:[%s204 + $0x2c] sm:$0x1]
      %v531 = vld [vmem:[%s204 + $0x30] sm:$0xf]
      %v532 = vld [vmem:[%s204 + $0x34] sm:$0xf]
      %v533 = vld [vmem:[%s204 + $0x38] sm:$0x1]
      %v534 = vld [vmem:[%s204 + $0x3c] sm:$0xf]
      %v535 = vld [vmem:[%s204 + $0x40] sm:$0xf]
      %v536 = vld [vmem:[%s204 + $0x44] sm:$0x1]
      %v537 = vld [vmem:[%s204 + $0x48] sm:$0xf]
      %v538 = vld [vmem:[%s204 + $0x4c] sm:$0xf]
      %v539 = vld [vmem:[%s204 + $0x50] sm:$0x1]
      %v540 = vld [vmem:[%s204 + $0x54] sm:$0xf]
      %v541 = vld [vmem:[%s204 + $0x58] sm:$0xf]
      %v542 = vld [vmem:[%s204 + $0x5c] sm:$0x1]
      %v543 = vld [vmem:[%s204 + $0x60] sm:$0xf]
      %v544 = vld [vmem:[%s204 + $0x64] sm:$0xf]
      %v545 = vld [vmem:[%s204 + $0x68] sm:$0x1]
      %v546 = vld [vmem:[%s204 + $0x6c] sm:$0xf]
      %v547 = vld [vmem:[%s204 + $0x70] sm:$0xf]
      %v548 = vld [vmem:[%s204 + $0x74] sm:$0x1]
      %v549 = vld [vmem:[%s204 + $0x78] sm:$0xf]
      %v550 = vld [vmem:[%s204 + $0x7c] sm:$0xf]
      %v551 = vld [vmem:[%s204 + $0x80] sm:$0x1]
      %v552 = vld [vmem:[%s204 + $0x84] sm:$0xf]
      %v553 = vld [vmem:[%s204 + $0x88] sm:$0xf]
      %v554 = vld [vmem:[%s204 + $0x8c] sm:$0x1]
      %v555 = vld [vmem:[%s204 + $0x90] sm:$0xf]
      %v556 = vld [vmem:[%s204 + $0x94] sm:$0xf]
      %v557 = vld [vmem:[%s204 + $0x98] sm:$0x1]
      %v558 = vld [vmem:[%s204 + $0x9c] sm:$0xf]
      %v559 = vld [vmem:[%s204 + $0xa0] sm:$0xf]
      %v560 = vld [vmem:[%s204 + $0xa4] sm:$0x1]
      %v561 = vld [vmem:[%s204 + $0xa8] sm:$0xf]
      %v562 = vld [vmem:[%s204 + $0xac] sm:$0xf]
      %v563 = vld [vmem:[%s204 + $0xb0] sm:$0x1]
      %v564 = vld [vmem:[%s204 + $0xb4] sm:$0xf]
      %v565 = vld [vmem:[%s204 + $0xb8] sm:$0xf]
      %v566 = vld [vmem:[%s204 + $0xbc] sm:$0x1]
      %vm567 = vsmask.f32 3328
      %vm568 = vsmask.f32 7440
      %vm569 = vmor %vm567, %vm568
      %v571 = vshrl.u32 %v519, 16
      %v573 = vrot.slane %v571, 4
      %v574 = vshll.u32 %v519, 16
      %v576 = vrot.slane %v574, 5
      %v577 = vor.u32 %v573, %v576
      %v578 = vrot.slane %v577, 4
      %v580 = vshll.u32 %v520, 16
      %v582 = vrot.slane %v580, 5
      %v583 = vsel %vm569, %v578, %v582
      %v584 = vshrl.u32 %v520, 16
      %v586 = vrot.slane %v584, 4
      %v587 = vor.u32 %v586, %v582
      %v588 = vrot.slane %v587, 4
      %v590 = vshll.u32 %v521, 16
      %v592 = vrot.slane %v590, 5
      %v593 = vsel %vm569, %v588, %v592
      %v595 = vshrl.u32 %v522, 16
      %v597 = vrot.slane %v595, 4
      %v598 = vshll.u32 %v522, 16
      %v600 = vrot.slane %v598, 5
      %v601 = vor.u32 %v597, %v600
      %v602 = vrot.slane %v601, 4
      %v604 = vshll.u32 %v523, 16
      %v606 = vrot.slane %v604, 5
      %v607 = vsel %vm569, %v602, %v606
      %v608 = vshrl.u32 %v523, 16
      %v610 = vrot.slane %v608, 4
      %v611 = vor.u32 %v610, %v606
      %v612 = vrot.slane %v611, 4
      %v614 = vshll.u32 %v524, 16
      %v616 = vrot.slane %v614, 5
      %v617 = vsel %vm569, %v612, %v616
      %v619 = vshrl.u32 %v525, 16
      %v621 = vrot.slane %v619, 4
      %v622 = vshll.u32 %v525, 16
      %v624 = vrot.slane %v622, 5
      %v625 = vor.u32 %v621, %v624
      %v626 = vrot.slane %v625, 4
      %v628 = vshll.u32 %v526, 16
      %v630 = vrot.slane %v628, 5
      %v631 = vsel %vm569, %v626, %v630
      %v632 = vshrl.u32 %v526, 16
      %v634 = vrot.slane %v632, 4
      %v635 = vor.u32 %v634, %v630
      %v636 = vrot.slane %v635, 4
      %v638 = vshll.u32 %v527, 16
      %v640 = vrot.slane %v638, 5
      %v641 = vsel %vm569, %v636, %v640
      %v643 = vshrl.u32 %v528, 16
      %v645 = vrot.slane %v643, 4
      %v646 = vshll.u32 %v528, 16
      %v648 = vrot.slane %v646, 5
      %v649 = vor.u32 %v645, %v648
      %v650 = vrot.slane %v649, 4
      %v652 = vshll.u32 %v529, 16
      %v654 = vrot.slane %v652, 5
      %v655 = vsel %vm569, %v650, %v654
      %v656 = vshrl.u32 %v529, 16
      %v658 = vrot.slane %v656, 4
      %v659 = vor.u32 %v658, %v654
      %v660 = vrot.slane %v659, 4
      %v662 = vshll.u32 %v530, 16
      %v664 = vrot.slane %v662, 5
      %v665 = vsel %vm569, %v660, %v664
      %v667 = vshrl.u32 %v531, 16
      %v669 = vrot.slane %v667, 4
      %v670 = vshll.u32 %v531, 16
      %v672 = vrot.slane %v670, 5
      %v673 = vor.u32 %v669, %v672
      %v674 = vrot.slane %v673, 4
      %v676 = vshll.u32 %v532, 16
      %v678 = vrot.slane %v676, 5
      %v679 = vsel %vm569, %v674, %v678
      %v680 = vshrl.u32 %v532, 16
      %v682 = vrot.slane %v680, 4
      %v683 = vor.u32 %v682, %v678
      %v684 = vrot.slane %v683, 4
      %v686 = vshll.u32 %v533, 16
      %v688 = vrot.slane %v686, 5
      %v689 = vsel %vm569, %v684, %v688
      %v691 = vshrl.u32 %v534, 16
      %v693 = vrot.slane %v691, 4
      %v694 = vshll.u32 %v534, 16
      %v696 = vrot.slane %v694, 5
      %v697 = vor.u32 %v693, %v696
      %v698 = vrot.slane %v697, 4
      %v700 = vshll.u32 %v535, 16
      %v702 = vrot.slane %v700, 5
      %v703 = vsel %vm569, %v698, %v702
      %v704 = vshrl.u32 %v535, 16
      %v706 = vrot.slane %v704, 4
      %v707 = vor.u32 %v706, %v702
      %v708 = vrot.slane %v707, 4
      %v710 = vshll.u32 %v536, 16
      %v712 = vrot.slane %v710, 5
      %v713 = vsel %vm569, %v708, %v712
      %v715 = vshrl.u32 %v537, 16
      %v717 = vrot.slane %v715, 4
      %v718 = vshll.u32 %v537, 16
      %v720 = vrot.slane %v718, 5
      %v721 = vor.u32 %v717, %v720
      %v722 = vrot.slane %v721, 4
      %v724 = vshll.u32 %v538, 16
      %v726 = vrot.slane %v724, 5
      %v727 = vsel %vm569, %v722, %v726
      %v728 = vshrl.u32 %v538, 16
      %v730 = vrot.slane %v728, 4
      %v731 = vor.u32 %v730, %v726
      %v732 = vrot.slane %v731, 4
      %v734 = vshll.u32 %v539, 16
      %v736 = vrot.slane %v734, 5
      %v737 = vsel %vm569, %v732, %v736
      %v739 = vshrl.u32 %v540, 16
      %v741 = vrot.slane %v739, 4
      %v742 = vshll.u32 %v540, 16
      %v744 = vrot.slane %v742, 5
      %v745 = vor.u32 %v741, %v744
      %v746 = vrot.slane %v745, 4
      %v748 = vshll.u32 %v541, 16
      %v750 = vrot.slane %v748, 5
      %v751 = vsel %vm569, %v746, %v750
      %v752 = vshrl.u32 %v541, 16
      %v754 = vrot.slane %v752, 4
      %v755 = vor.u32 %v754, %v750
      %v756 = vrot.slane %v755, 4
      %v758 = vshll.u32 %v542, 16
      %v760 = vrot.slane %v758, 5
      %v761 = vsel %vm569, %v756, %v760
      %v763 = vshrl.u32 %v543, 16
      %v765 = vrot.slane %v763, 4
      %v766 = vshll.u32 %v543, 16
      %v768 = vrot.slane %v766, 5
      %v769 = vor.u32 %v765, %v768
      %v770 = vrot.slane %v769, 4
      %v772 = vshll.u32 %v544, 16
      %v774 = vrot.slane %v772, 5
      %v775 = vsel %vm569, %v770, %v774
      %v776 = vshrl.u32 %v544, 16
      %v778 = vrot.slane %v776, 4
      %v779 = vor.u32 %v778, %v774
      %v780 = vrot.slane %v779, 4
      %v782 = vshll.u32 %v545, 16
      %v784 = vrot.slane %v782, 5
      %v785 = vsel %vm569, %v780, %v784
      %v787 = vshrl.u32 %v546, 16
      %v789 = vrot.slane %v787, 4
      %v790 = vshll.u32 %v546, 16
      %v792 = vrot.slane %v790, 5
      %v793 = vor.u32 %v789, %v792
      %v794 = vrot.slane %v793, 4
      %v796 = vshll.u32 %v547, 16
      %v798 = vrot.slane %v796, 5
      %v799 = vsel %vm569, %v794, %v798
      %v800 = vshrl.u32 %v547, 16
      %v802 = vrot.slane %v800, 4
      %v803 = vor.u32 %v802, %v798
      %v804 = vrot.slane %v803, 4
      %v806 = vshll.u32 %v548, 16
      %v808 = vrot.slane %v806, 5
      %v809 = vsel %vm569, %v804, %v808
      %v811 = vshrl.u32 %v549, 16
      %v813 = vrot.slane %v811, 4
      %v814 = vshll.u32 %v549, 16
      %v816 = vrot.slane %v814, 5
      %v817 = vor.u32 %v813, %v816
      %v818 = vrot.slane %v817, 4
      %v820 = vshll.u32 %v550, 16
      %v822 = vrot.slane %v820, 5
      %v823 = vsel %vm569, %v818, %v822
      %v824 = vshrl.u32 %v550, 16
      %v826 = vrot.slane %v824, 4
      %v827 = vor.u32 %v826, %v822
      %v828 = vrot.slane %v827, 4
      %v830 = vshll.u32 %v551, 16
      %v832 = vrot.slane %v830, 5
      %v833 = vsel %vm569, %v828, %v832
      %v835 = vshrl.u32 %v552, 16
      %v837 = vrot.slane %v835, 4
      %v838 = vshll.u32 %v552, 16
      %v840 = vrot.slane %v838, 5
      %v841 = vor.u32 %v837, %v840
      %v842 = vrot.slane %v841, 4
      %v844 = vshll.u32 %v553, 16
      %v846 = vrot.slane %v844, 5
      %v847 = vsel %vm569, %v842, %v846
      %v848 = vshrl.u32 %v553, 16
      %v850 = vrot.slane %v848, 4
      %v851 = vor.u32 %v850, %v846
      %v852 = vrot.slane %v851, 4
      %v854 = vshll.u32 %v554, 16
      %v856 = vrot.slane %v854, 5
      %v857 = vsel %vm569, %v852, %v856
      %v859 = vshrl.u32 %v555, 16
      %v861 = vrot.slane %v859, 4
      %v862 = vshll.u32 %v555, 16
      %v864 = vrot.slane %v862, 5
      %v865 = vor.u32 %v861, %v864
      %v866 = vrot.slane %v865, 4
      %v868 = vshll.u32 %v556, 16
      %v870 = vrot.slane %v868, 5
      %v871 = vsel %vm569, %v866, %v870
      %v872 = vshrl.u32 %v556, 16
      %v874 = vrot.slane %v872, 4
      %v875 = vor.u32 %v874, %v870
      %v876 = vrot.slane %v875, 4
      %v878 = vshll.u32 %v557, 16
      %v880 = vrot.slane %v878, 5
      %v881 = vsel %vm569, %v876, %v880
      %v883 = vshrl.u32 %v558, 16
      %v885 = vrot.slane %v883, 4
      %v886 = vshll.u32 %v558, 16
      %v888 = vrot.slane %v886, 5
      %v889 = vor.u32 %v885, %v888
      %v890 = vrot.slane %v889, 4
      %v892 = vshll.u32 %v559, 16
      %v894 = vrot.slane %v892, 5
      %v895 = vsel %vm569, %v890, %v894
      %v896 = vshrl.u32 %v559, 16
      %v898 = vrot.slane %v896, 4
      %v899 = vor.u32 %v898, %v894
      %v900 = vrot.slane %v899, 4
      %v902 = vshll.u32 %v560, 16
      %v904 = vrot.slane %v902, 5
      %v905 = vsel %vm569, %v900, %v904
      %v907 = vshrl.u32 %v561, 16
      %v909 = vrot.slane %v907, 4
      %v910 = vshll.u32 %v561, 16
      %v912 = vrot.slane %v910, 5
      %v913 = vor.u32 %v909, %v912
      %v914 = vrot.slane %v913, 4
      %v916 = vshll.u32 %v562, 16
      %v918 = vrot.slane %v916, 5
      %v919 = vsel %vm569, %v914, %v918
      %v920 = vshrl.u32 %v562, 16
      %v922 = vrot.slane %v920, 4
      %v923 = vor.u32 %v922, %v918
      %v924 = vrot.slane %v923, 4
      %v926 = vshll.u32 %v563, 16
      %v928 = vrot.slane %v926, 5
      %v929 = vsel %vm569, %v924, %v928
      %v931 = vshrl.u32 %v564, 16
      %v933 = vrot.slane %v931, 4
      %v934 = vshll.u32 %v564, 16
      %v936 = vrot.slane %v934, 5
      %v937 = vor.u32 %v933, %v936
      %v938 = vrot.slane %v937, 4
      %v940 = vshll.u32 %v565, 16
      %v942 = vrot.slane %v940, 5
      %v943 = vsel %vm569, %v938, %v942
      %v944 = vshrl.u32 %v565, 16
      %v946 = vrot.slane %v944, 4
      %v947 = vor.u32 %v946, %v942
      %v948 = vrot.slane %v947, 4
      %v950 = vshll.u32 %v566, 16
      %v952 = vrot.slane %v950, 5
      %v953 = vsel %vm569, %v948, %v952
      %s954 = scalar_lea.vmem %s1, 32
      %v955 = vld [vmem:[%s954] sm:$0xf]
      %v956 = vld [vmem:[%s954 + $0x4] sm:$0xf]
      %v957 = vld [vmem:[%s954 + $0x8] sm:$0xf]
      %v958 = vld [vmem:[%s954 + $0xc] sm:$0xf]
      %v959 = vld [vmem:[%s954 + $0x10] sm:$0xf]
      %v960 = vld [vmem:[%s954 + $0x14] sm:$0xf]
      %v961 = vld [vmem:[%s954 + $0x18] sm:$0xf]
      %v962 = vld [vmem:[%s954 + $0x1c] sm:$0xf]
      %v963 = vunpack.c.l.b16 %v583
      %v964 = vunpack.c.l.b16 %v593
      %v965 = vunpack.c.l.b16 %v607
      %v966 = vunpack.c.l.b16 %v617
      %v967 = vunpack.c.l.b16 %v631
      %v968 = vunpack.c.l.b16 %v641
      %v969 = vunpack.c.l.b16 %v655
      %v970 = vunpack.c.l.b16 %v665
      %v971 = vunpack.c.l.b16 %v679
      %v972 = vunpack.c.l.b16 %v689
      %v973 = vunpack.c.l.b16 %v703
      %v974 = vunpack.c.l.b16 %v713
      %v975 = vunpack.c.l.b16 %v727
      %v976 = vunpack.c.l.b16 %v737
      %v977 = vunpack.c.l.b16 %v751
      %v978 = vunpack.c.l.b16 %v761
      %v979 = vunpack.c.l.b16 %v775
      %v980 = vunpack.c.l.b16 %v785
      %v981 = vunpack.c.l.b16 %v799
      %v982 = vunpack.c.l.b16 %v809
      %v983 = vunpack.c.l.b16 %v823
      %v984 = vunpack.c.l.b16 %v833
      %v985 = vunpack.c.l.b16 %v847
      %v986 = vunpack.c.l.b16 %v857
      %v987 = vunpack.c.l.b16 %v871
      %v988 = vunpack.c.l.b16 %v881
      %v989 = vunpack.c.l.b16 %v895
      %v990 = vunpack.c.l.b16 %v905
      %v991 = vunpack.c.l.b16 %v919
      %v992 = vunpack.c.l.b16 %v929
      %v993 = vunpack.c.l.b16 %v943
      %v994 = vunpack.c.l.b16 %v953
      %v995 = vpack.c.b16 %v964, %v963
      %v996 = vpack.c.b16 %v966, %v965
      %v997 = vpack.c.b16 %v968, %v967
      %v998 = vpack.c.b16 %v970, %v969
      %v999 = vpack.c.b16 %v972, %v971
      %v1000 = vpack.c.b16 %v974, %v973
      %v1001 = vpack.c.b16 %v976, %v975
      %v1002 = vpack.c.b16 %v978, %v977
      %v1003 = vpack.c.b16 %v980, %v979
      %v1004 = vpack.c.b16 %v982, %v981
      %v1005 = vpack.c.b16 %v984, %v983
      %v1006 = vpack.c.b16 %v986, %v985
      %v1007 = vpack.c.b16 %v988, %v987
      %v1008 = vpack.c.b16 %v990, %v989
      %v1009 = vpack.c.b16 %v992, %v991
      %v1010 = vpack.c.b16 %v994, %v993
      %v1019 = vunpack.c.l.b16 %v955
      %v1020 = vunpack.c.l.b16 %v956
      %v1021 = vunpack.c.l.b16 %v957
      %v1022 = vunpack.c.l.b16 %v958
      %v1023 = vunpack.c.l.b16 %v959
      %v1024 = vunpack.c.l.b16 %v960
      %v1025 = vunpack.c.l.b16 %v961
      %v1026 = vunpack.c.l.b16 %v962
      %v1027 = vpack.c.b16 %v1020, %v1019
      %v1028 = vpack.c.b16 %v1022, %v1021
      %v1029 = vpack.c.b16 %v1024, %v1023
      %v1030 = vpack.c.b16 %v1026, %v1025
      %v1036 = vsel %vm349, %v995, 0
      %v1039 = vsel %vm349, %v996, 0
      %v1042 = vsel %vm349, %v997, 0
      %v1045 = vsel %vm349, %v998, 0
      %v1048 = vsel %vm349, %v999, 0
      %v1051 = vsel %vm349, %v1000, 0
      %v1054 = vsel %vm349, %v1001, 0
      %v1057 = vsel %vm349, %v1002, 0
      %v1060 = vsel %vm349, %v1003, 0
      %v1063 = vsel %vm349, %v1004, 0
      %v1066 = vsel %vm349, %v1005, 0
      %v1069 = vsel %vm349, %v1006, 0
      %v1072 = vsel %vm349, %v1007, 0
      %v1075 = vsel %vm349, %v1008, 0
      %v1078 = vsel %vm349, %v1009, 0
      %v1081 = vsel %vm349, %v1010, 0
      %1083 = vmatpush.bf16.msra.mxu0 0
      %1084 = vmatpush.bf16.msra.mxu0 0
      %1085 = vmatpush.bf16.msra.mxu0 0
      %1086 = vmatpush.bf16.msra.mxu0 0
      %1087 = vmatpush.bf16.msra.mxu0 %v1030
      %1088 = vmatpush.bf16.msra.mxu0 %v1029
      %1089 = vmatpush.bf16.msra.mxu0 %v1028
      %1090 = vmatpush.bf16.msra.mxu0 %v1027
      %1091 = vmatmul.bf16.gmra.mxu0 %v1036
      %v1092 = vpop.f32.mrf.mxu0
      %v1093 = vadd.f32 0.0, %v1092
      %v1094 = vpop.f32.mrf.mxu0
      %v1095 = vadd.f32 0.0, %v1094
      %1096 = vmatmul.bf16.gmra.mxu0 %v1039
      %v1097 = vpop.f32.mrf.mxu0
      %v1098 = vadd.f32 0.0, %v1097
      %v1099 = vpop.f32.mrf.mxu0
      %v1100 = vadd.f32 0.0, %v1099
      %1101 = vmatmul.bf16.gmra.mxu0 %v1042
      %v1102 = vpop.f32.mrf.mxu0
      %v1103 = vadd.f32 0.0, %v1102
      %v1104 = vpop.f32.mrf.mxu0
      %v1105 = vadd.f32 0.0, %v1104
      %1106 = vmatmul.bf16.gmra.mxu0 %v1045
      %v1107 = vpop.f32.mrf.mxu0
      %v1108 = vadd.f32 0.0, %v1107
      %v1109 = vpop.f32.mrf.mxu0
      %v1110 = vadd.f32 0.0, %v1109
      %1111 = vmatmul.bf16.gmra.mxu0 %v1048
      %v1112 = vpop.f32.mrf.mxu0
      %v1113 = vadd.f32 0.0, %v1112
      %v1114 = vpop.f32.mrf.mxu0
      %v1115 = vadd.f32 0.0, %v1114
      %1116 = vmatmul.bf16.gmra.mxu0 %v1051
      %v1117 = vpop.f32.mrf.mxu0
      %v1118 = vadd.f32 0.0, %v1117
      %v1119 = vpop.f32.mrf.mxu0
      %v1120 = vadd.f32 0.0, %v1119
      %1121 = vmatmul.bf16.gmra.mxu0 %v1054
      %v1122 = vpop.f32.mrf.mxu0
      %v1123 = vadd.f32 0.0, %v1122
      %v1124 = vpop.f32.mrf.mxu0
      %v1125 = vadd.f32 0.0, %v1124
      %1126 = vmatmul.bf16.gmra.mxu0 %v1057
      %v1127 = vpop.f32.mrf.mxu0
      %v1128 = vadd.f32 0.0, %v1127
      %v1129 = vpop.f32.mrf.mxu0
      %v1130 = vadd.f32 0.0, %v1129
      %1131 = vmatmul.bf16.gmra.mxu0 %v1060
      %v1132 = vpop.f32.mrf.mxu0
      %v1133 = vadd.f32 0.0, %v1132
      %v1134 = vpop.f32.mrf.mxu0
      %v1135 = vadd.f32 0.0, %v1134
      %1136 = vmatmul.bf16.gmra.mxu0 %v1063
      %v1137 = vpop.f32.mrf.mxu0
      %v1138 = vadd.f32 0.0, %v1137
      %v1139 = vpop.f32.mrf.mxu0
      %v1140 = vadd.f32 0.0, %v1139
      %1141 = vmatmul.bf16.gmra.mxu0 %v1066
      %v1142 = vpop.f32.mrf.mxu0
      %v1143 = vadd.f32 0.0, %v1142
      %v1144 = vpop.f32.mrf.mxu0
      %v1145 = vadd.f32 0.0, %v1144
      %1146 = vmatmul.bf16.gmra.mxu0 %v1069
      %v1147 = vpop.f32.mrf.mxu0
      %v1148 = vadd.f32 0.0, %v1147
      %v1149 = vpop.f32.mrf.mxu0
      %v1150 = vadd.f32 0.0, %v1149
      %1151 = vmatmul.bf16.gmra.mxu0 %v1072
      %v1152 = vpop.f32.mrf.mxu0
      %v1153 = vadd.f32 0.0, %v1152
      %v1154 = vpop.f32.mrf.mxu0
      %v1155 = vadd.f32 0.0, %v1154
      %1156 = vmatmul.bf16.gmra.mxu0 %v1075
      %v1157 = vpop.f32.mrf.mxu0
      %v1158 = vadd.f32 0.0, %v1157
      %v1159 = vpop.f32.mrf.mxu0
      %v1160 = vadd.f32 0.0, %v1159
      %1161 = vmatmul.bf16.gmra.mxu0 %v1078
      %v1162 = vpop.f32.mrf.mxu0
      %v1163 = vadd.f32 0.0, %v1162
      %v1164 = vpop.f32.mrf.mxu0
      %v1165 = vadd.f32 0.0, %v1164
      %1166 = vmatmul.bf16.gmra.mxu0 %v1081
      %v1167 = vpop.f32.mrf.mxu0
      %v1168 = vadd.f32 0.0, %v1167
      %v1169 = vpop.f32.mrf.mxu0
      %v1170 = vadd.f32 0.0, %v1169
      %1171 = vdwg.mxu0
      %v1172 = vadd.f32 %v487, %v1093
      %v1173 = vadd.f32 %v488, %v1095
      %v1174 = vadd.f32 %v489, %v1098
      %v1175 = vadd.f32 %v490, %v1100
      %v1176 = vadd.f32 %v491, %v1103
      %v1177 = vadd.f32 %v492, %v1105
      %v1178 = vadd.f32 %v493, %v1108
      %v1179 = vadd.f32 %v494, %v1110
      %v1180 = vadd.f32 %v495, %v1113
      %v1181 = vadd.f32 %v496, %v1115
      %v1182 = vadd.f32 %v497, %v1118
      %v1183 = vadd.f32 %v498, %v1120
      %v1184 = vadd.f32 %v499, %v1123
      %v1185 = vadd.f32 %v500, %v1125
      %v1186 = vadd.f32 %v501, %v1128
      %v1187 = vadd.f32 %v502, %v1130
      %v1188 = vadd.f32 %v503, %v1133
      %v1189 = vadd.f32 %v504, %v1135
      %v1190 = vadd.f32 %v505, %v1138
      %v1191 = vadd.f32 %v506, %v1140
      %v1192 = vadd.f32 %v507, %v1143
      %v1193 = vadd.f32 %v508, %v1145
      %v1194 = vadd.f32 %v509, %v1148
      %v1195 = vadd.f32 %v510, %v1150
      %v1196 = vadd.f32 %v511, %v1153
      %v1197 = vadd.f32 %v512, %v1155
      %v1198 = vadd.f32 %v513, %v1158
      %v1199 = vadd.f32 %v514, %v1160
      %v1200 = vadd.f32 %v515, %v1163
      %v1201 = vadd.f32 %v516, %v1165
      %v1202 = vadd.f32 %v517, %v1168
      %v1203 = vadd.f32 %v518, %v1170
      %v1204 = vld [vmem:[%s204] sm:$0xe]
      %v1205 = vld [vmem:[%s204 + $0xc] sm:$0xe]
      %v1206 = vld [vmem:[%s204 + $0x18] sm:$0xe]
      %v1207 = vld [vmem:[%s204 + $0x24] sm:$0xe]
      %v1208 = vld [vmem:[%s204 + $0x30] sm:$0xe]
      %v1209 = vld [vmem:[%s204 + $0x3c] sm:$0xe]
      %v1210 = vld [vmem:[%s204 + $0x48] sm:$0xe]
      %v1211 = vld [vmem:[%s204 + $0x54] sm:$0xe]
      %v1212 = vld [vmem:[%s204 + $0x60] sm:$0xe]
      %v1213 = vld [vmem:[%s204 + $0x6c] sm:$0xe]
      %v1214 = vld [vmem:[%s204 + $0x78] sm:$0xe]
      %v1215 = vld [vmem:[%s204 + $0x84] sm:$0xe]
      %v1216 = vld [vmem:[%s204 + $0x90] sm:$0xe]
      %v1217 = vld [vmem:[%s204 + $0x9c] sm:$0xe]
      %v1218 = vld [vmem:[%s204 + $0xa8] sm:$0xe]
      %v1219 = vld [vmem:[%s204 + $0xb4] sm:$0xe]
      %vm1268 = vcmask 1042432
      %vm1269 = vcmask 1046532
      %vm1270 = vmor %vm1268, %vm1269
      %v1271 = vrot.slane %v1204, 5
      %v1272 = vrot.slane %v1271, 4
      %v1273 = vrot.slane %v520, 5
      %v1274 = vsel %vm1270, %v1272, %v1273
      %v1275 = vrot.slane %v1273, 4
      %v1276 = vrot.slane %v521, 5
      %v1277 = vsel %vm1270, %v1275, %v1276
      %v1278 = vrot.slane %v1205, 5
      %v1279 = vrot.slane %v1278, 4
      %v1280 = vrot.slane %v523, 5
      %v1281 = vsel %vm1270, %v1279, %v1280
      %v1282 = vrot.slane %v1280, 4
      %v1283 = vrot.slane %v524, 5
      %v1284 = vsel %vm1270, %v1282, %v1283
      %v1285 = vrot.slane %v1206, 5
      %v1286 = vrot.slane %v1285, 4
      %v1287 = vrot.slane %v526, 5
      %v1288 = vsel %vm1270, %v1286, %v1287
      %v1289 = vrot.slane %v1287, 4
      %v1290 = vrot.slane %v527, 5
      %v1291 = vsel %vm1270, %v1289, %v1290
      %v1292 = vrot.slane %v1207, 5
      %v1293 = vrot.slane %v1292, 4
      %v1294 = vrot.slane %v529, 5
      %v1295 = vsel %vm1270, %v1293, %v1294
      %v1296 = vrot.slane %v1294, 4
      %v1297 = vrot.slane %v530, 5
      %v1298 = vsel %vm1270, %v1296, %v1297
      %v1299 = vrot.slane %v1208, 5
      %v1300 = vrot.slane %v1299, 4
      %v1301 = vrot.slane %v532, 5
      %v1302 = vsel %vm1270, %v1300, %v1301
      %v1303 = vrot.slane %v1301, 4
      %v1304 = vrot.slane %v533, 5
      %v1305 = vsel %vm1270, %v1303, %v1304
      %v1306 = vrot.slane %v1209, 5
      %v1307 = vrot.slane %v1306, 4
      %v1308 = vrot.slane %v535, 5
      %v1309 = vsel %vm1270, %v1307, %v1308
      %v1310 = vrot.slane %v1308, 4
      %v1311 = vrot.slane %v536, 5
      %v1312 = vsel %vm1270, %v1310, %v1311
      %v1313 = vrot.slane %v1210, 5
      %v1314 = vrot.slane %v1313, 4
      %v1315 = vrot.slane %v538, 5
      %v1316 = vsel %vm1270, %v1314, %v1315
      %v1317 = vrot.slane %v1315, 4
      %v1318 = vrot.slane %v539, 5
      %v1319 = vsel %vm1270, %v1317, %v1318
      %v1320 = vrot.slane %v1211, 5
      %v1321 = vrot.slane %v1320, 4
      %v1322 = vrot.slane %v541, 5
      %v1323 = vsel %vm1270, %v1321, %v1322
      %v1324 = vrot.slane %v1322, 4
      %v1325 = vrot.slane %v542, 5
      %v1326 = vsel %vm1270, %v1324, %v1325
      %v1327 = vrot.slane %v1212, 5
      %v1328 = vrot.slane %v1327, 4
      %v1329 = vrot.slane %v544, 5
      %v1330 = vsel %vm1270, %v1328, %v1329
      %v1331 = vrot.slane %v1329, 4
      %v1332 = vrot.slane %v545, 5
      %v1333 = vsel %vm1270, %v1331, %v1332
      %v1334 = vrot.slane %v1213, 5
      %v1335 = vrot.slane %v1334, 4
      %v1336 = vrot.slane %v547, 5
      %v1337 = vsel %vm1270, %v1335, %v1336
      %v1338 = vrot.slane %v1336, 4
      %v1339 = vrot.slane %v548, 5
      %v1340 = vsel %vm1270, %v1338, %v1339
      %v1341 = vrot.slane %v1214, 5
      %v1342 = vrot.slane %v1341, 4
      %v1343 = vrot.slane %v550, 5
      %v1344 = vsel %vm1270, %v1342, %v1343
      %v1345 = vrot.slane %v1343, 4
      %v1346 = vrot.slane %v551, 5
      %v1347 = vsel %vm1270, %v1345, %v1346
      %v1348 = vrot.slane %v1215, 5
      %v1349 = vrot.slane %v1348, 4
      %v1350 = vrot.slane %v553, 5
      %v1351 = vsel %vm1270, %v1349, %v1350
      %v1352 = vrot.slane %v1350, 4
      %v1353 = vrot.slane %v554, 5
      %v1354 = vsel %vm1270, %v1352, %v1353
      %v1355 = vrot.slane %v1216, 5
      %v1356 = vrot.slane %v1355, 4
      %v1357 = vrot.slane %v556, 5
      %v1358 = vsel %vm1270, %v1356, %v1357
      %v1359 = vrot.slane %v1357, 4
      %v1360 = vrot.slane %v557, 5
      %v1361 = vsel %vm1270, %v1359, %v1360
      %v1362 = vrot.slane %v1217, 5
      %v1363 = vrot.slane %v1362, 4
      %v1364 = vrot.slane %v559, 5
      %v1365 = vsel %vm1270, %v1363, %v1364
      %v1366 = vrot.slane %v1364, 4
      %v1367 = vrot.slane %v560, 5
      %v1368 = vsel %vm1270, %v1366, %v1367
      %v1369 = vrot.slane %v1218, 5
      %v1370 = vrot.slane %v1369, 4
      %v1371 = vrot.slane %v562, 5
      %v1372 = vsel %vm1270, %v1370, %v1371
      %v1373 = vrot.slane %v1371, 4
      %v1374 = vrot.slane %v563, 5
      %v1375 = vsel %vm1270, %v1373, %v1374
      %v1376 = vrot.slane %v1219, 5
      %v1377 = vrot.slane %v1376, 4
      %v1378 = vrot.slane %v565, 5
      %v1379 = vsel %vm1270, %v1377, %v1378
      %v1380 = vrot.slane %v1378, 4
      %v1381 = vrot.slane %v566, 5
      %v1382 = vsel %vm1270, %v1380, %v1381
      %s1383 = scalar_lea.vmem %s1, 64
      %v1384 = vld [vmem:[%s1383] sm:$0xf]
      %v1385 = vld [vmem:[%s1383 + $0x4] sm:$0xf]
      %v1386 = vld [vmem:[%s1383 + $0x8] sm:$0xf]
      %v1387 = vld [vmem:[%s1383 + $0xc] sm:$0xf]
      %v1388 = vld [vmem:[%s1383 + $0x10] sm:$0xf]
      %v1389 = vld [vmem:[%s1383 + $0x14] sm:$0xf]
      %v1390 = vld [vmem:[%s1383 + $0x18] sm:$0xf]
      %v1391 = vld [vmem:[%s1383 + $0x1c] sm:$0xf]
      %v1392 = vunpack.c.l.b16 %v1274
      %v1393 = vunpack.c.l.b16 %v1277
      %v1394 = vunpack.c.l.b16 %v1281
      %v1395 = vunpack.c.l.b16 %v1284
      %v1396 = vunpack.c.l.b16 %v1288
      %v1397 = vunpack.c.l.b16 %v1291
      %v1398 = vunpack.c.l.b16 %v1295
      %v1399 = vunpack.c.l.b16 %v1298
      %v1400 = vunpack.c.l.b16 %v1302
      %v1401 = vunpack.c.l.b16 %v1305
      %v1402 = vunpack.c.l.b16 %v1309
      %v1403 = vunpack.c.l.b16 %v1312
      %v1404 = vunpack.c.l.b16 %v1316
      %v1405 = vunpack.c.l.b16 %v1319
      %v1406 = vunpack.c.l.b16 %v1323
      %v1407 = vunpack.c.l.b16 %v1326
      %v1408 = vunpack.c.l.b16 %v1330
      %v1409 = vunpack.c.l.b16 %v1333
      %v1410 = vunpack.c.l.b16 %v1337
      %v1411 = vunpack.c.l.b16 %v1340
      %v1412 = vunpack.c.l.b16 %v1344
      %v1413 = vunpack.c.l.b16 %v1347
      %v1414 = vunpack.c.l.b16 %v1351
      %v1415 = vunpack.c.l.b16 %v1354
      %v1416 = vunpack.c.l.b16 %v1358
      %v1417 = vunpack.c.l.b16 %v1361
      %v1418 = vunpack.c.l.b16 %v1365
      %v1419 = vunpack.c.l.b16 %v1368
      %v1420 = vunpack.c.l.b16 %v1372
      %v1421 = vunpack.c.l.b16 %v1375
      %v1422 = vunpack.c.l.b16 %v1379
      %v1423 = vunpack.c.l.b16 %v1382
      %v1424 = vpack.c.b16 %v1393, %v1392
      %v1425 = vpack.c.b16 %v1395, %v1394
      %v1426 = vpack.c.b16 %v1397, %v1396
      %v1427 = vpack.c.b16 %v1399, %v1398
      %v1428 = vpack.c.b16 %v1401, %v1400
      %v1429 = vpack.c.b16 %v1403, %v1402
      %v1430 = vpack.c.b16 %v1405, %v1404
      %v1431 = vpack.c.b16 %v1407, %v1406
      %v1432 = vpack.c.b16 %v1409, %v1408
      %v1433 = vpack.c.b16 %v1411, %v1410
      %v1434 = vpack.c.b16 %v1413, %v1412
      %v1435 = vpack.c.b16 %v1415, %v1414
      %v1436 = vpack.c.b16 %v1417, %v1416
      %v1437 = vpack.c.b16 %v1419, %v1418
      %v1438 = vpack.c.b16 %v1421, %v1420
      %v1439 = vpack.c.b16 %v1423, %v1422
      %v1448 = vunpack.c.l.b16 %v1384
      %v1449 = vunpack.c.l.b16 %v1385
      %v1450 = vunpack.c.l.b16 %v1386
      %v1451 = vunpack.c.l.b16 %v1387
      %v1452 = vunpack.c.l.b16 %v1388
      %v1453 = vunpack.c.l.b16 %v1389
      %v1454 = vunpack.c.l.b16 %v1390
      %v1455 = vunpack.c.l.b16 %v1391
      %v1456 = vpack.c.b16 %v1449, %v1448
      %v1457 = vpack.c.b16 %v1451, %v1450
      %v1458 = vpack.c.b16 %v1453, %v1452
      %v1459 = vpack.c.b16 %v1455, %v1454
      %v1465 = vsel %vm349, %v1424, 0
      %v1468 = vsel %vm349, %v1425, 0
      %v1471 = vsel %vm349, %v1426, 0
      %v1474 = vsel %vm349, %v1427, 0
      %v1477 = vsel %vm349, %v1428, 0
      %v1480 = vsel %vm349, %v1429, 0
      %v1483 = vsel %vm349, %v1430, 0
      %v1486 = vsel %vm349, %v1431, 0
      %v1489 = vsel %vm349, %v1432, 0
      %v1492 = vsel %vm349, %v1433, 0
      %v1495 = vsel %vm349, %v1434, 0
      %v1498 = vsel %vm349, %v1435, 0
      %v1501 = vsel %vm349, %v1436, 0
      %v1504 = vsel %vm349, %v1437, 0
      %v1507 = vsel %vm349, %v1438, 0
      %v1510 = vsel %vm349, %v1439, 0
      %1512 = vmatpush.bf16.msra.mxu0 0
      %1513 = vmatpush.bf16.msra.mxu0 0
      %1514 = vmatpush.bf16.msra.mxu0 0
      %1515 = vmatpush.bf16.msra.mxu0 0
      %1516 = vmatpush.bf16.msra.mxu0 %v1459
      %1517 = vmatpush.bf16.msra.mxu0 %v1458
      %1518 = vmatpush.bf16.msra.mxu0 %v1457
      %1519 = vmatpush.bf16.msra.mxu0 %v1456
      %1520 = vmatmul.bf16.gmra.mxu0 %v1465
      %v1521 = vpop.f32.mrf.mxu0
      %v1522 = vadd.f32 0.0, %v1521
      %v1523 = vpop.f32.mrf.mxu0
      %v1524 = vadd.f32 0.0, %v1523
      %1525 = vmatmul.bf16.gmra.mxu0 %v1468
      %v1526 = vpop.f32.mrf.mxu0
      %v1527 = vadd.f32 0.0, %v1526
      %v1528 = vpop.f32.mrf.mxu0
      %v1529 = vadd.f32 0.0, %v1528
      %1530 = vmatmul.bf16.gmra.mxu0 %v1471
      %v1531 = vpop.f32.mrf.mxu0
      %v1532 = vadd.f32 0.0, %v1531
      %v1533 = vpop.f32.mrf.mxu0
      %v1534 = vadd.f32 0.0, %v1533
      %1535 = vmatmul.bf16.gmra.mxu0 %v1474
      %v1536 = vpop.f32.mrf.mxu0
      %v1537 = vadd.f32 0.0, %v1536
      %v1538 = vpop.f32.mrf.mxu0
      %v1539 = vadd.f32 0.0, %v1538
      %1540 = vmatmul.bf16.gmra.mxu0 %v1477
      %v1541 = vpop.f32.mrf.mxu0
      %v1542 = vadd.f32 0.0, %v1541
      %v1543 = vpop.f32.mrf.mxu0
      %v1544 = vadd.f32 0.0, %v1543
      %1545 = vmatmul.bf16.gmra.mxu0 %v1480
      %v1546 = vpop.f32.mrf.mxu0
      %v1547 = vadd.f32 0.0, %v1546
      %v1548 = vpop.f32.mrf.mxu0
      %v1549 = vadd.f32 0.0, %v1548
      %1550 = vmatmul.bf16.gmra.mxu0 %v1483
      %v1551 = vpop.f32.mrf.mxu0
      %v1552 = vadd.f32 0.0, %v1551
      %v1553 = vpop.f32.mrf.mxu0
      %v1554 = vadd.f32 0.0, %v1553
      %1555 = vmatmul.bf16.gmra.mxu0 %v1486
      %v1556 = vpop.f32.mrf.mxu0
      %v1557 = vadd.f32 0.0, %v1556
      %v1558 = vpop.f32.mrf.mxu0
      %v1559 = vadd.f32 0.0, %v1558
      %1560 = vmatmul.bf16.gmra.mxu0 %v1489
      %v1561 = vpop.f32.mrf.mxu0
      %v1562 = vadd.f32 0.0, %v1561
      %v1563 = vpop.f32.mrf.mxu0
      %v1564 = vadd.f32 0.0, %v1563
      %1565 = vmatmul.bf16.gmra.mxu0 %v1492
      %v1566 = vpop.f32.mrf.mxu0
      %v1567 = vadd.f32 0.0, %v1566
      %v1568 = vpop.f32.mrf.mxu0
      %v1569 = vadd.f32 0.0, %v1568
      %1570 = vmatmul.bf16.gmra.mxu0 %v1495
      %v1571 = vpop.f32.mrf.mxu0
      %v1572 = vadd.f32 0.0, %v1571
      %v1573 = vpop.f32.mrf.mxu0
      %v1574 = vadd.f32 0.0, %v1573
      %1575 = vmatmul.bf16.gmra.mxu0 %v1498
      %v1576 = vpop.f32.mrf.mxu0
      %v1577 = vadd.f32 0.0, %v1576
      %v1578 = vpop.f32.mrf.mxu0
      %v1579 = vadd.f32 0.0, %v1578
      %1580 = vmatmul.bf16.gmra.mxu0 %v1501
      %v1581 = vpop.f32.mrf.mxu0
      %v1582 = vadd.f32 0.0, %v1581
      %v1583 = vpop.f32.mrf.mxu0
      %v1584 = vadd.f32 0.0, %v1583
      %1585 = vmatmul.bf16.gmra.mxu0 %v1504
      %v1586 = vpop.f32.mrf.mxu0
      %v1587 = vadd.f32 0.0, %v1586
      %v1588 = vpop.f32.mrf.mxu0
      %v1589 = vadd.f32 0.0, %v1588
      %1590 = vmatmul.bf16.gmra.mxu0 %v1507
      %v1591 = vpop.f32.mrf.mxu0
      %v1592 = vadd.f32 0.0, %v1591
      %v1593 = vpop.f32.mrf.mxu0
      %v1594 = vadd.f32 0.0, %v1593
      %1595 = vmatmul.bf16.gmra.mxu0 %v1510
      %v1596 = vpop.f32.mrf.mxu0
      %v1597 = vadd.f32 0.0, %v1596
      %v1598 = vpop.f32.mrf.mxu0
      %v1599 = vadd.f32 0.0, %v1598
      %1600 = vdwg.mxu0
      %v1601 = vadd.f32 %v1172, %v1522
      %v1602 = vadd.f32 %v1173, %v1524
      %v1603 = vadd.f32 %v1174, %v1527
      %v1604 = vadd.f32 %v1175, %v1529
      %v1605 = vadd.f32 %v1176, %v1532
      %v1606 = vadd.f32 %v1177, %v1534
      %v1607 = vadd.f32 %v1178, %v1537
      %v1608 = vadd.f32 %v1179, %v1539
      %v1609 = vadd.f32 %v1180, %v1542
      %v1610 = vadd.f32 %v1181, %v1544
      %v1611 = vadd.f32 %v1182, %v1547
      %v1612 = vadd.f32 %v1183, %v1549
      %v1613 = vadd.f32 %v1184, %v1552
      %v1614 = vadd.f32 %v1185, %v1554
      %v1615 = vadd.f32 %v1186, %v1557
      %v1616 = vadd.f32 %v1187, %v1559
      %v1617 = vadd.f32 %v1188, %v1562
      %v1618 = vadd.f32 %v1189, %v1564
      %v1619 = vadd.f32 %v1190, %v1567
      %v1620 = vadd.f32 %v1191, %v1569
      %v1621 = vadd.f32 %v1192, %v1572
      %v1622 = vadd.f32 %v1193, %v1574
      %v1623 = vadd.f32 %v1194, %v1577
      %v1624 = vadd.f32 %v1195, %v1579
      %v1625 = vadd.f32 %v1196, %v1582
      %v1626 = vadd.f32 %v1197, %v1584
      %v1627 = vadd.f32 %v1198, %v1587
      %v1628 = vadd.f32 %v1199, %v1589
      %v1629 = vadd.f32 %v1200, %v1592
      %v1630 = vadd.f32 %v1201, %v1594
      %v1631 = vadd.f32 %v1202, %v1597
      %v1632 = vadd.f32 %v1203, %v1599
      %s1633 = sadd.s32 %s197, 1
      %s1634 = smul.u32 %s1633, 3
      %s1635 = smul.addr %s1634, 4
      %s1636 = scalar_lea.vmem %s184, %s1635
      %v1637 = vld [vmem:[%s1636] sm:$0xf]
      %v1638 = vld [vmem:[%s1636 + $0x4] sm:$0xf]
      %v1639 = vld [vmem:[%s1636 + $0xc] sm:$0xf]
      %v1640 = vld [vmem:[%s1636 + $0x10] sm:$0xf]
      %v1641 = vld [vmem:[%s1636 + $0x18] sm:$0xf]
      %v1642 = vld [vmem:[%s1636 + $0x1c] sm:$0xf]
      %v1643 = vld [vmem:[%s1636 + $0x24] sm:$0xf]
      %v1644 = vld [vmem:[%s1636 + $0x28] sm:$0xf]
      %v1645 = vld [vmem:[%s1636 + $0x30] sm:$0xf]
      %v1646 = vld [vmem:[%s1636 + $0x34] sm:$0xf]
      %v1647 = vld [vmem:[%s1636 + $0x3c] sm:$0xf]
      %v1648 = vld [vmem:[%s1636 + $0x40] sm:$0xf]
      %v1649 = vld [vmem:[%s1636 + $0x48] sm:$0xf]
      %v1650 = vld [vmem:[%s1636 + $0x4c] sm:$0xf]
      %v1651 = vld [vmem:[%s1636 + $0x54] sm:$0xf]
      %v1652 = vld [vmem:[%s1636 + $0x58] sm:$0xf]
      %v1653 = vld [vmem:[%s1636 + $0x60] sm:$0xf]
      %v1654 = vld [vmem:[%s1636 + $0x64] sm:$0xf]
      %v1655 = vld [vmem:[%s1636 + $0x6c] sm:$0xf]
      %v1656 = vld [vmem:[%s1636 + $0x70] sm:$0xf]
      %v1657 = vld [vmem:[%s1636 + $0x78] sm:$0xf]
      %v1658 = vld [vmem:[%s1636 + $0x7c] sm:$0xf]
      %v1659 = vld [vmem:[%s1636 + $0x84] sm:$0xf]
      %v1660 = vld [vmem:[%s1636 + $0x88] sm:$0xf]
      %v1661 = vld [vmem:[%s1636 + $0x90] sm:$0xf]
      %v1662 = vld [vmem:[%s1636 + $0x94] sm:$0xf]
      %v1663 = vld [vmem:[%s1636 + $0x9c] sm:$0xf]
      %v1664 = vld [vmem:[%s1636 + $0xa0] sm:$0xf]
      %v1665 = vld [vmem:[%s1636 + $0xa8] sm:$0xf]
      %v1666 = vld [vmem:[%s1636 + $0xac] sm:$0xf]
      %v1667 = vld [vmem:[%s1636 + $0xb4] sm:$0xf]
      %v1668 = vld [vmem:[%s1636 + $0xb8] sm:$0xf]
      %s1669 = scalar_lea.vmem %s1, 96
      %v1670 = vld [vmem:[%s1669] sm:$0xf]
      %v1671 = vld [vmem:[%s1669 + $0x4] sm:$0xf]
      %v1672 = vld [vmem:[%s1669 + $0x8] sm:$0xf]
      %v1673 = vld [vmem:[%s1669 + $0xc] sm:$0xf]
      %v1674 = vld [vmem:[%s1669 + $0x10] sm:$0xf]
      %v1675 = vld [vmem:[%s1669 + $0x14] sm:$0xf]
      %v1676 = vld [vmem:[%s1669 + $0x18] sm:$0xf]
      %v1677 = vld [vmem:[%s1669 + $0x1c] sm:$0xf]
      %v1710 = vunpack.c.l.b16 %v1637
      %v1711 = vunpack.c.l.b16 %v1638
      %v1712 = vunpack.c.l.b16 %v1639
      %v1713 = vunpack.c.l.b16 %v1640
      %v1714 = vunpack.c.l.b16 %v1641
      %v1715 = vunpack.c.l.b16 %v1642
      %v1716 = vunpack.c.l.b16 %v1643
      %v1717 = vunpack.c.l.b16 %v1644
      %v1718 = vunpack.c.l.b16 %v1645
      %v1719 = vunpack.c.l.b16 %v1646
      %v1720 = vunpack.c.l.b16 %v1647
      %v1721 = vunpack.c.l.b16 %v1648
      %v1722 = vunpack.c.l.b16 %v1649
      %v1723 = vunpack.c.l.b16 %v1650
      %v1724 = vunpack.c.l.b16 %v1651
      %v1725 = vunpack.c.l.b16 %v1652
      %v1726 = vunpack.c.l.b16 %v1653
      %v1727 = vunpack.c.l.b16 %v1654
      %v1728 = vunpack.c.l.b16 %v1655
      %v1729 = vunpack.c.l.b16 %v1656
      %v1730 = vunpack.c.l.b16 %v1657
      %v1731 = vunpack.c.l.b16 %v1658
      %v1732 = vunpack.c.l.b16 %v1659
      %v1733 = vunpack.c.l.b16 %v1660
      %v1734 = vunpack.c.l.b16 %v1661
      %v1735 = vunpack.c.l.b16 %v1662
      %v1736 = vunpack.c.l.b16 %v1663
      %v1737 = vunpack.c.l.b16 %v1664
      %v1738 = vunpack.c.l.b16 %v1665
      %v1739 = vunpack.c.l.b16 %v1666
      %v1740 = vunpack.c.l.b16 %v1667
      %v1741 = vunpack.c.l.b16 %v1668
      %v1742 = vpack.c.b16 %v1711, %v1710
      %v1743 = vpack.c.b16 %v1713, %v1712
      %v1744 = vpack.c.b16 %v1715, %v1714
      %v1745 = vpack.c.b16 %v1717, %v1716
      %v1746 = vpack.c.b16 %v1719, %v1718
      %v1747 = vpack.c.b16 %v1721, %v1720
      %v1748 = vpack.c.b16 %v1723, %v1722
      %v1749 = vpack.c.b16 %v1725, %v1724
      %v1750 = vpack.c.b16 %v1727, %v1726
      %v1751 = vpack.c.b16 %v1729, %v1728
      %v1752 = vpack.c.b16 %v1731, %v1730
      %v1753 = vpack.c.b16 %v1733, %v1732
      %v1754 = vpack.c.b16 %v1735, %v1734
      %v1755 = vpack.c.b16 %v1737, %v1736
      %v1756 = vpack.c.b16 %v1739, %v1738
      %v1757 = vpack.c.b16 %v1741, %v1740
      %v1766 = vunpack.c.l.b16 %v1670
      %v1767 = vunpack.c.l.b16 %v1671
      %v1768 = vunpack.c.l.b16 %v1672
      %v1769 = vunpack.c.l.b16 %v1673
      %v1770 = vunpack.c.l.b16 %v1674
      %v1771 = vunpack.c.l.b16 %v1675
      %v1772 = vunpack.c.l.b16 %v1676
      %v1773 = vunpack.c.l.b16 %v1677
      %v1774 = vpack.c.b16 %v1767, %v1766
      %v1775 = vpack.c.b16 %v1769, %v1768
      %v1776 = vpack.c.b16 %v1771, %v1770
      %v1777 = vpack.c.b16 %v1773, %v1772
      %v1783 = vsel %vm349, %v1742, 0
      %v1786 = vsel %vm349, %v1743, 0
      %v1789 = vsel %vm349, %v1744, 0
      %v1792 = vsel %vm349, %v1745, 0
      %v1795 = vsel %vm349, %v1746, 0
      %v1798 = vsel %vm349, %v1747, 0
      %v1801 = vsel %vm349, %v1748, 0
      %v1804 = vsel %vm349, %v1749, 0
      %v1807 = vsel %vm349, %v1750, 0
      %v1810 = vsel %vm349, %v1751, 0
      %v1813 = vsel %vm349, %v1752, 0
      %v1816 = vsel %vm349, %v1753, 0
      %v1819 = vsel %vm349, %v1754, 0
      %v1822 = vsel %vm349, %v1755, 0
      %v1825 = vsel %vm349, %v1756, 0
      %v1828 = vsel %vm349, %v1757, 0
      %1830 = vmatpush.bf16.msra.mxu0 0
      %1831 = vmatpush.bf16.msra.mxu0 0
      %1832 = vmatpush.bf16.msra.mxu0 0
      %1833 = vmatpush.bf16.msra.mxu0 0
      %1834 = vmatpush.bf16.msra.mxu0 %v1777
      %1835 = vmatpush.bf16.msra.mxu0 %v1776
      %1836 = vmatpush.bf16.msra.mxu0 %v1775
      %1837 = vmatpush.bf16.msra.mxu0 %v1774
      %1838 = vmatmul.bf16.gmra.mxu0 %v1783
      %v1839 = vpop.f32.mrf.mxu0
      %v1840 = vadd.f32 0.0, %v1839
      %v1841 = vpop.f32.mrf.mxu0
      %v1842 = vadd.f32 0.0, %v1841
      %1843 = vmatmul.bf16.gmra.mxu0 %v1786
      %v1844 = vpop.f32.mrf.mxu0
      %v1845 = vadd.f32 0.0, %v1844
      %v1846 = vpop.f32.mrf.mxu0
      %v1847 = vadd.f32 0.0, %v1846
      %1848 = vmatmul.bf16.gmra.mxu0 %v1789
      %v1849 = vpop.f32.mrf.mxu0
      %v1850 = vadd.f32 0.0, %v1849
      %v1851 = vpop.f32.mrf.mxu0
      %v1852 = vadd.f32 0.0, %v1851
      %1853 = vmatmul.bf16.gmra.mxu0 %v1792
      %v1854 = vpop.f32.mrf.mxu0
      %v1855 = vadd.f32 0.0, %v1854
      %v1856 = vpop.f32.mrf.mxu0
      %v1857 = vadd.f32 0.0, %v1856
      %1858 = vmatmul.bf16.gmra.mxu0 %v1795
      %v1859 = vpop.f32.mrf.mxu0
      %v1860 = vadd.f32 0.0, %v1859
      %v1861 = vpop.f32.mrf.mxu0
      %v1862 = vadd.f32 0.0, %v1861
      %1863 = vmatmul.bf16.gmra.mxu0 %v1798
      %v1864 = vpop.f32.mrf.mxu0
      %v1865 = vadd.f32 0.0, %v1864
      %v1866 = vpop.f32.mrf.mxu0
      %v1867 = vadd.f32 0.0, %v1866
      %1868 = vmatmul.bf16.gmra.mxu0 %v1801
      %v1869 = vpop.f32.mrf.mxu0
      %v1870 = vadd.f32 0.0, %v1869
      %v1871 = vpop.f32.mrf.mxu0
      %v1872 = vadd.f32 0.0, %v1871
      %1873 = vmatmul.bf16.gmra.mxu0 %v1804
      %v1874 = vpop.f32.mrf.mxu0
      %v1875 = vadd.f32 0.0, %v1874
      %v1876 = vpop.f32.mrf.mxu0
      %v1877 = vadd.f32 0.0, %v1876
      %1878 = vmatmul.bf16.gmra.mxu0 %v1807
      %v1879 = vpop.f32.mrf.mxu0
      %v1880 = vadd.f32 0.0, %v1879
      %v1881 = vpop.f32.mrf.mxu0
      %v1882 = vadd.f32 0.0, %v1881
      %1883 = vmatmul.bf16.gmra.mxu0 %v1810
      %v1884 = vpop.f32.mrf.mxu0
      %v1885 = vadd.f32 0.0, %v1884
      %v1886 = vpop.f32.mrf.mxu0
      %v1887 = vadd.f32 0.0, %v1886
      %1888 = vmatmul.bf16.gmra.mxu0 %v1813
      %v1889 = vpop.f32.mrf.mxu0
      %v1890 = vadd.f32 0.0, %v1889
      %v1891 = vpop.f32.mrf.mxu0
      %v1892 = vadd.f32 0.0, %v1891
      %1893 = vmatmul.bf16.gmra.mxu0 %v1816
      %v1894 = vpop.f32.mrf.mxu0
      %v1895 = vadd.f32 0.0, %v1894
      %v1896 = vpop.f32.mrf.mxu0
      %v1897 = vadd.f32 0.0, %v1896
      %1898 = vmatmul.bf16.gmra.mxu0 %v1819
      %v1899 = vpop.f32.mrf.mxu0
      %v1900 = vadd.f32 0.0, %v1899
      %v1901 = vpop.f32.mrf.mxu0
      %v1902 = vadd.f32 0.0, %v1901
      %1903 = vmatmul.bf16.gmra.mxu0 %v1822
      %v1904 = vpop.f32.mrf.mxu0
      %v1905 = vadd.f32 0.0, %v1904
      %v1906 = vpop.f32.mrf.mxu0
      %v1907 = vadd.f32 0.0, %v1906
      %1908 = vmatmul.bf16.gmra.mxu0 %v1825
      %v1909 = vpop.f32.mrf.mxu0
      %v1910 = vadd.f32 0.0, %v1909
      %v1911 = vpop.f32.mrf.mxu0
      %v1912 = vadd.f32 0.0, %v1911
      %1913 = vmatmul.bf16.gmra.mxu0 %v1828
      %v1914 = vpop.f32.mrf.mxu0
      %v1915 = vadd.f32 0.0, %v1914
      %v1916 = vpop.f32.mrf.mxu0
      %v1917 = vadd.f32 0.0, %v1916
      %1918 = vdwg.mxu0
      %v1919 = vadd.f32 %v1601, %v1840
      %v1920 = vadd.f32 %v1602, %v1842
      %v1921 = vadd.f32 %v1603, %v1845
      %v1922 = vadd.f32 %v1604, %v1847
      %v1923 = vadd.f32 %v1605, %v1850
      %v1924 = vadd.f32 %v1606, %v1852
      %v1925 = vadd.f32 %v1607, %v1855
      %v1926 = vadd.f32 %v1608, %v1857
      %v1927 = vadd.f32 %v1609, %v1860
      %v1928 = vadd.f32 %v1610, %v1862
      %v1929 = vadd.f32 %v1611, %v1865
      %v1930 = vadd.f32 %v1612, %v1867
      %v1931 = vadd.f32 %v1613, %v1870
      %v1932 = vadd.f32 %v1614, %v1872
      %v1933 = vadd.f32 %v1615, %v1875
      %v1934 = vadd.f32 %v1616, %v1877
      %v1935 = vadd.f32 %v1617, %v1880
      %v1936 = vadd.f32 %v1618, %v1882
      %v1937 = vadd.f32 %v1619, %v1885
      %v1938 = vadd.f32 %v1620, %v1887
      %v1939 = vadd.f32 %v1621, %v1890
      %v1940 = vadd.f32 %v1622, %v1892
      %v1941 = vadd.f32 %v1623, %v1895
      %v1942 = vadd.f32 %v1624, %v1897
      %v1943 = vadd.f32 %v1625, %v1900
      %v1944 = vadd.f32 %v1626, %v1902
      %v1945 = vadd.f32 %v1627, %v1905
      %v1946 = vadd.f32 %v1628, %v1907
      %v1947 = vadd.f32 %v1629, %v1910
      %v1948 = vadd.f32 %v1630, %v1912
      %v1949 = vadd.f32 %v1631, %v1915
      %v1950 = vadd.f32 %v1632, %v1917
      %v1951 = vld [vmem:[%s1636] sm:$0xf]
      %v1952 = vld [vmem:[%s1636 + $0x4] sm:$0xf]
      %v1953 = vld [vmem:[%s1636 + $0x8] sm:$0x1]
      %v1954 = vld [vmem:[%s1636 + $0xc] sm:$0xf]
      %v1955 = vld [vmem:[%s1636 + $0x10] sm:$0xf]
      %v1956 = vld [vmem:[%s1636 + $0x14] sm:$0x1]
      %v1957 = vld [vmem:[%s1636 + $0x18] sm:$0xf]
      %v1958 = vld [vmem:[%s1636 + $0x1c] sm:$0xf]
      %v1959 = vld [vmem:[%s1636 + $0x20] sm:$0x1]
      %v1960 = vld [vmem:[%s1636 + $0x24] sm:$0xf]
      %v1961 = vld [vmem:[%s1636 + $0x28] sm:$0xf]
      %v1962 = vld [vmem:[%s1636 + $0x2c] sm:$0x1]
      %v1963 = vld [vmem:[%s1636 + $0x30] sm:$0xf]
      %v1964 = vld [vmem:[%s1636 + $0x34] sm:$0xf]
      %v1965 = vld [vmem:[%s1636 + $0x38] sm:$0x1]
      %v1966 = vld [vmem:[%s1636 + $0x3c] sm:$0xf]
      %v1967 = vld [vmem:[%s1636 + $0x40] sm:$0xf]
      %v1968 = vld [vmem:[%s1636 + $0x44] sm:$0x1]
      %v1969 = vld [vmem:[%s1636 + $0x48] sm:$0xf]
      %v1970 = vld [vmem:[%s1636 + $0x4c] sm:$0xf]
      %v1971 = vld [vmem:[%s1636 + $0x50] sm:$0x1]
      %v1972 = vld [vmem:[%s1636 + $0x54] sm:$0xf]
      %v1973 = vld [vmem:[%s1636 + $0x58] sm:$0xf]
      %v1974 = vld [vmem:[%s1636 + $0x5c] sm:$0x1]
      %v1975 = vld [vmem:[%s1636 + $0x60] sm:$0xf]
      %v1976 = vld [vmem:[%s1636 + $0x64] sm:$0xf]
      %v1977 = vld [vmem:[%s1636 + $0x68] sm:$0x1]
      %v1978 = vld [vmem:[%s1636 + $0x6c] sm:$0xf]
      %v1979 = vld [vmem:[%s1636 + $0x70] sm:$0xf]
      %v1980 = vld [vmem:[%s1636 + $0x74] sm:$0x1]
      %v1981 = vld [vmem:[%s1636 + $0x78] sm:$0xf]
      %v1982 = vld [vmem:[%s1636 + $0x7c] sm:$0xf]
      %v1983 = vld [vmem:[%s1636 + $0x80] sm:$0x1]
      %v1984 = vld [vmem:[%s1636 + $0x84] sm:$0xf]
      %v1985 = vld [vmem:[%s1636 + $0x88] sm:$0xf]
      %v1986 = vld [vmem:[%s1636 + $0x8c] sm:$0x1]
      %v1987 = vld [vmem:[%s1636 + $0x90] sm:$0xf]
      %v1988 = vld [vmem:[%s1636 + $0x94] sm:$0xf]
      %v1989 = vld [vmem:[%s1636 + $0x98] sm:$0x1]
      %v1990 = vld [vmem:[%s1636 + $0x9c] sm:$0xf]
      %v1991 = vld [vmem:[%s1636 + $0xa0] sm:$0xf]
      %v1992 = vld [vmem:[%s1636 + $0xa4] sm:$0x1]
      %v1993 = vld [vmem:[%s1636 + $0xa8] sm:$0xf]
      %v1994 = vld [vmem:[%s1636 + $0xac] sm:$0xf]
      %v1995 = vld [vmem:[%s1636 + $0xb0] sm:$0x1]
      %v1996 = vld [vmem:[%s1636 + $0xb4] sm:$0xf]
      %v1997 = vld [vmem:[%s1636 + $0xb8] sm:$0xf]
      %v1998 = vld [vmem:[%s1636 + $0xbc] sm:$0x1]
      %v2000 = vshrl.u32 %v1951, 16
      %v2002 = vrot.slane %v2000, 4
      %v2003 = vshll.u32 %v1951, 16
      %v2005 = vrot.slane %v2003, 5
      %v2006 = vor.u32 %v2002, %v2005
      %v2007 = vrot.slane %v2006, 4
      %v2009 = vshll.u32 %v1952, 16
      %v2011 = vrot.slane %v2009, 5
      %v2012 = vsel %vm569, %v2007, %v2011
      %v2013 = vshrl.u32 %v1952, 16
      %v2015 = vrot.slane %v2013, 4
      %v2016 = vor.u32 %v2015, %v2011
      %v2017 = vrot.slane %v2016, 4
      %v2019 = vshll.u32 %v1953, 16
      %v2021 = vrot.slane %v2019, 5
      %v2022 = vsel %vm569, %v2017, %v2021
      %v2024 = vshrl.u32 %v1954, 16
      %v2026 = vrot.slane %v2024, 4
      %v2027 = vshll.u32 %v1954, 16
      %v2029 = vrot.slane %v2027, 5
      %v2030 = vor.u32 %v2026, %v2029
      %v2031 = vrot.slane %v2030, 4
      %v2033 = vshll.u32 %v1955, 16
      %v2035 = vrot.slane %v2033, 5
      %v2036 = vsel %vm569, %v2031, %v2035
      %v2037 = vshrl.u32 %v1955, 16
      %v2039 = vrot.slane %v2037, 4
      %v2040 = vor.u32 %v2039, %v2035
      %v2041 = vrot.slane %v2040, 4
      %v2043 = vshll.u32 %v1956, 16
      %v2045 = vrot.slane %v2043, 5
      %v2046 = vsel %vm569, %v2041, %v2045
      %v2048 = vshrl.u32 %v1957, 16
      %v2050 = vrot.slane %v2048, 4
      %v2051 = vshll.u32 %v1957, 16
      %v2053 = vrot.slane %v2051, 5
      %v2054 = vor.u32 %v2050, %v2053
      %v2055 = vrot.slane %v2054, 4
      %v2057 = vshll.u32 %v1958, 16
      %v2059 = vrot.slane %v2057, 5
      %v2060 = vsel %vm569, %v2055, %v2059
      %v2061 = vshrl.u32 %v1958, 16
      %v2063 = vrot.slane %v2061, 4
      %v2064 = vor.u32 %v2063, %v2059
      %v2065 = vrot.slane %v2064, 4
      %v2067 = vshll.u32 %v1959, 16
      %v2069 = vrot.slane %v2067, 5
      %v2070 = vsel %vm569, %v2065, %v2069
      %v2072 = vshrl.u32 %v1960, 16
      %v2074 = vrot.slane %v2072, 4
      %v2075 = vshll.u32 %v1960, 16
      %v2077 = vrot.slane %v2075, 5
      %v2078 = vor.u32 %v2074, %v2077
      %v2079 = vrot.slane %v2078, 4
      %v2081 = vshll.u32 %v1961, 16
      %v2083 = vrot.slane %v2081, 5
      %v2084 = vsel %vm569, %v2079, %v2083
      %v2085 = vshrl.u32 %v1961, 16
      %v2087 = vrot.slane %v2085, 4
      %v2088 = vor.u32 %v2087, %v2083
      %v2089 = vrot.slane %v2088, 4
      %v2091 = vshll.u32 %v1962, 16
      %v2093 = vrot.slane %v2091, 5
      %v2094 = vsel %vm569, %v2089, %v2093
      %v2096 = vshrl.u32 %v1963, 16
      %v2098 = vrot.slane %v2096, 4
      %v2099 = vshll.u32 %v1963, 16
      %v2101 = vrot.slane %v2099, 5
      %v2102 = vor.u32 %v2098, %v2101
      %v2103 = vrot.slane %v2102, 4
      %v2105 = vshll.u32 %v1964, 16
      %v2107 = vrot.slane %v2105, 5
      %v2108 = vsel %vm569, %v2103, %v2107
      %v2109 = vshrl.u32 %v1964, 16
      %v2111 = vrot.slane %v2109, 4
      %v2112 = vor.u32 %v2111, %v2107
      %v2113 = vrot.slane %v2112, 4
      %v2115 = vshll.u32 %v1965, 16
      %v2117 = vrot.slane %v2115, 5
      %v2118 = vsel %vm569, %v2113, %v2117
      %v2120 = vshrl.u32 %v1966, 16
      %v2122 = vrot.slane %v2120, 4
      %v2123 = vshll.u32 %v1966, 16
      %v2125 = vrot.slane %v2123, 5
      %v2126 = vor.u32 %v2122, %v2125
      %v2127 = vrot.slane %v2126, 4
      %v2129 = vshll.u32 %v1967, 16
      %v2131 = vrot.slane %v2129, 5
      %v2132 = vsel %vm569, %v2127, %v2131
      %v2133 = vshrl.u32 %v1967, 16
      %v2135 = vrot.slane %v2133, 4
      %v2136 = vor.u32 %v2135, %v2131
      %v2137 = vrot.slane %v2136, 4
      %v2139 = vshll.u32 %v1968, 16
      %v2141 = vrot.slane %v2139, 5
      %v2142 = vsel %vm569, %v2137, %v2141
      %v2144 = vshrl.u32 %v1969, 16
      %v2146 = vrot.slane %v2144, 4
      %v2147 = vshll.u32 %v1969, 16
      %v2149 = vrot.slane %v2147, 5
      %v2150 = vor.u32 %v2146, %v2149
      %v2151 = vrot.slane %v2150, 4
      %v2153 = vshll.u32 %v1970, 16
      %v2155 = vrot.slane %v2153, 5
      %v2156 = vsel %vm569, %v2151, %v2155
      %v2157 = vshrl.u32 %v1970, 16
      %v2159 = vrot.slane %v2157, 4
      %v2160 = vor.u32 %v2159, %v2155
      %v2161 = vrot.slane %v2160, 4
      %v2163 = vshll.u32 %v1971, 16
      %v2165 = vrot.slane %v2163, 5
      %v2166 = vsel %vm569, %v2161, %v2165
      %v2168 = vshrl.u32 %v1972, 16
      %v2170 = vrot.slane %v2168, 4
      %v2171 = vshll.u32 %v1972, 16
      %v2173 = vrot.slane %v2171, 5
      %v2174 = vor.u32 %v2170, %v2173
      %v2175 = vrot.slane %v2174, 4
      %v2177 = vshll.u32 %v1973, 16
      %v2179 = vrot.slane %v2177, 5
      %v2180 = vsel %vm569, %v2175, %v2179
      %v2181 = vshrl.u32 %v1973, 16
      %v2183 = vrot.slane %v2181, 4
      %v2184 = vor.u32 %v2183, %v2179
      %v2185 = vrot.slane %v2184, 4
      %v2187 = vshll.u32 %v1974, 16
      %v2189 = vrot.slane %v2187, 5
      %v2190 = vsel %vm569, %v2185, %v2189
      %v2192 = vshrl.u32 %v1975, 16
      %v2194 = vrot.slane %v2192, 4
      %v2195 = vshll.u32 %v1975, 16
      %v2197 = vrot.slane %v2195, 5
      %v2198 = vor.u32 %v2194, %v2197
      %v2199 = vrot.slane %v2198, 4
      %v2201 = vshll.u32 %v1976, 16
      %v2203 = vrot.slane %v2201, 5
      %v2204 = vsel %vm569, %v2199, %v2203
      %v2205 = vshrl.u32 %v1976, 16
      %v2207 = vrot.slane %v2205, 4
      %v2208 = vor.u32 %v2207, %v2203
      %v2209 = vrot.slane %v2208, 4
      %v2211 = vshll.u32 %v1977, 16
      %v2213 = vrot.slane %v2211, 5
      %v2214 = vsel %vm569, %v2209, %v2213
      %v2216 = vshrl.u32 %v1978, 16
      %v2218 = vrot.slane %v2216, 4
      %v2219 = vshll.u32 %v1978, 16
      %v2221 = vrot.slane %v2219, 5
      %v2222 = vor.u32 %v2218, %v2221
      %v2223 = vrot.slane %v2222, 4
      %v2225 = vshll.u32 %v1979, 16
      %v2227 = vrot.slane %v2225, 5
      %v2228 = vsel %vm569, %v2223, %v2227
      %v2229 = vshrl.u32 %v1979, 16
      %v2231 = vrot.slane %v2229, 4
      %v2232 = vor.u32 %v2231, %v2227
      %v2233 = vrot.slane %v2232, 4
      %v2235 = vshll.u32 %v1980, 16
      %v2237 = vrot.slane %v2235, 5
      %v2238 = vsel %vm569, %v2233, %v2237
      %v2240 = vshrl.u32 %v1981, 16
      %v2242 = vrot.slane %v2240, 4
      %v2243 = vshll.u32 %v1981, 16
      %v2245 = vrot.slane %v2243, 5
      %v2246 = vor.u32 %v2242, %v2245
      %v2247 = vrot.slane %v2246, 4
      %v2249 = vshll.u32 %v1982, 16
      %v2251 = vrot.slane %v2249, 5
      %v2252 = vsel %vm569, %v2247, %v2251
      %v2253 = vshrl.u32 %v1982, 16
      %v2255 = vrot.slane %v2253, 4
      %v2256 = vor.u32 %v2255, %v2251
      %v2257 = vrot.slane %v2256, 4
      %v2259 = vshll.u32 %v1983, 16
      %v2261 = vrot.slane %v2259, 5
      %v2262 = vsel %vm569, %v2257, %v2261
      %v2264 = vshrl.u32 %v1984, 16
      %v2266 = vrot.slane %v2264, 4
      %v2267 = vshll.u32 %v1984, 16
      %v2269 = vrot.slane %v2267, 5
      %v2270 = vor.u32 %v2266, %v2269
      %v2271 = vrot.slane %v2270, 4
      %v2273 = vshll.u32 %v1985, 16
      %v2275 = vrot.slane %v2273, 5
      %v2276 = vsel %vm569, %v2271, %v2275
      %v2277 = vshrl.u32 %v1985, 16
      %v2279 = vrot.slane %v2277, 4
      %v2280 = vor.u32 %v2279, %v2275
      %v2281 = vrot.slane %v2280, 4
      %v2283 = vshll.u32 %v1986, 16
      %v2285 = vrot.slane %v2283, 5
      %v2286 = vsel %vm569, %v2281, %v2285
      %v2288 = vshrl.u32 %v1987, 16
      %v2290 = vrot.slane %v2288, 4
      %v2291 = vshll.u32 %v1987, 16
      %v2293 = vrot.slane %v2291, 5
      %v2294 = vor.u32 %v2290, %v2293
      %v2295 = vrot.slane %v2294, 4
      %v2297 = vshll.u32 %v1988, 16
      %v2299 = vrot.slane %v2297, 5
      %v2300 = vsel %vm569, %v2295, %v2299
      %v2301 = vshrl.u32 %v1988, 16
      %v2303 = vrot.slane %v2301, 4
      %v2304 = vor.u32 %v2303, %v2299
      %v2305 = vrot.slane %v2304, 4
      %v2307 = vshll.u32 %v1989, 16
      %v2309 = vrot.slane %v2307, 5
      %v2310 = vsel %vm569, %v2305, %v2309
      %v2312 = vshrl.u32 %v1990, 16
      %v2314 = vrot.slane %v2312, 4
      %v2315 = vshll.u32 %v1990, 16
      %v2317 = vrot.slane %v2315, 5
      %v2318 = vor.u32 %v2314, %v2317
      %v2319 = vrot.slane %v2318, 4
      %v2321 = vshll.u32 %v1991, 16
      %v2323 = vrot.slane %v2321, 5
      %v2324 = vsel %vm569, %v2319, %v2323
      %v2325 = vshrl.u32 %v1991, 16
      %v2327 = vrot.slane %v2325, 4
      %v2328 = vor.u32 %v2327, %v2323
      %v2329 = vrot.slane %v2328, 4
      %v2331 = vshll.u32 %v1992, 16
      %v2333 = vrot.slane %v2331, 5
      %v2334 = vsel %vm569, %v2329, %v2333
      %v2336 = vshrl.u32 %v1993, 16
      %v2338 = vrot.slane %v2336, 4
      %v2339 = vshll.u32 %v1993, 16
      %v2341 = vrot.slane %v2339, 5
      %v2342 = vor.u32 %v2338, %v2341
      %v2343 = vrot.slane %v2342, 4
      %v2345 = vshll.u32 %v1994, 16
      %v2347 = vrot.slane %v2345, 5
      %v2348 = vsel %vm569, %v2343, %v2347
      %v2349 = vshrl.u32 %v1994, 16
      %v2351 = vrot.slane %v2349, 4
      %v2352 = vor.u32 %v2351, %v2347
      %v2353 = vrot.slane %v2352, 4
      %v2355 = vshll.u32 %v1995, 16
      %v2357 = vrot.slane %v2355, 5
      %v2358 = vsel %vm569, %v2353, %v2357
      %v2360 = vshrl.u32 %v1996, 16
      %v2362 = vrot.slane %v2360, 4
      %v2363 = vshll.u32 %v1996, 16
      %v2365 = vrot.slane %v2363, 5
      %v2366 = vor.u32 %v2362, %v2365
      %v2367 = vrot.slane %v2366, 4
      %v2369 = vshll.u32 %v1997, 16
      %v2371 = vrot.slane %v2369, 5
      %v2372 = vsel %vm569, %v2367, %v2371
      %v2373 = vshrl.u32 %v1997, 16
      %v2375 = vrot.slane %v2373, 4
      %v2376 = vor.u32 %v2375, %v2371
      %v2377 = vrot.slane %v2376, 4
      %v2379 = vshll.u32 %v1998, 16
      %v2381 = vrot.slane %v2379, 5
      %v2382 = vsel %vm569, %v2377, %v2381
      %s2383 = scalar_lea.vmem %s1, 128
      %v2384 = vld [vmem:[%s2383] sm:$0xf]
      %v2385 = vld [vmem:[%s2383 + $0x4] sm:$0xf]
      %v2386 = vld [vmem:[%s2383 + $0x8] sm:$0xf]
      %v2387 = vld [vmem:[%s2383 + $0xc] sm:$0xf]
      %v2388 = vld [vmem:[%s2383 + $0x10] sm:$0xf]
      %v2389 = vld [vmem:[%s2383 + $0x14] sm:$0xf]
      %v2390 = vld [vmem:[%s2383 + $0x18] sm:$0xf]
      %v2391 = vld [vmem:[%s2383 + $0x1c] sm:$0xf]
      %v2392 = vunpack.c.l.b16 %v2012
      %v2393 = vunpack.c.l.b16 %v2022
      %v2394 = vunpack.c.l.b16 %v2036
      %v2395 = vunpack.c.l.b16 %v2046
      %v2396 = vunpack.c.l.b16 %v2060
      %v2397 = vunpack.c.l.b16 %v2070
      %v2398 = vunpack.c.l.b16 %v2084
      %v2399 = vunpack.c.l.b16 %v2094
      %v2400 = vunpack.c.l.b16 %v2108
      %v2401 = vunpack.c.l.b16 %v2118
      %v2402 = vunpack.c.l.b16 %v2132
      %v2403 = vunpack.c.l.b16 %v2142
      %v2404 = vunpack.c.l.b16 %v2156
      %v2405 = vunpack.c.l.b16 %v2166
      %v2406 = vunpack.c.l.b16 %v2180
      %v2407 = vunpack.c.l.b16 %v2190
      %v2408 = vunpack.c.l.b16 %v2204
      %v2409 = vunpack.c.l.b16 %v2214
      %v2410 = vunpack.c.l.b16 %v2228
      %v2411 = vunpack.c.l.b16 %v2238
      %v2412 = vunpack.c.l.b16 %v2252
      %v2413 = vunpack.c.l.b16 %v2262
      %v2414 = vunpack.c.l.b16 %v2276
      %v2415 = vunpack.c.l.b16 %v2286
      %v2416 = vunpack.c.l.b16 %v2300
      %v2417 = vunpack.c.l.b16 %v2310
      %v2418 = vunpack.c.l.b16 %v2324
      %v2419 = vunpack.c.l.b16 %v2334
      %v2420 = vunpack.c.l.b16 %v2348
      %v2421 = vunpack.c.l.b16 %v2358
      %v2422 = vunpack.c.l.b16 %v2372
      %v2423 = vunpack.c.l.b16 %v2382
      %v2424 = vpack.c.b16 %v2393, %v2392
      %v2425 = vpack.c.b16 %v2395, %v2394
      %v2426 = vpack.c.b16 %v2397, %v2396
      %v2427 = vpack.c.b16 %v2399, %v2398
      %v2428 = vpack.c.b16 %v2401, %v2400
      %v2429 = vpack.c.b16 %v2403, %v2402
      %v2430 = vpack.c.b16 %v2405, %v2404
      %v2431 = vpack.c.b16 %v2407, %v2406
      %v2432 = vpack.c.b16 %v2409, %v2408
      %v2433 = vpack.c.b16 %v2411, %v2410
      %v2434 = vpack.c.b16 %v2413, %v2412
      %v2435 = vpack.c.b16 %v2415, %v2414
      %v2436 = vpack.c.b16 %v2417, %v2416
      %v2437 = vpack.c.b16 %v2419, %v2418
      %v2438 = vpack.c.b16 %v2421, %v2420
      %v2439 = vpack.c.b16 %v2423, %v2422
      %v2448 = vunpack.c.l.b16 %v2384
      %v2449 = vunpack.c.l.b16 %v2385
      %v2450 = vunpack.c.l.b16 %v2386
      %v2451 = vunpack.c.l.b16 %v2387
      %v2452 = vunpack.c.l.b16 %v2388
      %v2453 = vunpack.c.l.b16 %v2389
      %v2454 = vunpack.c.l.b16 %v2390
      %v2455 = vunpack.c.l.b16 %v2391
      %v2456 = vpack.c.b16 %v2449, %v2448
      %v2457 = vpack.c.b16 %v2451, %v2450
      %v2458 = vpack.c.b16 %v2453, %v2452
      %v2459 = vpack.c.b16 %v2455, %v2454
      %v2465 = vsel %vm349, %v2424, 0
      %v2468 = vsel %vm349, %v2425, 0
      %v2471 = vsel %vm349, %v2426, 0
      %v2474 = vsel %vm349, %v2427, 0
      %v2477 = vsel %vm349, %v2428, 0
      %v2480 = vsel %vm349, %v2429, 0
      %v2483 = vsel %vm349, %v2430, 0
      %v2486 = vsel %vm349, %v2431, 0
      %v2489 = vsel %vm349, %v2432, 0
      %v2492 = vsel %vm349, %v2433, 0
      %v2495 = vsel %vm349, %v2434, 0
      %v2498 = vsel %vm349, %v2435, 0
      %v2501 = vsel %vm349, %v2436, 0
      %v2504 = vsel %vm349, %v2437, 0
      %v2507 = vsel %vm349, %v2438, 0
      %v2510 = vsel %vm349, %v2439, 0
      %2512 = vmatpush.bf16.msra.mxu0 0
      %2513 = vmatpush.bf16.msra.mxu0 0
      %2514 = vmatpush.bf16.msra.mxu0 0
      %2515 = vmatpush.bf16.msra.mxu0 0
      %2516 = vmatpush.bf16.msra.mxu0 %v2459
      %2517 = vmatpush.bf16.msra.mxu0 %v2458
      %2518 = vmatpush.bf16.msra.mxu0 %v2457
      %2519 = vmatpush.bf16.msra.mxu0 %v2456
      %2520 = vmatmul.bf16.gmra.mxu0 %v2465
      %v2521 = vpop.f32.mrf.mxu0
      %v2522 = vadd.f32 0.0, %v2521
      %v2523 = vpop.f32.mrf.mxu0
      %v2524 = vadd.f32 0.0, %v2523
      %2525 = vmatmul.bf16.gmra.mxu0 %v2468
      %v2526 = vpop.f32.mrf.mxu0
      %v2527 = vadd.f32 0.0, %v2526
      %v2528 = vpop.f32.mrf.mxu0
      %v2529 = vadd.f32 0.0, %v2528
      %2530 = vmatmul.bf16.gmra.mxu0 %v2471
      %v2531 = vpop.f32.mrf.mxu0
      %v2532 = vadd.f32 0.0, %v2531
      %v2533 = vpop.f32.mrf.mxu0
      %v2534 = vadd.f32 0.0, %v2533
      %2535 = vmatmul.bf16.gmra.mxu0 %v2474
      %v2536 = vpop.f32.mrf.mxu0
      %v2537 = vadd.f32 0.0, %v2536
      %v2538 = vpop.f32.mrf.mxu0
      %v2539 = vadd.f32 0.0, %v2538
      %2540 = vmatmul.bf16.gmra.mxu0 %v2477
      %v2541 = vpop.f32.mrf.mxu0
      %v2542 = vadd.f32 0.0, %v2541
      %v2543 = vpop.f32.mrf.mxu0
      %v2544 = vadd.f32 0.0, %v2543
      %2545 = vmatmul.bf16.gmra.mxu0 %v2480
      %v2546 = vpop.f32.mrf.mxu0
      %v2547 = vadd.f32 0.0, %v2546
      %v2548 = vpop.f32.mrf.mxu0
      %v2549 = vadd.f32 0.0, %v2548
      %2550 = vmatmul.bf16.gmra.mxu0 %v2483
      %v2551 = vpop.f32.mrf.mxu0
      %v2552 = vadd.f32 0.0, %v2551
      %v2553 = vpop.f32.mrf.mxu0
      %v2554 = vadd.f32 0.0, %v2553
      %2555 = vmatmul.bf16.gmra.mxu0 %v2486
      %v2556 = vpop.f32.mrf.mxu0
      %v2557 = vadd.f32 0.0, %v2556
      %v2558 = vpop.f32.mrf.mxu0
      %v2559 = vadd.f32 0.0, %v2558
      %2560 = vmatmul.bf16.gmra.mxu0 %v2489
      %v2561 = vpop.f32.mrf.mxu0
      %v2562 = vadd.f32 0.0, %v2561
      %v2563 = vpop.f32.mrf.mxu0
      %v2564 = vadd.f32 0.0, %v2563
      %2565 = vmatmul.bf16.gmra.mxu0 %v2492
      %v2566 = vpop.f32.mrf.mxu0
      %v2567 = vadd.f32 0.0, %v2566
      %v2568 = vpop.f32.mrf.mxu0
      %v2569 = vadd.f32 0.0, %v2568
      %2570 = vmatmul.bf16.gmra.mxu0 %v2495
      %v2571 = vpop.f32.mrf.mxu0
      %v2572 = vadd.f32 0.0, %v2571
      %v2573 = vpop.f32.mrf.mxu0
      %v2574 = vadd.f32 0.0, %v2573
      %2575 = vmatmul.bf16.gmra.mxu0 %v2498
      %v2576 = vpop.f32.mrf.mxu0
      %v2577 = vadd.f32 0.0, %v2576
      %v2578 = vpop.f32.mrf.mxu0
      %v2579 = vadd.f32 0.0, %v2578
      %2580 = vmatmul.bf16.gmra.mxu0 %v2501
      %v2581 = vpop.f32.mrf.mxu0
      %v2582 = vadd.f32 0.0, %v2581
      %v2583 = vpop.f32.mrf.mxu0
      %v2584 = vadd.f32 0.0, %v2583
      %2585 = vmatmul.bf16.gmra.mxu0 %v2504
      %v2586 = vpop.f32.mrf.mxu0
      %v2587 = vadd.f32 0.0, %v2586
      %v2588 = vpop.f32.mrf.mxu0
      %v2589 = vadd.f32 0.0, %v2588
      %2590 = vmatmul.bf16.gmra.mxu0 %v2507
      %v2591 = vpop.f32.mrf.mxu0
      %v2592 = vadd.f32 0.0, %v2591
      %v2593 = vpop.f32.mrf.mxu0
      %v2594 = vadd.f32 0.0, %v2593
      %2595 = vmatmul.bf16.gmra.mxu0 %v2510
      %v2596 = vpop.f32.mrf.mxu0
      %v2597 = vadd.f32 0.0, %v2596
      %v2598 = vpop.f32.mrf.mxu0
      %v2599 = vadd.f32 0.0, %v2598
      %2600 = vdwg.mxu0
      %v2601 = vadd.f32 %v1919, %v2522
      %v2602 = vadd.f32 %v1920, %v2524
      %v2603 = vadd.f32 %v1921, %v2527
      %v2604 = vadd.f32 %v1922, %v2529
      %v2605 = vadd.f32 %v1923, %v2532
      %v2606 = vadd.f32 %v1924, %v2534
      %v2607 = vadd.f32 %v1925, %v2537
      %v2608 = vadd.f32 %v1926, %v2539
      %v2609 = vadd.f32 %v1927, %v2542
      %v2610 = vadd.f32 %v1928, %v2544
      %v2611 = vadd.f32 %v1929, %v2547
      %v2612 = vadd.f32 %v1930, %v2549
      %v2613 = vadd.f32 %v1931, %v2552
      %v2614 = vadd.f32 %v1932, %v2554
      %v2615 = vadd.f32 %v1933, %v2557
      %v2616 = vadd.f32 %v1934, %v2559
      %v2617 = vadd.f32 %v1935, %v2562
      %v2618 = vadd.f32 %v1936, %v2564
      %v2619 = vadd.f32 %v1937, %v2567
      %v2620 = vadd.f32 %v1938, %v2569
      %v2621 = vadd.f32 %v1939, %v2572
      %v2622 = vadd.f32 %v1940, %v2574
      %v2623 = vadd.f32 %v1941, %v2577
      %v2624 = vadd.f32 %v1942, %v2579
      %v2625 = vadd.f32 %v1943, %v2582
      %v2626 = vadd.f32 %v1944, %v2584
      %v2627 = vadd.f32 %v1945, %v2587
      %v2628 = vadd.f32 %v1946, %v2589
      %v2629 = vadd.f32 %v1947, %v2592
      %v2630 = vadd.f32 %v1948, %v2594
      %v2631 = vadd.f32 %v1949, %v2597
      %v2632 = vadd.f32 %v1950, %v2599
      %v2633 = vld [vmem:[%s1636] sm:$0xe]
      %v2634 = vld [vmem:[%s1636 + $0xc] sm:$0xe]
      %v2635 = vld [vmem:[%s1636 + $0x18] sm:$0xe]
      %v2636 = vld [vmem:[%s1636 + $0x24] sm:$0xe]
      %v2637 = vld [vmem:[%s1636 + $0x30] sm:$0xe]
      %v2638 = vld [vmem:[%s1636 + $0x3c] sm:$0xe]
      %v2639 = vld [vmem:[%s1636 + $0x48] sm:$0xe]
      %v2640 = vld [vmem:[%s1636 + $0x54] sm:$0xe]
      %v2641 = vld [vmem:[%s1636 + $0x60] sm:$0xe]
      %v2642 = vld [vmem:[%s1636 + $0x6c] sm:$0xe]
      %v2643 = vld [vmem:[%s1636 + $0x78] sm:$0xe]
      %v2644 = vld [vmem:[%s1636 + $0x84] sm:$0xe]
      %v2645 = vld [vmem:[%s1636 + $0x90] sm:$0xe]
      %v2646 = vld [vmem:[%s1636 + $0x9c] sm:$0xe]
      %v2647 = vld [vmem:[%s1636 + $0xa8] sm:$0xe]
      %v2648 = vld [vmem:[%s1636 + $0xb4] sm:$0xe]
      %v2697 = vrot.slane %v2633, 5
      %v2698 = vrot.slane %v2697, 4
      %v2699 = vrot.slane %v1952, 5
      %v2700 = vsel %vm1270, %v2698, %v2699
      %v2701 = vrot.slane %v2699, 4
      %v2702 = vrot.slane %v1953, 5
      %v2703 = vsel %vm1270, %v2701, %v2702
      %v2704 = vrot.slane %v2634, 5
      %v2705 = vrot.slane %v2704, 4
      %v2706 = vrot.slane %v1955, 5
      %v2707 = vsel %vm1270, %v2705, %v2706
      %v2708 = vrot.slane %v2706, 4
      %v2709 = vrot.slane %v1956, 5
      %v2710 = vsel %vm1270, %v2708, %v2709
      %v2711 = vrot.slane %v2635, 5
      %v2712 = vrot.slane %v2711, 4
      %v2713 = vrot.slane %v1958, 5
      %v2714 = vsel %vm1270, %v2712, %v2713
      %v2715 = vrot.slane %v2713, 4
      %v2716 = vrot.slane %v1959, 5
      %v2717 = vsel %vm1270, %v2715, %v2716
      %v2718 = vrot.slane %v2636, 5
      %v2719 = vrot.slane %v2718, 4
      %v2720 = vrot.slane %v1961, 5
      %v2721 = vsel %vm1270, %v2719, %v2720
      %v2722 = vrot.slane %v2720, 4
      %v2723 = vrot.slane %v1962, 5
      %v2724 = vsel %vm1270, %v2722, %v2723
      %v2725 = vrot.slane %v2637, 5
      %v2726 = vrot.slane %v2725, 4
      %v2727 = vrot.slane %v1964, 5
      %v2728 = vsel %vm1270, %v2726, %v2727
      %v2729 = vrot.slane %v2727, 4
      %v2730 = vrot.slane %v1965, 5
      %v2731 = vsel %vm1270, %v2729, %v2730
      %v2732 = vrot.slane %v2638, 5
      %v2733 = vrot.slane %v2732, 4
      %v2734 = vrot.slane %v1967, 5
      %v2735 = vsel %vm1270, %v2733, %v2734
      %v2736 = vrot.slane %v2734, 4
      %v2737 = vrot.slane %v1968, 5
      %v2738 = vsel %vm1270, %v2736, %v2737
      %v2739 = vrot.slane %v2639, 5
      %v2740 = vrot.slane %v2739, 4
      %v2741 = vrot.slane %v1970, 5
      %v2742 = vsel %vm1270, %v2740, %v2741
      %v2743 = vrot.slane %v2741, 4
      %v2744 = vrot.slane %v1971, 5
      %v2745 = vsel %vm1270, %v2743, %v2744
      %v2746 = vrot.slane %v2640, 5
      %v2747 = vrot.slane %v2746, 4
      %v2748 = vrot.slane %v1973, 5
      %v2749 = vsel %vm1270, %v2747, %v2748
      %v2750 = vrot.slane %v2748, 4
      %v2751 = vrot.slane %v1974, 5
      %v2752 = vsel %vm1270, %v2750, %v2751
      %v2753 = vrot.slane %v2641, 5
      %v2754 = vrot.slane %v2753, 4
      %v2755 = vrot.slane %v1976, 5
      %v2756 = vsel %vm1270, %v2754, %v2755
      %v2757 = vrot.slane %v2755, 4
      %v2758 = vrot.slane %v1977, 5
      %v2759 = vsel %vm1270, %v2757, %v2758
      %v2760 = vrot.slane %v2642, 5
      %v2761 = vrot.slane %v2760, 4
      %v2762 = vrot.slane %v1979, 5
      %v2763 = vsel %vm1270, %v2761, %v2762
      %v2764 = vrot.slane %v2762, 4
      %v2765 = vrot.slane %v1980, 5
      %v2766 = vsel %vm1270, %v2764, %v2765
      %v2767 = vrot.slane %v2643, 5
      %v2768 = vrot.slane %v2767, 4
      %v2769 = vrot.slane %v1982, 5
      %v2770 = vsel %vm1270, %v2768, %v2769
      %v2771 = vrot.slane %v2769, 4
      %v2772 = vrot.slane %v1983, 5
      %v2773 = vsel %vm1270, %v2771, %v2772
      %v2774 = vrot.slane %v2644, 5
      %v2775 = vrot.slane %v2774, 4
      %v2776 = vrot.slane %v1985, 5
      %v2777 = vsel %vm1270, %v2775, %v2776
      %v2778 = vrot.slane %v2776, 4
      %v2779 = vrot.slane %v1986, 5
      %v2780 = vsel %vm1270, %v2778, %v2779
      %v2781 = vrot.slane %v2645, 5
      %v2782 = vrot.slane %v2781, 4
      %v2783 = vrot.slane %v1988, 5
      %v2784 = vsel %vm1270, %v2782, %v2783
      %v2785 = vrot.slane %v2783, 4
      %v2786 = vrot.slane %v1989, 5
      %v2787 = vsel %vm1270, %v2785, %v2786
      %v2788 = vrot.slane %v2646, 5
      %v2789 = vrot.slane %v2788, 4
      %v2790 = vrot.slane %v1991, 5
      %v2791 = vsel %vm1270, %v2789, %v2790
      %v2792 = vrot.slane %v2790, 4
      %v2793 = vrot.slane %v1992, 5
      %v2794 = vsel %vm1270, %v2792, %v2793
      %v2795 = vrot.slane %v2647, 5
      %v2796 = vrot.slane %v2795, 4
      %v2797 = vrot.slane %v1994, 5
      %v2798 = vsel %vm1270, %v2796, %v2797
      %v2799 = vrot.slane %v2797, 4
      %v2800 = vrot.slane %v1995, 5
      %v2801 = vsel %vm1270, %v2799, %v2800
      %v2802 = vrot.slane %v2648, 5
      %v2803 = vrot.slane %v2802, 4
      %v2804 = vrot.slane %v1997, 5
      %v2805 = vsel %vm1270, %v2803, %v2804
      %v2806 = vrot.slane %v2804, 4
      %v2807 = vrot.slane %v1998, 5
      %v2808 = vsel %vm1270, %v2806, %v2807
      %s2809 = scalar_lea.vmem %s1, 160
      %v2810 = vld [vmem:[%s2809] sm:$0xf]
      %v2811 = vld [vmem:[%s2809 + $0x4] sm:$0xf]
      %v2812 = vld [vmem:[%s2809 + $0x8] sm:$0xf]
      %v2813 = vld [vmem:[%s2809 + $0xc] sm:$0xf]
      %v2814 = vld [vmem:[%s2809 + $0x10] sm:$0xf]
      %v2815 = vld [vmem:[%s2809 + $0x14] sm:$0xf]
      %v2816 = vld [vmem:[%s2809 + $0x18] sm:$0xf]
      %v2817 = vld [vmem:[%s2809 + $0x1c] sm:$0xf]
      %v2818 = vunpack.c.l.b16 %v2700
      %v2819 = vunpack.c.l.b16 %v2703
      %v2820 = vunpack.c.l.b16 %v2707
      %v2821 = vunpack.c.l.b16 %v2710
      %v2822 = vunpack.c.l.b16 %v2714
      %v2823 = vunpack.c.l.b16 %v2717
      %v2824 = vunpack.c.l.b16 %v2721
      %v2825 = vunpack.c.l.b16 %v2724
      %v2826 = vunpack.c.l.b16 %v2728
      %v2827 = vunpack.c.l.b16 %v2731
      %v2828 = vunpack.c.l.b16 %v2735
      %v2829 = vunpack.c.l.b16 %v2738
      %v2830 = vunpack.c.l.b16 %v2742
      %v2831 = vunpack.c.l.b16 %v2745
      %v2832 = vunpack.c.l.b16 %v2749
      %v2833 = vunpack.c.l.b16 %v2752
      %v2834 = vunpack.c.l.b16 %v2756
      %v2835 = vunpack.c.l.b16 %v2759
      %v2836 = vunpack.c.l.b16 %v2763
      %v2837 = vunpack.c.l.b16 %v2766
      %v2838 = vunpack.c.l.b16 %v2770
      %v2839 = vunpack.c.l.b16 %v2773
      %v2840 = vunpack.c.l.b16 %v2777
      %v2841 = vunpack.c.l.b16 %v2780
      %v2842 = vunpack.c.l.b16 %v2784
      %v2843 = vunpack.c.l.b16 %v2787
      %v2844 = vunpack.c.l.b16 %v2791
      %v2845 = vunpack.c.l.b16 %v2794
      %v2846 = vunpack.c.l.b16 %v2798
      %v2847 = vunpack.c.l.b16 %v2801
      %v2848 = vunpack.c.l.b16 %v2805
      %v2849 = vunpack.c.l.b16 %v2808
      %v2850 = vpack.c.b16 %v2819, %v2818
      %v2851 = vpack.c.b16 %v2821, %v2820
      %v2852 = vpack.c.b16 %v2823, %v2822
      %v2853 = vpack.c.b16 %v2825, %v2824
      %v2854 = vpack.c.b16 %v2827, %v2826
      %v2855 = vpack.c.b16 %v2829, %v2828
      %v2856 = vpack.c.b16 %v2831, %v2830
      %v2857 = vpack.c.b16 %v2833, %v2832
      %v2858 = vpack.c.b16 %v2835, %v2834
      %v2859 = vpack.c.b16 %v2837, %v2836
      %v2860 = vpack.c.b16 %v2839, %v2838
      %v2861 = vpack.c.b16 %v2841, %v2840
      %v2862 = vpack.c.b16 %v2843, %v2842
      %v2863 = vpack.c.b16 %v2845, %v2844
      %v2864 = vpack.c.b16 %v2847, %v2846
      %v2865 = vpack.c.b16 %v2849, %v2848
      %v2874 = vunpack.c.l.b16 %v2810
      %v2875 = vunpack.c.l.b16 %v2811
      %v2876 = vunpack.c.l.b16 %v2812
      %v2877 = vunpack.c.l.b16 %v2813
      %v2878 = vunpack.c.l.b16 %v2814
      %v2879 = vunpack.c.l.b16 %v2815
      %v2880 = vunpack.c.l.b16 %v2816
      %v2881 = vunpack.c.l.b16 %v2817
      %v2882 = vpack.c.b16 %v2875, %v2874
      %v2883 = vpack.c.b16 %v2877, %v2876
      %v2884 = vpack.c.b16 %v2879, %v2878
      %v2885 = vpack.c.b16 %v2881, %v2880
      %v2891 = vsel %vm349, %v2850, 0
      %v2894 = vsel %vm349, %v2851, 0
      %v2897 = vsel %vm349, %v2852, 0
      %v2900 = vsel %vm349, %v2853, 0
      %v2903 = vsel %vm349, %v2854, 0
      %v2906 = vsel %vm349, %v2855, 0
      %v2909 = vsel %vm349, %v2856, 0
      %v2912 = vsel %vm349, %v2857, 0
      %v2915 = vsel %vm349, %v2858, 0
      %v2918 = vsel %vm349, %v2859, 0
      %v2921 = vsel %vm349, %v2860, 0
      %v2924 = vsel %vm349, %v2861, 0
      %v2927 = vsel %vm349, %v2862, 0
      %v2930 = vsel %vm349, %v2863, 0
      %v2933 = vsel %vm349, %v2864, 0
      %v2936 = vsel %vm349, %v2865, 0
      %2938 = vmatpush.bf16.msra.mxu0 0
      %2939 = vmatpush.bf16.msra.mxu0 0
      %2940 = vmatpush.bf16.msra.mxu0 0
      %2941 = vmatpush.bf16.msra.mxu0 0
      %2942 = vmatpush.bf16.msra.mxu0 %v2885
      %2943 = vmatpush.bf16.msra.mxu0 %v2884
      %2944 = vmatpush.bf16.msra.mxu0 %v2883
      %2945 = vmatpush.bf16.msra.mxu0 %v2882
      %2946 = vmatmul.bf16.gmra.mxu0 %v2891
      %v2947 = vpop.f32.mrf.mxu0
      %v2948 = vadd.f32 0.0, %v2947
      %v2949 = vpop.f32.mrf.mxu0
      %v2950 = vadd.f32 0.0, %v2949
      %2951 = vmatmul.bf16.gmra.mxu0 %v2894
      %v2952 = vpop.f32.mrf.mxu0
      %v2953 = vadd.f32 0.0, %v2952
      %v2954 = vpop.f32.mrf.mxu0
      %v2955 = vadd.f32 0.0, %v2954
      %2956 = vmatmul.bf16.gmra.mxu0 %v2897
      %v2957 = vpop.f32.mrf.mxu0
      %v2958 = vadd.f32 0.0, %v2957
      %v2959 = vpop.f32.mrf.mxu0
      %v2960 = vadd.f32 0.0, %v2959
      %2961 = vmatmul.bf16.gmra.mxu0 %v2900
      %v2962 = vpop.f32.mrf.mxu0
      %v2963 = vadd.f32 0.0, %v2962
      %v2964 = vpop.f32.mrf.mxu0
      %v2965 = vadd.f32 0.0, %v2964
      %2966 = vmatmul.bf16.gmra.mxu0 %v2903
      %v2967 = vpop.f32.mrf.mxu0
      %v2968 = vadd.f32 0.0, %v2967
      %v2969 = vpop.f32.mrf.mxu0
      %v2970 = vadd.f32 0.0, %v2969
      %2971 = vmatmul.bf16.gmra.mxu0 %v2906
      %v2972 = vpop.f32.mrf.mxu0
      %v2973 = vadd.f32 0.0, %v2972
      %v2974 = vpop.f32.mrf.mxu0
      %v2975 = vadd.f32 0.0, %v2974
      %2976 = vmatmul.bf16.gmra.mxu0 %v2909
      %v2977 = vpop.f32.mrf.mxu0
      %v2978 = vadd.f32 0.0, %v2977
      %v2979 = vpop.f32.mrf.mxu0
      %v2980 = vadd.f32 0.0, %v2979
      %2981 = vmatmul.bf16.gmra.mxu0 %v2912
      %v2982 = vpop.f32.mrf.mxu0
      %v2983 = vadd.f32 0.0, %v2982
      %v2984 = vpop.f32.mrf.mxu0
      %v2985 = vadd.f32 0.0, %v2984
      %2986 = vmatmul.bf16.gmra.mxu0 %v2915
      %v2987 = vpop.f32.mrf.mxu0
      %v2988 = vadd.f32 0.0, %v2987
      %v2989 = vpop.f32.mrf.mxu0
      %v2990 = vadd.f32 0.0, %v2989
      %2991 = vmatmul.bf16.gmra.mxu0 %v2918
      %v2992 = vpop.f32.mrf.mxu0
      %v2993 = vadd.f32 0.0, %v2992
      %v2994 = vpop.f32.mrf.mxu0
      %v2995 = vadd.f32 0.0, %v2994
      %2996 = vmatmul.bf16.gmra.mxu0 %v2921
      %v2997 = vpop.f32.mrf.mxu0
      %v2998 = vadd.f32 0.0, %v2997
      %v2999 = vpop.f32.mrf.mxu0
      %v3000 = vadd.f32 0.0, %v2999
      %3001 = vmatmul.bf16.gmra.mxu0 %v2924
      %v3002 = vpop.f32.mrf.mxu0
      %v3003 = vadd.f32 0.0, %v3002
      %v3004 = vpop.f32.mrf.mxu0
      %v3005 = vadd.f32 0.0, %v3004
      %3006 = vmatmul.bf16.gmra.mxu0 %v2927
      %v3007 = vpop.f32.mrf.mxu0
      %v3008 = vadd.f32 0.0, %v3007
      %v3009 = vpop.f32.mrf.mxu0
      %v3010 = vadd.f32 0.0, %v3009
      %3011 = vmatmul.bf16.gmra.mxu0 %v2930
      %v3012 = vpop.f32.mrf.mxu0
      %v3013 = vadd.f32 0.0, %v3012
      %v3014 = vpop.f32.mrf.mxu0
      %v3015 = vadd.f32 0.0, %v3014
      %3016 = vmatmul.bf16.gmra.mxu0 %v2933
      %v3017 = vpop.f32.mrf.mxu0
      %v3018 = vadd.f32 0.0, %v3017
      %v3019 = vpop.f32.mrf.mxu0
      %v3020 = vadd.f32 0.0, %v3019
      %3021 = vmatmul.bf16.gmra.mxu0 %v2936
      %v3022 = vpop.f32.mrf.mxu0
      %v3023 = vadd.f32 0.0, %v3022
      %v3024 = vpop.f32.mrf.mxu0
      %v3025 = vadd.f32 0.0, %v3024
      %3026 = vdwg.mxu0
      %v3027 = vadd.f32 %v2601, %v2948
      %v3028 = vadd.f32 %v2602, %v2950
      %v3029 = vadd.f32 %v2603, %v2953
      %v3030 = vadd.f32 %v2604, %v2955
      %v3031 = vadd.f32 %v2605, %v2958
      %v3032 = vadd.f32 %v2606, %v2960
      %v3033 = vadd.f32 %v2607, %v2963
      %v3034 = vadd.f32 %v2608, %v2965
      %v3035 = vadd.f32 %v2609, %v2968
      %v3036 = vadd.f32 %v2610, %v2970
      %v3037 = vadd.f32 %v2611, %v2973
      %v3038 = vadd.f32 %v2612, %v2975
      %v3039 = vadd.f32 %v2613, %v2978
      %v3040 = vadd.f32 %v2614, %v2980
      %v3041 = vadd.f32 %v2615, %v2983
      %v3042 = vadd.f32 %v2616, %v2985
      %v3043 = vadd.f32 %v2617, %v2988
      %v3044 = vadd.f32 %v2618, %v2990
      %v3045 = vadd.f32 %v2619, %v2993
      %v3046 = vadd.f32 %v2620, %v2995
      %v3047 = vadd.f32 %v2621, %v2998
      %v3048 = vadd.f32 %v2622, %v3000
      %v3049 = vadd.f32 %v2623, %v3003
      %v3050 = vadd.f32 %v2624, %v3005
      %v3051 = vadd.f32 %v2625, %v3008
      %v3052 = vadd.f32 %v2626, %v3010
      %v3053 = vadd.f32 %v2627, %v3013
      %v3054 = vadd.f32 %v2628, %v3015
      %v3055 = vadd.f32 %v2629, %v3018
      %v3056 = vadd.f32 %v2630, %v3020
      %v3057 = vadd.f32 %v2631, %v3023
      %v3058 = vadd.f32 %v2632, %v3025
      %s3059 = sadd.s32 %s197, 2
      %s3060 = smul.u32 %s3059, 3
      %s3061 = smul.addr %s3060, 4
      %s3062 = scalar_lea.vmem %s184, %s3061
      %v3063 = vld [vmem:[%s3062] sm:$0xf]
      %v3064 = vld [vmem:[%s3062 + $0x4] sm:$0xf]
      %v3065 = vld [vmem:[%s3062 + $0xc] sm:$0xf]
      %v3066 = vld [vmem:[%s3062 + $0x10] sm:$0xf]
      %v3067 = vld [vmem:[%s3062 + $0x18] sm:$0xf]
      %v3068 = vld [vmem:[%s3062 + $0x1c] sm:$0xf]
      %v3069 = vld [vmem:[%s3062 + $0x24] sm:$0xf]
      %v3070 = vld [vmem:[%s3062 + $0x28] sm:$0xf]
      %v3071 = vld [vmem:[%s3062 + $0x30] sm:$0xf]
      %v3072 = vld [vmem:[%s3062 + $0x34] sm:$0xf]
      %v3073 = vld [vmem:[%s3062 + $0x3c] sm:$0xf]
      %v3074 = vld [vmem:[%s3062 + $0x40] sm:$0xf]
      %v3075 = vld [vmem:[%s3062 + $0x48] sm:$0xf]
      %v3076 = vld [vmem:[%s3062 + $0x4c] sm:$0xf]
      %v3077 = vld [vmem:[%s3062 + $0x54] sm:$0xf]
      %v3078 = vld [vmem:[%s3062 + $0x58] sm:$0xf]
      %v3079 = vld [vmem:[%s3062 + $0x60] sm:$0xf]
      %v3080 = vld [vmem:[%s3062 + $0x64] sm:$0xf]
      %v3081 = vld [vmem:[%s3062 + $0x6c] sm:$0xf]
      %v3082 = vld [vmem:[%s3062 + $0x70] sm:$0xf]
      %v3083 = vld [vmem:[%s3062 + $0x78] sm:$0xf]
      %v3084 = vld [vmem:[%s3062 + $0x7c] sm:$0xf]
      %v3085 = vld [vmem:[%s3062 + $0x84] sm:$0xf]
      %v3086 = vld [vmem:[%s3062 + $0x88] sm:$0xf]
      %v3087 = vld [vmem:[%s3062 + $0x90] sm:$0xf]
      %v3088 = vld [vmem:[%s3062 + $0x94] sm:$0xf]
      %v3089 = vld [vmem:[%s3062 + $0x9c] sm:$0xf]
      %v3090 = vld [vmem:[%s3062 + $0xa0] sm:$0xf]
      %v3091 = vld [vmem:[%s3062 + $0xa8] sm:$0xf]
      %v3092 = vld [vmem:[%s3062 + $0xac] sm:$0xf]
      %v3093 = vld [vmem:[%s3062 + $0xb4] sm:$0xf]
      %v3094 = vld [vmem:[%s3062 + $0xb8] sm:$0xf]
      %s3095 = scalar_lea.vmem %s1, 192
      %v3096 = vld [vmem:[%s3095] sm:$0xf]
      %v3097 = vld [vmem:[%s3095 + $0x4] sm:$0xf]
      %v3098 = vld [vmem:[%s3095 + $0x8] sm:$0xf]
      %v3099 = vld [vmem:[%s3095 + $0xc] sm:$0xf]
      %v3100 = vld [vmem:[%s3095 + $0x10] sm:$0xf]
      %v3101 = vld [vmem:[%s3095 + $0x14] sm:$0xf]
      %v3102 = vld [vmem:[%s3095 + $0x18] sm:$0xf]
      %v3103 = vld [vmem:[%s3095 + $0x1c] sm:$0xf]
      %v3136 = vunpack.c.l.b16 %v3063
      %v3137 = vunpack.c.l.b16 %v3064
      %v3138 = vunpack.c.l.b16 %v3065
      %v3139 = vunpack.c.l.b16 %v3066
      %v3140 = vunpack.c.l.b16 %v3067
      %v3141 = vunpack.c.l.b16 %v3068
      %v3142 = vunpack.c.l.b16 %v3069
      %v3143 = vunpack.c.l.b16 %v3070
      %v3144 = vunpack.c.l.b16 %v3071
      %v3145 = vunpack.c.l.b16 %v3072
      %v3146 = vunpack.c.l.b16 %v3073
      %v3147 = vunpack.c.l.b16 %v3074
      %v3148 = vunpack.c.l.b16 %v3075
      %v3149 = vunpack.c.l.b16 %v3076
      %v3150 = vunpack.c.l.b16 %v3077
      %v3151 = vunpack.c.l.b16 %v3078
      %v3152 = vunpack.c.l.b16 %v3079
      %v3153 = vunpack.c.l.b16 %v3080
      %v3154 = vunpack.c.l.b16 %v3081
      %v3155 = vunpack.c.l.b16 %v3082
      %v3156 = vunpack.c.l.b16 %v3083
      %v3157 = vunpack.c.l.b16 %v3084
      %v3158 = vunpack.c.l.b16 %v3085
      %v3159 = vunpack.c.l.b16 %v3086
      %v3160 = vunpack.c.l.b16 %v3087
      %v3161 = vunpack.c.l.b16 %v3088
      %v3162 = vunpack.c.l.b16 %v3089
      %v3163 = vunpack.c.l.b16 %v3090
      %v3164 = vunpack.c.l.b16 %v3091
      %v3165 = vunpack.c.l.b16 %v3092
      %v3166 = vunpack.c.l.b16 %v3093
      %v3167 = vunpack.c.l.b16 %v3094
      %v3168 = vpack.c.b16 %v3137, %v3136
      %v3169 = vpack.c.b16 %v3139, %v3138
      %v3170 = vpack.c.b16 %v3141, %v3140
      %v3171 = vpack.c.b16 %v3143, %v3142
      %v3172 = vpack.c.b16 %v3145, %v3144
      %v3173 = vpack.c.b16 %v3147, %v3146
      %v3174 = vpack.c.b16 %v3149, %v3148
      %v3175 = vpack.c.b16 %v3151, %v3150
      %v3176 = vpack.c.b16 %v3153, %v3152
      %v3177 = vpack.c.b16 %v3155, %v3154
      %v3178 = vpack.c.b16 %v3157, %v3156
      %v3179 = vpack.c.b16 %v3159, %v3158
      %v3180 = vpack.c.b16 %v3161, %v3160
      %v3181 = vpack.c.b16 %v3163, %v3162
      %v3182 = vpack.c.b16 %v3165, %v3164
      %v3183 = vpack.c.b16 %v3167, %v3166
      %v3192 = vunpack.c.l.b16 %v3096
      %v3193 = vunpack.c.l.b16 %v3097
      %v3194 = vunpack.c.l.b16 %v3098
      %v3195 = vunpack.c.l.b16 %v3099
      %v3196 = vunpack.c.l.b16 %v3100
      %v3197 = vunpack.c.l.b16 %v3101
      %v3198 = vunpack.c.l.b16 %v3102
      %v3199 = vunpack.c.l.b16 %v3103
      %v3200 = vpack.c.b16 %v3193, %v3192
      %v3201 = vpack.c.b16 %v3195, %v3194
      %v3202 = vpack.c.b16 %v3197, %v3196
      %v3203 = vpack.c.b16 %v3199, %v3198
      %v3209 = vsel %vm349, %v3168, 0
      %v3212 = vsel %vm349, %v3169, 0
      %v3215 = vsel %vm349, %v3170, 0
      %v3218 = vsel %vm349, %v3171, 0
      %v3221 = vsel %vm349, %v3172, 0
      %v3224 = vsel %vm349, %v3173, 0
      %v3227 = vsel %vm349, %v3174, 0
      %v3230 = vsel %vm349, %v3175, 0
      %v3233 = vsel %vm349, %v3176, 0
      %v3236 = vsel %vm349, %v3177, 0
      %v3239 = vsel %vm349, %v3178, 0
      %v3242 = vsel %vm349, %v3179, 0
      %v3245 = vsel %vm349, %v3180, 0
      %v3248 = vsel %vm349, %v3181, 0
      %v3251 = vsel %vm349, %v3182, 0
      %v3254 = vsel %vm349, %v3183, 0
      %3256 = vmatpush.bf16.msra.mxu0 0
      %3257 = vmatpush.bf16.msra.mxu0 0
      %3258 = vmatpush.bf16.msra.mxu0 0
      %3259 = vmatpush.bf16.msra.mxu0 0
      %3260 = vmatpush.bf16.msra.mxu0 %v3203
      %3261 = vmatpush.bf16.msra.mxu0 %v3202
      %3262 = vmatpush.bf16.msra.mxu0 %v3201
      %3263 = vmatpush.bf16.msra.mxu0 %v3200
      %3264 = vmatmul.bf16.gmra.mxu0 %v3209
      %v3265 = vpop.f32.mrf.mxu0
      %v3266 = vadd.f32 0.0, %v3265
      %v3267 = vpop.f32.mrf.mxu0
      %v3268 = vadd.f32 0.0, %v3267
      %3269 = vmatmul.bf16.gmra.mxu0 %v3212
      %v3270 = vpop.f32.mrf.mxu0
      %v3271 = vadd.f32 0.0, %v3270
      %v3272 = vpop.f32.mrf.mxu0
      %v3273 = vadd.f32 0.0, %v3272
      %3274 = vmatmul.bf16.gmra.mxu0 %v3215
      %v3275 = vpop.f32.mrf.mxu0
      %v3276 = vadd.f32 0.0, %v3275
      %v3277 = vpop.f32.mrf.mxu0
      %v3278 = vadd.f32 0.0, %v3277
      %3279 = vmatmul.bf16.gmra.mxu0 %v3218
      %v3280 = vpop.f32.mrf.mxu0
      %v3281 = vadd.f32 0.0, %v3280
      %v3282 = vpop.f32.mrf.mxu0
      %v3283 = vadd.f32 0.0, %v3282
      %3284 = vmatmul.bf16.gmra.mxu0 %v3221
      %v3285 = vpop.f32.mrf.mxu0
      %v3286 = vadd.f32 0.0, %v3285
      %v3287 = vpop.f32.mrf.mxu0
      %v3288 = vadd.f32 0.0, %v3287
      %3289 = vmatmul.bf16.gmra.mxu0 %v3224
      %v3290 = vpop.f32.mrf.mxu0
      %v3291 = vadd.f32 0.0, %v3290
      %v3292 = vpop.f32.mrf.mxu0
      %v3293 = vadd.f32 0.0, %v3292
      %3294 = vmatmul.bf16.gmra.mxu0 %v3227
      %v3295 = vpop.f32.mrf.mxu0
      %v3296 = vadd.f32 0.0, %v3295
      %v3297 = vpop.f32.mrf.mxu0
      %v3298 = vadd.f32 0.0, %v3297
      %3299 = vmatmul.bf16.gmra.mxu0 %v3230
      %v3300 = vpop.f32.mrf.mxu0
      %v3301 = vadd.f32 0.0, %v3300
      %v3302 = vpop.f32.mrf.mxu0
      %v3303 = vadd.f32 0.0, %v3302
      %3304 = vmatmul.bf16.gmra.mxu0 %v3233
      %v3305 = vpop.f32.mrf.mxu0
      %v3306 = vadd.f32 0.0, %v3305
      %v3307 = vpop.f32.mrf.mxu0
      %v3308 = vadd.f32 0.0, %v3307
      %3309 = vmatmul.bf16.gmra.mxu0 %v3236
      %v3310 = vpop.f32.mrf.mxu0
      %v3311 = vadd.f32 0.0, %v3310
      %v3312 = vpop.f32.mrf.mxu0
      %v3313 = vadd.f32 0.0, %v3312
      %3314 = vmatmul.bf16.gmra.mxu0 %v3239
      %v3315 = vpop.f32.mrf.mxu0
      %v3316 = vadd.f32 0.0, %v3315
      %v3317 = vpop.f32.mrf.mxu0
      %v3318 = vadd.f32 0.0, %v3317
      %3319 = vmatmul.bf16.gmra.mxu0 %v3242
      %v3320 = vpop.f32.mrf.mxu0
      %v3321 = vadd.f32 0.0, %v3320
      %v3322 = vpop.f32.mrf.mxu0
      %v3323 = vadd.f32 0.0, %v3322
      %3324 = vmatmul.bf16.gmra.mxu0 %v3245
      %v3325 = vpop.f32.mrf.mxu0
      %v3326 = vadd.f32 0.0, %v3325
      %v3327 = vpop.f32.mrf.mxu0
      %v3328 = vadd.f32 0.0, %v3327
      %3329 = vmatmul.bf16.gmra.mxu0 %v3248
      %v3330 = vpop.f32.mrf.mxu0
      %v3331 = vadd.f32 0.0, %v3330
      %v3332 = vpop.f32.mrf.mxu0
      %v3333 = vadd.f32 0.0, %v3332
      %3334 = vmatmul.bf16.gmra.mxu0 %v3251
      %v3335 = vpop.f32.mrf.mxu0
      %v3336 = vadd.f32 0.0, %v3335
      %v3337 = vpop.f32.mrf.mxu0
      %v3338 = vadd.f32 0.0, %v3337
      %3339 = vmatmul.bf16.gmra.mxu0 %v3254
      %v3340 = vpop.f32.mrf.mxu0
      %v3341 = vadd.f32 0.0, %v3340
      %v3342 = vpop.f32.mrf.mxu0
      %v3343 = vadd.f32 0.0, %v3342
      %3344 = vdwg.mxu0
      %v3345 = vadd.f32 %v3027, %v3266
      %v3346 = vadd.f32 %v3028, %v3268
      %v3347 = vadd.f32 %v3029, %v3271
      %v3348 = vadd.f32 %v3030, %v3273
      %v3349 = vadd.f32 %v3031, %v3276
      %v3350 = vadd.f32 %v3032, %v3278
      %v3351 = vadd.f32 %v3033, %v3281
      %v3352 = vadd.f32 %v3034, %v3283
      %v3353 = vadd.f32 %v3035, %v3286
      %v3354 = vadd.f32 %v3036, %v3288
      %v3355 = vadd.f32 %v3037, %v3291
      %v3356 = vadd.f32 %v3038, %v3293
      %v3357 = vadd.f32 %v3039, %v3296
      %v3358 = vadd.f32 %v3040, %v3298
      %v3359 = vadd.f32 %v3041, %v3301
      %v3360 = vadd.f32 %v3042, %v3303
      %v3361 = vadd.f32 %v3043, %v3306
      %v3362 = vadd.f32 %v3044, %v3308
      %v3363 = vadd.f32 %v3045, %v3311
      %v3364 = vadd.f32 %v3046, %v3313
      %v3365 = vadd.f32 %v3047, %v3316
      %v3366 = vadd.f32 %v3048, %v3318
      %v3367 = vadd.f32 %v3049, %v3321
      %v3368 = vadd.f32 %v3050, %v3323
      %v3369 = vadd.f32 %v3051, %v3326
      %v3370 = vadd.f32 %v3052, %v3328
      %v3371 = vadd.f32 %v3053, %v3331
      %v3372 = vadd.f32 %v3054, %v3333
      %v3373 = vadd.f32 %v3055, %v3336
      %v3374 = vadd.f32 %v3056, %v3338
      %v3375 = vadd.f32 %v3057, %v3341
      %v3376 = vadd.f32 %v3058, %v3343
      %v3377 = vld [vmem:[%s3062] sm:$0xf]
      %v3378 = vld [vmem:[%s3062 + $0x4] sm:$0xf]
      %v3379 = vld [vmem:[%s3062 + $0x8] sm:$0x1]
      %v3380 = vld [vmem:[%s3062 + $0xc] sm:$0xf]
      %v3381 = vld [vmem:[%s3062 + $0x10] sm:$0xf]
      %v3382 = vld [vmem:[%s3062 + $0x14] sm:$0x1]
      %v3383 = vld [vmem:[%s3062 + $0x18] sm:$0xf]
      %v3384 = vld [vmem:[%s3062 + $0x1c] sm:$0xf]
      %v3385 = vld [vmem:[%s3062 + $0x20] sm:$0x1]
      %v3386 = vld [vmem:[%s3062 + $0x24] sm:$0xf]
      %v3387 = vld [vmem:[%s3062 + $0x28] sm:$0xf]
      %v3388 = vld [vmem:[%s3062 + $0x2c] sm:$0x1]
      %v3389 = vld [vmem:[%s3062 + $0x30] sm:$0xf]
      %v3390 = vld [vmem:[%s3062 + $0x34] sm:$0xf]
      %v3391 = vld [vmem:[%s3062 + $0x38] sm:$0x1]
      %v3392 = vld [vmem:[%s3062 + $0x3c] sm:$0xf]
      %v3393 = vld [vmem:[%s3062 + $0x40] sm:$0xf]
      %v3394 = vld [vmem:[%s3062 + $0x44] sm:$0x1]
      %v3395 = vld [vmem:[%s3062 + $0x48] sm:$0xf]
      %v3396 = vld [vmem:[%s3062 + $0x4c] sm:$0xf]
      %v3397 = vld [vmem:[%s3062 + $0x50] sm:$0x1]
      %v3398 = vld [vmem:[%s3062 + $0x54] sm:$0xf]
      %v3399 = vld [vmem:[%s3062 + $0x58] sm:$0xf]
      %v3400 = vld [vmem:[%s3062 + $0x5c] sm:$0x1]
      %v3401 = vld [vmem:[%s3062 + $0x60] sm:$0xf]
      %v3402 = vld [vmem:[%s3062 + $0x64] sm:$0xf]
      %v3403 = vld [vmem:[%s3062 + $0x68] sm:$0x1]
      %v3404 = vld [vmem:[%s3062 + $0x6c] sm:$0xf]
      %v3405 = vld [vmem:[%s3062 + $0x70] sm:$0xf]
      %v3406 = vld [vmem:[%s3062 + $0x74] sm:$0x1]
      %v3407 = vld [vmem:[%s3062 + $0x78] sm:$0xf]
      %v3408 = vld [vmem:[%s3062 + $0x7c] sm:$0xf]
      %v3409 = vld [vmem:[%s3062 + $0x80] sm:$0x1]
      %v3410 = vld [vmem:[%s3062 + $0x84] sm:$0xf]
      %v3411 = vld [vmem:[%s3062 + $0x88] sm:$0xf]
      %v3412 = vld [vmem:[%s3062 + $0x8c] sm:$0x1]
      %v3413 = vld [vmem:[%s3062 + $0x90] sm:$0xf]
      %v3414 = vld [vmem:[%s3062 + $0x94] sm:$0xf]
      %v3415 = vld [vmem:[%s3062 + $0x98] sm:$0x1]
      %v3416 = vld [vmem:[%s3062 + $0x9c] sm:$0xf]
      %v3417 = vld [vmem:[%s3062 + $0xa0] sm:$0xf]
      %v3418 = vld [vmem:[%s3062 + $0xa4] sm:$0x1]
      %v3419 = vld [vmem:[%s3062 + $0xa8] sm:$0xf]
      %v3420 = vld [vmem:[%s3062 + $0xac] sm:$0xf]
      %v3421 = vld [vmem:[%s3062 + $0xb0] sm:$0x1]
      %v3422 = vld [vmem:[%s3062 + $0xb4] sm:$0xf]
      %v3423 = vld [vmem:[%s3062 + $0xb8] sm:$0xf]
      %v3424 = vld [vmem:[%s3062 + $0xbc] sm:$0x1]
      %v3426 = vshrl.u32 %v3377, 16
      %v3428 = vrot.slane %v3426, 4
      %v3429 = vshll.u32 %v3377, 16
      %v3431 = vrot.slane %v3429, 5
      %v3432 = vor.u32 %v3428, %v3431
      %v3433 = vrot.slane %v3432, 4
      %v3435 = vshll.u32 %v3378, 16
      %v3437 = vrot.slane %v3435, 5
      %v3438 = vsel %vm569, %v3433, %v3437
      %v3439 = vshrl.u32 %v3378, 16
      %v3441 = vrot.slane %v3439, 4
      %v3442 = vor.u32 %v3441, %v3437
      %v3443 = vrot.slane %v3442, 4
      %v3445 = vshll.u32 %v3379, 16
      %v3447 = vrot.slane %v3445, 5
      %v3448 = vsel %vm569, %v3443, %v3447
      %v3450 = vshrl.u32 %v3380, 16
      %v3452 = vrot.slane %v3450, 4
      %v3453 = vshll.u32 %v3380, 16
      %v3455 = vrot.slane %v3453, 5
      %v3456 = vor.u32 %v3452, %v3455
      %v3457 = vrot.slane %v3456, 4
      %v3459 = vshll.u32 %v3381, 16
      %v3461 = vrot.slane %v3459, 5
      %v3462 = vsel %vm569, %v3457, %v3461
      %v3463 = vshrl.u32 %v3381, 16
      %v3465 = vrot.slane %v3463, 4
      %v3466 = vor.u32 %v3465, %v3461
      %v3467 = vrot.slane %v3466, 4
      %v3469 = vshll.u32 %v3382, 16
      %v3471 = vrot.slane %v3469, 5
      %v3472 = vsel %vm569, %v3467, %v3471
      %v3474 = vshrl.u32 %v3383, 16
      %v3476 = vrot.slane %v3474, 4
      %v3477 = vshll.u32 %v3383, 16
      %v3479 = vrot.slane %v3477, 5
      %v3480 = vor.u32 %v3476, %v3479
      %v3481 = vrot.slane %v3480, 4
      %v3483 = vshll.u32 %v3384, 16
      %v3485 = vrot.slane %v3483, 5
      %v3486 = vsel %vm569, %v3481, %v3485
      %v3487 = vshrl.u32 %v3384, 16
      %v3489 = vrot.slane %v3487, 4
      %v3490 = vor.u32 %v3489, %v3485
      %v3491 = vrot.slane %v3490, 4
      %v3493 = vshll.u32 %v3385, 16
      %v3495 = vrot.slane %v3493, 5
      %v3496 = vsel %vm569, %v3491, %v3495
      %v3498 = vshrl.u32 %v3386, 16
      %v3500 = vrot.slane %v3498, 4
      %v3501 = vshll.u32 %v3386, 16
      %v3503 = vrot.slane %v3501, 5
      %v3504 = vor.u32 %v3500, %v3503
      %v3505 = vrot.slane %v3504, 4
      %v3507 = vshll.u32 %v3387, 16
      %v3509 = vrot.slane %v3507, 5
      %v3510 = vsel %vm569, %v3505, %v3509
      %v3511 = vshrl.u32 %v3387, 16
      %v3513 = vrot.slane %v3511, 4
      %v3514 = vor.u32 %v3513, %v3509
      %v3515 = vrot.slane %v3514, 4
      %v3517 = vshll.u32 %v3388, 16
      %v3519 = vrot.slane %v3517, 5
      %v3520 = vsel %vm569, %v3515, %v3519
      %v3522 = vshrl.u32 %v3389, 16
      %v3524 = vrot.slane %v3522, 4
      %v3525 = vshll.u32 %v3389, 16
      %v3527 = vrot.slane %v3525, 5
      %v3528 = vor.u32 %v3524, %v3527
      %v3529 = vrot.slane %v3528, 4
      %v3531 = vshll.u32 %v3390, 16
      %v3533 = vrot.slane %v3531, 5
      %v3534 = vsel %vm569, %v3529, %v3533
      %v3535 = vshrl.u32 %v3390, 16
      %v3537 = vrot.slane %v3535, 4
      %v3538 = vor.u32 %v3537, %v3533
      %v3539 = vrot.slane %v3538, 4
      %v3541 = vshll.u32 %v3391, 16
      %v3543 = vrot.slane %v3541, 5
      %v3544 = vsel %vm569, %v3539, %v3543
      %v3546 = vshrl.u32 %v3392, 16
      %v3548 = vrot.slane %v3546, 4
      %v3549 = vshll.u32 %v3392, 16
      %v3551 = vrot.slane %v3549, 5
      %v3552 = vor.u32 %v3548, %v3551
      %v3553 = vrot.slane %v3552, 4
      %v3555 = vshll.u32 %v3393, 16
      %v3557 = vrot.slane %v3555, 5
      %v3558 = vsel %vm569, %v3553, %v3557
      %v3559 = vshrl.u32 %v3393, 16
      %v3561 = vrot.slane %v3559, 4
      %v3562 = vor.u32 %v3561, %v3557
      %v3563 = vrot.slane %v3562, 4
      %v3565 = vshll.u32 %v3394, 16
      %v3567 = vrot.slane %v3565, 5
      %v3568 = vsel %vm569, %v3563, %v3567
      %v3570 = vshrl.u32 %v3395, 16
      %v3572 = vrot.slane %v3570, 4
      %v3573 = vshll.u32 %v3395, 16
      %v3575 = vrot.slane %v3573, 5
      %v3576 = vor.u32 %v3572, %v3575
      %v3577 = vrot.slane %v3576, 4
      %v3579 = vshll.u32 %v3396, 16
      %v3581 = vrot.slane %v3579, 5
      %v3582 = vsel %vm569, %v3577, %v3581
      %v3583 = vshrl.u32 %v3396, 16
      %v3585 = vrot.slane %v3583, 4
      %v3586 = vor.u32 %v3585, %v3581
      %v3587 = vrot.slane %v3586, 4
      %v3589 = vshll.u32 %v3397, 16
      %v3591 = vrot.slane %v3589, 5
      %v3592 = vsel %vm569, %v3587, %v3591
      %v3594 = vshrl.u32 %v3398, 16
      %v3596 = vrot.slane %v3594, 4
      %v3597 = vshll.u32 %v3398, 16
      %v3599 = vrot.slane %v3597, 5
      %v3600 = vor.u32 %v3596, %v3599
      %v3601 = vrot.slane %v3600, 4
      %v3603 = vshll.u32 %v3399, 16
      %v3605 = vrot.slane %v3603, 5
      %v3606 = vsel %vm569, %v3601, %v3605
      %v3607 = vshrl.u32 %v3399, 16
      %v3609 = vrot.slane %v3607, 4
      %v3610 = vor.u32 %v3609, %v3605
      %v3611 = vrot.slane %v3610, 4
      %v3613 = vshll.u32 %v3400, 16
      %v3615 = vrot.slane %v3613, 5
      %v3616 = vsel %vm569, %v3611, %v3615
      %v3618 = vshrl.u32 %v3401, 16
      %v3620 = vrot.slane %v3618, 4
      %v3621 = vshll.u32 %v3401, 16
      %v3623 = vrot.slane %v3621, 5
      %v3624 = vor.u32 %v3620, %v3623
      %v3625 = vrot.slane %v3624, 4
      %v3627 = vshll.u32 %v3402, 16
      %v3629 = vrot.slane %v3627, 5
      %v3630 = vsel %vm569, %v3625, %v3629
      %v3631 = vshrl.u32 %v3402, 16
      %v3633 = vrot.slane %v3631, 4
      %v3634 = vor.u32 %v3633, %v3629
      %v3635 = vrot.slane %v3634, 4
      %v3637 = vshll.u32 %v3403, 16
      %v3639 = vrot.slane %v3637, 5
      %v3640 = vsel %vm569, %v3635, %v3639
      %v3642 = vshrl.u32 %v3404, 16
      %v3644 = vrot.slane %v3642, 4
      %v3645 = vshll.u32 %v3404, 16
      %v3647 = vrot.slane %v3645, 5
      %v3648 = vor.u32 %v3644, %v3647
      %v3649 = vrot.slane %v3648, 4
      %v3651 = vshll.u32 %v3405, 16
      %v3653 = vrot.slane %v3651, 5
      %v3654 = vsel %vm569, %v3649, %v3653
      %v3655 = vshrl.u32 %v3405, 16
      %v3657 = vrot.slane %v3655, 4
      %v3658 = vor.u32 %v3657, %v3653
      %v3659 = vrot.slane %v3658, 4
      %v3661 = vshll.u32 %v3406, 16
      %v3663 = vrot.slane %v3661, 5
      %v3664 = vsel %vm569, %v3659, %v3663
      %v3666 = vshrl.u32 %v3407, 16
      %v3668 = vrot.slane %v3666, 4
      %v3669 = vshll.u32 %v3407, 16
      %v3671 = vrot.slane %v3669, 5
      %v3672 = vor.u32 %v3668, %v3671
      %v3673 = vrot.slane %v3672, 4
      %v3675 = vshll.u32 %v3408, 16
      %v3677 = vrot.slane %v3675, 5
      %v3678 = vsel %vm569, %v3673, %v3677
      %v3679 = vshrl.u32 %v3408, 16
      %v3681 = vrot.slane %v3679, 4
      %v3682 = vor.u32 %v3681, %v3677
      %v3683 = vrot.slane %v3682, 4
      %v3685 = vshll.u32 %v3409, 16
      %v3687 = vrot.slane %v3685, 5
      %v3688 = vsel %vm569, %v3683, %v3687
      %v3690 = vshrl.u32 %v3410, 16
      %v3692 = vrot.slane %v3690, 4
      %v3693 = vshll.u32 %v3410, 16
      %v3695 = vrot.slane %v3693, 5
      %v3696 = vor.u32 %v3692, %v3695
      %v3697 = vrot.slane %v3696, 4
      %v3699 = vshll.u32 %v3411, 16
      %v3701 = vrot.slane %v3699, 5
      %v3702 = vsel %vm569, %v3697, %v3701
      %v3703 = vshrl.u32 %v3411, 16
      %v3705 = vrot.slane %v3703, 4
      %v3706 = vor.u32 %v3705, %v3701
      %v3707 = vrot.slane %v3706, 4
      %v3709 = vshll.u32 %v3412, 16
      %v3711 = vrot.slane %v3709, 5
      %v3712 = vsel %vm569, %v3707, %v3711
      %v3714 = vshrl.u32 %v3413, 16
      %v3716 = vrot.slane %v3714, 4
      %v3717 = vshll.u32 %v3413, 16
      %v3719 = vrot.slane %v3717, 5
      %v3720 = vor.u32 %v3716, %v3719
      %v3721 = vrot.slane %v3720, 4
      %v3723 = vshll.u32 %v3414, 16
      %v3725 = vrot.slane %v3723, 5
      %v3726 = vsel %vm569, %v3721, %v3725
      %v3727 = vshrl.u32 %v3414, 16
      %v3729 = vrot.slane %v3727, 4
      %v3730 = vor.u32 %v3729, %v3725
      %v3731 = vrot.slane %v3730, 4
      %v3733 = vshll.u32 %v3415, 16
      %v3735 = vrot.slane %v3733, 5
      %v3736 = vsel %vm569, %v3731, %v3735
      %v3738 = vshrl.u32 %v3416, 16
      %v3740 = vrot.slane %v3738, 4
      %v3741 = vshll.u32 %v3416, 16
      %v3743 = vrot.slane %v3741, 5
      %v3744 = vor.u32 %v3740, %v3743
      %v3745 = vrot.slane %v3744, 4
      %v3747 = vshll.u32 %v3417, 16
      %v3749 = vrot.slane %v3747, 5
      %v3750 = vsel %vm569, %v3745, %v3749
      %v3751 = vshrl.u32 %v3417, 16
      %v3753 = vrot.slane %v3751, 4
      %v3754 = vor.u32 %v3753, %v3749
      %v3755 = vrot.slane %v3754, 4
      %v3757 = vshll.u32 %v3418, 16
      %v3759 = vrot.slane %v3757, 5
      %v3760 = vsel %vm569, %v3755, %v3759
      %v3762 = vshrl.u32 %v3419, 16
      %v3764 = vrot.slane %v3762, 4
      %v3765 = vshll.u32 %v3419, 16
      %v3767 = vrot.slane %v3765, 5
      %v3768 = vor.u32 %v3764, %v3767
      %v3769 = vrot.slane %v3768, 4
      %v3771 = vshll.u32 %v3420, 16
      %v3773 = vrot.slane %v3771, 5
      %v3774 = vsel %vm569, %v3769, %v3773
      %v3775 = vshrl.u32 %v3420, 16
      %v3777 = vrot.slane %v3775, 4
      %v3778 = vor.u32 %v3777, %v3773
      %v3779 = vrot.slane %v3778, 4
      %v3781 = vshll.u32 %v3421, 16
      %v3783 = vrot.slane %v3781, 5
      %v3784 = vsel %vm569, %v3779, %v3783
      %v3786 = vshrl.u32 %v3422, 16
      %v3788 = vrot.slane %v3786, 4
      %v3789 = vshll.u32 %v3422, 16
      %v3791 = vrot.slane %v3789, 5
      %v3792 = vor.u32 %v3788, %v3791
      %v3793 = vrot.slane %v3792, 4
      %v3795 = vshll.u32 %v3423, 16
      %v3797 = vrot.slane %v3795, 5
      %v3798 = vsel %vm569, %v3793, %v3797
      %v3799 = vshrl.u32 %v3423, 16
      %v3801 = vrot.slane %v3799, 4
      %v3802 = vor.u32 %v3801, %v3797
      %v3803 = vrot.slane %v3802, 4
      %v3805 = vshll.u32 %v3424, 16
      %v3807 = vrot.slane %v3805, 5
      %v3808 = vsel %vm569, %v3803, %v3807
      %s3809 = scalar_lea.vmem %s1, 224
      %v3810 = vld [vmem:[%s3809] sm:$0xf]
      %v3811 = vld [vmem:[%s3809 + $0x4] sm:$0xf]
      %v3812 = vld [vmem:[%s3809 + $0x8] sm:$0xf]
      %v3813 = vld [vmem:[%s3809 + $0xc] sm:$0xf]
      %v3814 = vld [vmem:[%s3809 + $0x10] sm:$0xf]
      %v3815 = vld [vmem:[%s3809 + $0x14] sm:$0xf]
      %v3816 = vld [vmem:[%s3809 + $0x18] sm:$0xf]
      %v3817 = vld [vmem:[%s3809 + $0x1c] sm:$0xf]
      %v3818 = vunpack.c.l.b16 %v3438
      %v3819 = vunpack.c.l.b16 %v3448
      %v3820 = vunpack.c.l.b16 %v3462
      %v3821 = vunpack.c.l.b16 %v3472
      %v3822 = vunpack.c.l.b16 %v3486
      %v3823 = vunpack.c.l.b16 %v3496
      %v3824 = vunpack.c.l.b16 %v3510
      %v3825 = vunpack.c.l.b16 %v3520
      %v3826 = vunpack.c.l.b16 %v3534
      %v3827 = vunpack.c.l.b16 %v3544
      %v3828 = vunpack.c.l.b16 %v3558
      %v3829 = vunpack.c.l.b16 %v3568
      %v3830 = vunpack.c.l.b16 %v3582
      %v3831 = vunpack.c.l.b16 %v3592
      %v3832 = vunpack.c.l.b16 %v3606
      %v3833 = vunpack.c.l.b16 %v3616
      %v3834 = vunpack.c.l.b16 %v3630
      %v3835 = vunpack.c.l.b16 %v3640
      %v3836 = vunpack.c.l.b16 %v3654
      %v3837 = vunpack.c.l.b16 %v3664
      %v3838 = vunpack.c.l.b16 %v3678
      %v3839 = vunpack.c.l.b16 %v3688
      %v3840 = vunpack.c.l.b16 %v3702
      %v3841 = vunpack.c.l.b16 %v3712
      %v3842 = vunpack.c.l.b16 %v3726
      %v3843 = vunpack.c.l.b16 %v3736
      %v3844 = vunpack.c.l.b16 %v3750
      %v3845 = vunpack.c.l.b16 %v3760
      %v3846 = vunpack.c.l.b16 %v3774
      %v3847 = vunpack.c.l.b16 %v3784
      %v3848 = vunpack.c.l.b16 %v3798
      %v3849 = vunpack.c.l.b16 %v3808
      %v3850 = vpack.c.b16 %v3819, %v3818
      %v3851 = vpack.c.b16 %v3821, %v3820
      %v3852 = vpack.c.b16 %v3823, %v3822
      %v3853 = vpack.c.b16 %v3825, %v3824
      %v3854 = vpack.c.b16 %v3827, %v3826
      %v3855 = vpack.c.b16 %v3829, %v3828
      %v3856 = vpack.c.b16 %v3831, %v3830
      %v3857 = vpack.c.b16 %v3833, %v3832
      %v3858 = vpack.c.b16 %v3835, %v3834
      %v3859 = vpack.c.b16 %v3837, %v3836
      %v3860 = vpack.c.b16 %v3839, %v3838
      %v3861 = vpack.c.b16 %v3841, %v3840
      %v3862 = vpack.c.b16 %v3843, %v3842
      %v3863 = vpack.c.b16 %v3845, %v3844
      %v3864 = vpack.c.b16 %v3847, %v3846
      %v3865 = vpack.c.b16 %v3849, %v3848
      %v3874 = vunpack.c.l.b16 %v3810
      %v3875 = vunpack.c.l.b16 %v3811
      %v3876 = vunpack.c.l.b16 %v3812
      %v3877 = vunpack.c.l.b16 %v3813
      %v3878 = vunpack.c.l.b16 %v3814
      %v3879 = vunpack.c.l.b16 %v3815
      %v3880 = vunpack.c.l.b16 %v3816
      %v3881 = vunpack.c.l.b16 %v3817
      %v3882 = vpack.c.b16 %v3875, %v3874
      %v3883 = vpack.c.b16 %v3877, %v3876
      %v3884 = vpack.c.b16 %v3879, %v3878
      %v3885 = vpack.c.b16 %v3881, %v3880
      %v3891 = vsel %vm349, %v3850, 0
      %v3894 = vsel %vm349, %v3851, 0
      %v3897 = vsel %vm349, %v3852, 0
      %v3900 = vsel %vm349, %v3853, 0
      %v3903 = vsel %vm349, %v3854, 0
      %v3906 = vsel %vm349, %v3855, 0
      %v3909 = vsel %vm349, %v3856, 0
      %v3912 = vsel %vm349, %v3857, 0
      %v3915 = vsel %vm349, %v3858, 0
      %v3918 = vsel %vm349, %v3859, 0
      %v3921 = vsel %vm349, %v3860, 0
      %v3924 = vsel %vm349, %v3861, 0
      %v3927 = vsel %vm349, %v3862, 0
      %v3930 = vsel %vm349, %v3863, 0
      %v3933 = vsel %vm349, %v3864, 0
      %v3936 = vsel %vm349, %v3865, 0
      %3938 = vmatpush.bf16.msra.mxu0 0
      %3939 = vmatpush.bf16.msra.mxu0 0
      %3940 = vmatpush.bf16.msra.mxu0 0
      %3941 = vmatpush.bf16.msra.mxu0 0
      %3942 = vmatpush.bf16.msra.mxu0 %v3885
      %3943 = vmatpush.bf16.msra.mxu0 %v3884
      %3944 = vmatpush.bf16.msra.mxu0 %v3883
      %3945 = vmatpush.bf16.msra.mxu0 %v3882
      %3946 = vmatmul.bf16.gmra.mxu0 %v3891
      %v3947 = vpop.f32.mrf.mxu0
      %v3948 = vadd.f32 0.0, %v3947
      %v3949 = vpop.f32.mrf.mxu0
      %v3950 = vadd.f32 0.0, %v3949
      %3951 = vmatmul.bf16.gmra.mxu0 %v3894
      %v3952 = vpop.f32.mrf.mxu0
      %v3953 = vadd.f32 0.0, %v3952
      %v3954 = vpop.f32.mrf.mxu0
      %v3955 = vadd.f32 0.0, %v3954
      %3956 = vmatmul.bf16.gmra.mxu0 %v3897
      %v3957 = vpop.f32.mrf.mxu0
      %v3958 = vadd.f32 0.0, %v3957
      %v3959 = vpop.f32.mrf.mxu0
      %v3960 = vadd.f32 0.0, %v3959
      %3961 = vmatmul.bf16.gmra.mxu0 %v3900
      %v3962 = vpop.f32.mrf.mxu0
      %v3963 = vadd.f32 0.0, %v3962
      %v3964 = vpop.f32.mrf.mxu0
      %v3965 = vadd.f32 0.0, %v3964
      %3966 = vmatmul.bf16.gmra.mxu0 %v3903
      %v3967 = vpop.f32.mrf.mxu0
      %v3968 = vadd.f32 0.0, %v3967
      %v3969 = vpop.f32.mrf.mxu0
      %v3970 = vadd.f32 0.0, %v3969
      %3971 = vmatmul.bf16.gmra.mxu0 %v3906
      %v3972 = vpop.f32.mrf.mxu0
      %v3973 = vadd.f32 0.0, %v3972
      %v3974 = vpop.f32.mrf.mxu0
      %v3975 = vadd.f32 0.0, %v3974
      %3976 = vmatmul.bf16.gmra.mxu0 %v3909
      %v3977 = vpop.f32.mrf.mxu0
      %v3978 = vadd.f32 0.0, %v3977
      %v3979 = vpop.f32.mrf.mxu0
      %v3980 = vadd.f32 0.0, %v3979
      %3981 = vmatmul.bf16.gmra.mxu0 %v3912
      %v3982 = vpop.f32.mrf.mxu0
      %v3983 = vadd.f32 0.0, %v3982
      %v3984 = vpop.f32.mrf.mxu0
      %v3985 = vadd.f32 0.0, %v3984
      %3986 = vmatmul.bf16.gmra.mxu0 %v3915
      %v3987 = vpop.f32.mrf.mxu0
      %v3988 = vadd.f32 0.0, %v3987
      %v3989 = vpop.f32.mrf.mxu0
      %v3990 = vadd.f32 0.0, %v3989
      %3991 = vmatmul.bf16.gmra.mxu0 %v3918
      %v3992 = vpop.f32.mrf.mxu0
      %v3993 = vadd.f32 0.0, %v3992
      %v3994 = vpop.f32.mrf.mxu0
      %v3995 = vadd.f32 0.0, %v3994
      %3996 = vmatmul.bf16.gmra.mxu0 %v3921
      %v3997 = vpop.f32.mrf.mxu0
      %v3998 = vadd.f32 0.0, %v3997
      %v3999 = vpop.f32.mrf.mxu0
      %v4000 = vadd.f32 0.0, %v3999
      %4001 = vmatmul.bf16.gmra.mxu0 %v3924
      %v4002 = vpop.f32.mrf.mxu0
      %v4003 = vadd.f32 0.0, %v4002
      %v4004 = vpop.f32.mrf.mxu0
      %v4005 = vadd.f32 0.0, %v4004
      %4006 = vmatmul.bf16.gmra.mxu0 %v3927
      %v4007 = vpop.f32.mrf.mxu0
      %v4008 = vadd.f32 0.0, %v4007
      %v4009 = vpop.f32.mrf.mxu0
      %v4010 = vadd.f32 0.0, %v4009
      %4011 = vmatmul.bf16.gmra.mxu0 %v3930
      %v4012 = vpop.f32.mrf.mxu0
      %v4013 = vadd.f32 0.0, %v4012
      %v4014 = vpop.f32.mrf.mxu0
      %v4015 = vadd.f32 0.0, %v4014
      %4016 = vmatmul.bf16.gmra.mxu0 %v3933
      %v4017 = vpop.f32.mrf.mxu0
      %v4018 = vadd.f32 0.0, %v4017
      %v4019 = vpop.f32.mrf.mxu0
      %v4020 = vadd.f32 0.0, %v4019
      %4021 = vmatmul.bf16.gmra.mxu0 %v3936
      %v4022 = vpop.f32.mrf.mxu0
      %v4023 = vadd.f32 0.0, %v4022
      %v4024 = vpop.f32.mrf.mxu0
      %v4025 = vadd.f32 0.0, %v4024
      %4026 = vdwg.mxu0
      %v4027 = vadd.f32 %v3345, %v3948
      %v4028 = vadd.f32 %v3346, %v3950
      %v4029 = vadd.f32 %v3347, %v3953
      %v4030 = vadd.f32 %v3348, %v3955
      %v4031 = vadd.f32 %v3349, %v3958
      %v4032 = vadd.f32 %v3350, %v3960
      %v4033 = vadd.f32 %v3351, %v3963
      %v4034 = vadd.f32 %v3352, %v3965
      %v4035 = vadd.f32 %v3353, %v3968
      %v4036 = vadd.f32 %v3354, %v3970
      %v4037 = vadd.f32 %v3355, %v3973
      %v4038 = vadd.f32 %v3356, %v3975
      %v4039 = vadd.f32 %v3357, %v3978
      %v4040 = vadd.f32 %v3358, %v3980
      %v4041 = vadd.f32 %v3359, %v3983
      %v4042 = vadd.f32 %v3360, %v3985
      %v4043 = vadd.f32 %v3361, %v3988
      %v4044 = vadd.f32 %v3362, %v3990
      %v4045 = vadd.f32 %v3363, %v3993
      %v4046 = vadd.f32 %v3364, %v3995
      %v4047 = vadd.f32 %v3365, %v3998
      %v4048 = vadd.f32 %v3366, %v4000
      %v4049 = vadd.f32 %v3367, %v4003
      %v4050 = vadd.f32 %v3368, %v4005
      %v4051 = vadd.f32 %v3369, %v4008
      %v4052 = vadd.f32 %v3370, %v4010
      %v4053 = vadd.f32 %v3371, %v4013
      %v4054 = vadd.f32 %v3372, %v4015
      %v4055 = vadd.f32 %v3373, %v4018
      %v4056 = vadd.f32 %v3374, %v4020
      %v4057 = vadd.f32 %v3375, %v4023
      %v4058 = vadd.f32 %v3376, %v4025
      %v4059 = vld [vmem:[%s3062] sm:$0xe]
      %v4060 = vld [vmem:[%s3062 + $0xc] sm:$0xe]
      %v4061 = vld [vmem:[%s3062 + $0x18] sm:$0xe]
      %v4062 = vld [vmem:[%s3062 + $0x24] sm:$0xe]
      %v4063 = vld [vmem:[%s3062 + $0x30] sm:$0xe]
      %v4064 = vld [vmem:[%s3062 + $0x3c] sm:$0xe]
      %v4065 = vld [vmem:[%s3062 + $0x48] sm:$0xe]
      %v4066 = vld [vmem:[%s3062 + $0x54] sm:$0xe]
      %v4067 = vld [vmem:[%s3062 + $0x60] sm:$0xe]
      %v4068 = vld [vmem:[%s3062 + $0x6c] sm:$0xe]
      %v4069 = vld [vmem:[%s3062 + $0x78] sm:$0xe]
      %v4070 = vld [vmem:[%s3062 + $0x84] sm:$0xe]
      %v4071 = vld [vmem:[%s3062 + $0x90] sm:$0xe]
      %v4072 = vld [vmem:[%s3062 + $0x9c] sm:$0xe]
      %v4073 = vld [vmem:[%s3062 + $0xa8] sm:$0xe]
      %v4074 = vld [vmem:[%s3062 + $0xb4] sm:$0xe]
      %v4123 = vrot.slane %v4059, 5
      %v4124 = vrot.slane %v4123, 4
      %v4125 = vrot.slane %v3378, 5
      %v4126 = vsel %vm1270, %v4124, %v4125
      %v4127 = vrot.slane %v4125, 4
      %v4128 = vrot.slane %v3379, 5
      %v4129 = vsel %vm1270, %v4127, %v4128
      %v4130 = vrot.slane %v4060, 5
      %v4131 = vrot.slane %v4130, 4
      %v4132 = vrot.slane %v3381, 5
      %v4133 = vsel %vm1270, %v4131, %v4132
      %v4134 = vrot.slane %v4132, 4
      %v4135 = vrot.slane %v3382, 5
      %v4136 = vsel %vm1270, %v4134, %v4135
      %v4137 = vrot.slane %v4061, 5
      %v4138 = vrot.slane %v4137, 4
      %v4139 = vrot.slane %v3384, 5
      %v4140 = vsel %vm1270, %v4138, %v4139
      %v4141 = vrot.slane %v4139, 4
      %v4142 = vrot.slane %v3385, 5
      %v4143 = vsel %vm1270, %v4141, %v4142
      %v4144 = vrot.slane %v4062, 5
      %v4145 = vrot.slane %v4144, 4
      %v4146 = vrot.slane %v3387, 5
      %v4147 = vsel %vm1270, %v4145, %v4146
      %v4148 = vrot.slane %v4146, 4
      %v4149 = vrot.slane %v3388, 5
      %v4150 = vsel %vm1270, %v4148, %v4149
      %v4151 = vrot.slane %v4063, 5
      %v4152 = vrot.slane %v4151, 4
      %v4153 = vrot.slane %v3390, 5
      %v4154 = vsel %vm1270, %v4152, %v4153
      %v4155 = vrot.slane %v4153, 4
      %v4156 = vrot.slane %v3391, 5
      %v4157 = vsel %vm1270, %v4155, %v4156
      %v4158 = vrot.slane %v4064, 5
      %v4159 = vrot.slane %v4158, 4
      %v4160 = vrot.slane %v3393, 5
      %v4161 = vsel %vm1270, %v4159, %v4160
      %v4162 = vrot.slane %v4160, 4
      %v4163 = vrot.slane %v3394, 5
      %v4164 = vsel %vm1270, %v4162, %v4163
      %v4165 = vrot.slane %v4065, 5
      %v4166 = vrot.slane %v4165, 4
      %v4167 = vrot.slane %v3396, 5
      %v4168 = vsel %vm1270, %v4166, %v4167
      %v4169 = vrot.slane %v4167, 4
      %v4170 = vrot.slane %v3397, 5
      %v4171 = vsel %vm1270, %v4169, %v4170
      %v4172 = vrot.slane %v4066, 5
      %v4173 = vrot.slane %v4172, 4
      %v4174 = vrot.slane %v3399, 5
      %v4175 = vsel %vm1270, %v4173, %v4174
      %v4176 = vrot.slane %v4174, 4
      %v4177 = vrot.slane %v3400, 5
      %v4178 = vsel %vm1270, %v4176, %v4177
      %v4179 = vrot.slane %v4067, 5
      %v4180 = vrot.slane %v4179, 4
      %v4181 = vrot.slane %v3402, 5
      %v4182 = vsel %vm1270, %v4180, %v4181
      %v4183 = vrot.slane %v4181, 4
      %v4184 = vrot.slane %v3403, 5
      %v4185 = vsel %vm1270, %v4183, %v4184
      %v4186 = vrot.slane %v4068, 5
      %v4187 = vrot.slane %v4186, 4
      %v4188 = vrot.slane %v3405, 5
      %v4189 = vsel %vm1270, %v4187, %v4188
      %v4190 = vrot.slane %v4188, 4
      %v4191 = vrot.slane %v3406, 5
      %v4192 = vsel %vm1270, %v4190, %v4191
      %v4193 = vrot.slane %v4069, 5
      %v4194 = vrot.slane %v4193, 4
      %v4195 = vrot.slane %v3408, 5
      %v4196 = vsel %vm1270, %v4194, %v4195
      %v4197 = vrot.slane %v4195, 4
      %v4198 = vrot.slane %v3409, 5
      %v4199 = vsel %vm1270, %v4197, %v4198
      %v4200 = vrot.slane %v4070, 5
      %v4201 = vrot.slane %v4200, 4
      %v4202 = vrot.slane %v3411, 5
      %v4203 = vsel %vm1270, %v4201, %v4202
      %v4204 = vrot.slane %v4202, 4
      %v4205 = vrot.slane %v3412, 5
      %v4206 = vsel %vm1270, %v4204, %v4205
      %v4207 = vrot.slane %v4071, 5
      %v4208 = vrot.slane %v4207, 4
      %v4209 = vrot.slane %v3414, 5
      %v4210 = vsel %vm1270, %v4208, %v4209
      %v4211 = vrot.slane %v4209, 4
      %v4212 = vrot.slane %v3415, 5
      %v4213 = vsel %vm1270, %v4211, %v4212
      %v4214 = vrot.slane %v4072, 5
      %v4215 = vrot.slane %v4214, 4
      %v4216 = vrot.slane %v3417, 5
      %v4217 = vsel %vm1270, %v4215, %v4216
      %v4218 = vrot.slane %v4216, 4
      %v4219 = vrot.slane %v3418, 5
      %v4220 = vsel %vm1270, %v4218, %v4219
      %v4221 = vrot.slane %v4073, 5
      %v4222 = vrot.slane %v4221, 4
      %v4223 = vrot.slane %v3420, 5
      %v4224 = vsel %vm1270, %v4222, %v4223
      %v4225 = vrot.slane %v4223, 4
      %v4226 = vrot.slane %v3421, 5
      %v4227 = vsel %vm1270, %v4225, %v4226
      %v4228 = vrot.slane %v4074, 5
      %v4229 = vrot.slane %v4228, 4
      %v4230 = vrot.slane %v3423, 5
      %v4231 = vsel %vm1270, %v4229, %v4230
      %v4232 = vrot.slane %v4230, 4
      %v4233 = vrot.slane %v3424, 5
      %v4234 = vsel %vm1270, %v4232, %v4233
      %s4235 = scalar_lea.vmem %s1, 256
      %v4236 = vld [vmem:[%s4235] sm:$0xf]
      %v4237 = vld [vmem:[%s4235 + $0x4] sm:$0xf]
      %v4238 = vld [vmem:[%s4235 + $0x8] sm:$0xf]
      %v4239 = vld [vmem:[%s4235 + $0xc] sm:$0xf]
      %v4240 = vld [vmem:[%s4235 + $0x10] sm:$0xf]
      %v4241 = vld [vmem:[%s4235 + $0x14] sm:$0xf]
      %v4242 = vld [vmem:[%s4235 + $0x18] sm:$0xf]
      %v4243 = vld [vmem:[%s4235 + $0x1c] sm:$0xf]
      %v4244 = vunpack.c.l.b16 %v4126
      %v4245 = vunpack.c.l.b16 %v4129
      %v4246 = vunpack.c.l.b16 %v4133
      %v4247 = vunpack.c.l.b16 %v4136
      %v4248 = vunpack.c.l.b16 %v4140
      %v4249 = vunpack.c.l.b16 %v4143
      %v4250 = vunpack.c.l.b16 %v4147
      %v4251 = vunpack.c.l.b16 %v4150
      %v4252 = vunpack.c.l.b16 %v4154
      %v4253 = vunpack.c.l.b16 %v4157
      %v4254 = vunpack.c.l.b16 %v4161
      %v4255 = vunpack.c.l.b16 %v4164
      %v4256 = vunpack.c.l.b16 %v4168
      %v4257 = vunpack.c.l.b16 %v4171
      %v4258 = vunpack.c.l.b16 %v4175
      %v4259 = vunpack.c.l.b16 %v4178
      %v4260 = vunpack.c.l.b16 %v4182
      %v4261 = vunpack.c.l.b16 %v4185
      %v4262 = vunpack.c.l.b16 %v4189
      %v4263 = vunpack.c.l.b16 %v4192
      %v4264 = vunpack.c.l.b16 %v4196
      %v4265 = vunpack.c.l.b16 %v4199
      %v4266 = vunpack.c.l.b16 %v4203
      %v4267 = vunpack.c.l.b16 %v4206
      %v4268 = vunpack.c.l.b16 %v4210
      %v4269 = vunpack.c.l.b16 %v4213
      %v4270 = vunpack.c.l.b16 %v4217
      %v4271 = vunpack.c.l.b16 %v4220
      %v4272 = vunpack.c.l.b16 %v4224
      %v4273 = vunpack.c.l.b16 %v4227
      %v4274 = vunpack.c.l.b16 %v4231
      %v4275 = vunpack.c.l.b16 %v4234
      %v4276 = vpack.c.b16 %v4245, %v4244
      %v4277 = vpack.c.b16 %v4247, %v4246
      %v4278 = vpack.c.b16 %v4249, %v4248
      %v4279 = vpack.c.b16 %v4251, %v4250
      %v4280 = vpack.c.b16 %v4253, %v4252
      %v4281 = vpack.c.b16 %v4255, %v4254
      %v4282 = vpack.c.b16 %v4257, %v4256
      %v4283 = vpack.c.b16 %v4259, %v4258
      %v4284 = vpack.c.b16 %v4261, %v4260
      %v4285 = vpack.c.b16 %v4263, %v4262
      %v4286 = vpack.c.b16 %v4265, %v4264
      %v4287 = vpack.c.b16 %v4267, %v4266
      %v4288 = vpack.c.b16 %v4269, %v4268
      %v4289 = vpack.c.b16 %v4271, %v4270
      %v4290 = vpack.c.b16 %v4273, %v4272
      %v4291 = vpack.c.b16 %v4275, %v4274
      %v4300 = vunpack.c.l.b16 %v4236
      %v4301 = vunpack.c.l.b16 %v4237
      %v4302 = vunpack.c.l.b16 %v4238
      %v4303 = vunpack.c.l.b16 %v4239
      %v4304 = vunpack.c.l.b16 %v4240
      %v4305 = vunpack.c.l.b16 %v4241
      %v4306 = vunpack.c.l.b16 %v4242
      %v4307 = vunpack.c.l.b16 %v4243
      %v4308 = vpack.c.b16 %v4301, %v4300
      %v4309 = vpack.c.b16 %v4303, %v4302
      %v4310 = vpack.c.b16 %v4305, %v4304
      %v4311 = vpack.c.b16 %v4307, %v4306
      %v4317 = vsel %vm349, %v4276, 0
      %v4320 = vsel %vm349, %v4277, 0
      %v4323 = vsel %vm349, %v4278, 0
      %v4326 = vsel %vm349, %v4279, 0
      %v4329 = vsel %vm349, %v4280, 0
      %v4332 = vsel %vm349, %v4281, 0
      %v4335 = vsel %vm349, %v4282, 0
      %v4338 = vsel %vm349, %v4283, 0
      %v4341 = vsel %vm349, %v4284, 0
      %v4344 = vsel %vm349, %v4285, 0
      %v4347 = vsel %vm349, %v4286, 0
      %v4350 = vsel %vm349, %v4287, 0
      %v4353 = vsel %vm349, %v4288, 0
      %v4356 = vsel %vm349, %v4289, 0
      %v4359 = vsel %vm349, %v4290, 0
      %v4362 = vsel %vm349, %v4291, 0
      %4364 = vmatpush.bf16.msra.mxu0 0
      %4365 = vmatpush.bf16.msra.mxu0 0
      %4366 = vmatpush.bf16.msra.mxu0 0
      %4367 = vmatpush.bf16.msra.mxu0 0
      %4368 = vmatpush.bf16.msra.mxu0 %v4311
      %4369 = vmatpush.bf16.msra.mxu0 %v4310
      %4370 = vmatpush.bf16.msra.mxu0 %v4309
      %4371 = vmatpush.bf16.msra.mxu0 %v4308
      %4372 = vmatmul.bf16.gmra.mxu0 %v4317
      %v4373 = vpop.f32.mrf.mxu0
      %v4374 = vadd.f32 0.0, %v4373
      %v4375 = vpop.f32.mrf.mxu0
      %v4376 = vadd.f32 0.0, %v4375
      %4377 = vmatmul.bf16.gmra.mxu0 %v4320
      %v4378 = vpop.f32.mrf.mxu0
      %v4379 = vadd.f32 0.0, %v4378
      %v4380 = vpop.f32.mrf.mxu0
      %v4381 = vadd.f32 0.0, %v4380
      %4382 = vmatmul.bf16.gmra.mxu0 %v4323
      %v4383 = vpop.f32.mrf.mxu0
      %v4384 = vadd.f32 0.0, %v4383
      %v4385 = vpop.f32.mrf.mxu0
      %v4386 = vadd.f32 0.0, %v4385
      %4387 = vmatmul.bf16.gmra.mxu0 %v4326
      %v4388 = vpop.f32.mrf.mxu0
      %v4389 = vadd.f32 0.0, %v4388
      %v4390 = vpop.f32.mrf.mxu0
      %v4391 = vadd.f32 0.0, %v4390
      %4392 = vmatmul.bf16.gmra.mxu0 %v4329
      %v4393 = vpop.f32.mrf.mxu0
      %v4394 = vadd.f32 0.0, %v4393
      %v4395 = vpop.f32.mrf.mxu0
      %v4396 = vadd.f32 0.0, %v4395
      %4397 = vmatmul.bf16.gmra.mxu0 %v4332
      %v4398 = vpop.f32.mrf.mxu0
      %v4399 = vadd.f32 0.0, %v4398
      %v4400 = vpop.f32.mrf.mxu0
      %v4401 = vadd.f32 0.0, %v4400
      %4402 = vmatmul.bf16.gmra.mxu0 %v4335
      %v4403 = vpop.f32.mrf.mxu0
      %v4404 = vadd.f32 0.0, %v4403
      %v4405 = vpop.f32.mrf.mxu0
      %v4406 = vadd.f32 0.0, %v4405
      %4407 = vmatmul.bf16.gmra.mxu0 %v4338
      %v4408 = vpop.f32.mrf.mxu0
      %v4409 = vadd.f32 0.0, %v4408
      %v4410 = vpop.f32.mrf.mxu0
      %v4411 = vadd.f32 0.0, %v4410
      %4412 = vmatmul.bf16.gmra.mxu0 %v4341
      %v4413 = vpop.f32.mrf.mxu0
      %v4414 = vadd.f32 0.0, %v4413
      %v4415 = vpop.f32.mrf.mxu0
      %v4416 = vadd.f32 0.0, %v4415
      %4417 = vmatmul.bf16.gmra.mxu0 %v4344
      %v4418 = vpop.f32.mrf.mxu0
      %v4419 = vadd.f32 0.0, %v4418
      %v4420 = vpop.f32.mrf.mxu0
      %v4421 = vadd.f32 0.0, %v4420
      %4422 = vmatmul.bf16.gmra.mxu0 %v4347
      %v4423 = vpop.f32.mrf.mxu0
      %v4424 = vadd.f32 0.0, %v4423
      %v4425 = vpop.f32.mrf.mxu0
      %v4426 = vadd.f32 0.0, %v4425
      %4427 = vmatmul.bf16.gmra.mxu0 %v4350
      %v4428 = vpop.f32.mrf.mxu0
      %v4429 = vadd.f32 0.0, %v4428
      %v4430 = vpop.f32.mrf.mxu0
      %v4431 = vadd.f32 0.0, %v4430
      %4432 = vmatmul.bf16.gmra.mxu0 %v4353
      %v4433 = vpop.f32.mrf.mxu0
      %v4434 = vadd.f32 0.0, %v4433
      %v4435 = vpop.f32.mrf.mxu0
      %v4436 = vadd.f32 0.0, %v4435
      %4437 = vmatmul.bf16.gmra.mxu0 %v4356
      %v4438 = vpop.f32.mrf.mxu0
      %v4439 = vadd.f32 0.0, %v4438
      %v4440 = vpop.f32.mrf.mxu0
      %v4441 = vadd.f32 0.0, %v4440
      %4442 = vmatmul.bf16.gmra.mxu0 %v4359
      %v4443 = vpop.f32.mrf.mxu0
      %v4444 = vadd.f32 0.0, %v4443
      %v4445 = vpop.f32.mrf.mxu0
      %v4446 = vadd.f32 0.0, %v4445
      %4447 = vmatmul.bf16.gmra.mxu0 %v4362
      %v4448 = vpop.f32.mrf.mxu0
      %v4449 = vadd.f32 0.0, %v4448
      %v4450 = vpop.f32.mrf.mxu0
      %v4451 = vadd.f32 0.0, %v4450
      %4452 = vdwg.mxu0
      %v4453 = vadd.f32 %v4027, %v4374
      %v4454 = vadd.f32 %v4028, %v4376
      %v4455 = vadd.f32 %v4029, %v4379
      %v4456 = vadd.f32 %v4030, %v4381
      %v4457 = vadd.f32 %v4031, %v4384
      %v4458 = vadd.f32 %v4032, %v4386
      %v4459 = vadd.f32 %v4033, %v4389
      %v4460 = vadd.f32 %v4034, %v4391
      %v4461 = vadd.f32 %v4035, %v4394
      %v4462 = vadd.f32 %v4036, %v4396
      %v4463 = vadd.f32 %v4037, %v4399
      %v4464 = vadd.f32 %v4038, %v4401
      %v4465 = vadd.f32 %v4039, %v4404
      %v4466 = vadd.f32 %v4040, %v4406
      %v4467 = vadd.f32 %v4041, %v4409
      %v4468 = vadd.f32 %v4042, %v4411
      %v4469 = vadd.f32 %v4043, %v4414
      %v4470 = vadd.f32 %v4044, %v4416
      %v4471 = vadd.f32 %v4045, %v4419
      %v4472 = vadd.f32 %v4046, %v4421
      %v4473 = vadd.f32 %v4047, %v4424
      %v4474 = vadd.f32 %v4048, %v4426
      %v4475 = vadd.f32 %v4049, %v4429
      %v4476 = vadd.f32 %v4050, %v4431
      %v4477 = vadd.f32 %v4051, %v4434
      %v4478 = vadd.f32 %v4052, %v4436
      %v4479 = vadd.f32 %v4053, %v4439
      %v4480 = vadd.f32 %v4054, %v4441
      %v4481 = vadd.f32 %v4055, %v4444
      %v4482 = vadd.f32 %v4056, %v4446
      %v4483 = vadd.f32 %v4057, %v4449
      %v4484 = vadd.f32 %v4058, %v4451
      %v4485 = vpack.c.bf16 %v4453, %v4453
      %v4486 = vpack.c.bf16 %v4454, %v4454
      %v4487 = vpack.c.bf16 %v4455, %v4455
      %v4488 = vpack.c.bf16 %v4456, %v4456
      %v4489 = vpack.c.bf16 %v4457, %v4457
      %v4490 = vpack.c.bf16 %v4458, %v4458
      %v4491 = vpack.c.bf16 %v4459, %v4459
      %v4492 = vpack.c.bf16 %v4460, %v4460
      %v4493 = vpack.c.bf16 %v4461, %v4461
      %v4494 = vpack.c.bf16 %v4462, %v4462
      %v4495 = vpack.c.bf16 %v4463, %v4463
      %v4496 = vpack.c.bf16 %v4464, %v4464
      %v4497 = vpack.c.bf16 %v4465, %v4465
      %v4498 = vpack.c.bf16 %v4466, %v4466
      %v4499 = vpack.c.bf16 %v4467, %v4467
      %v4500 = vpack.c.bf16 %v4468, %v4468
      %v4501 = vpack.c.bf16 %v4469, %v4469
      %v4502 = vpack.c.bf16 %v4470, %v4470
      %v4503 = vpack.c.bf16 %v4471, %v4471
      %v4504 = vpack.c.bf16 %v4472, %v4472
      %v4505 = vpack.c.bf16 %v4473, %v4473
      %v4506 = vpack.c.bf16 %v4474, %v4474
      %v4507 = vpack.c.bf16 %v4475, %v4475
      %v4508 = vpack.c.bf16 %v4476, %v4476
      %v4509 = vpack.c.bf16 %v4477, %v4477
      %v4510 = vpack.c.bf16 %v4478, %v4478
      %v4511 = vpack.c.bf16 %v4479, %v4479
      %v4512 = vpack.c.bf16 %v4480, %v4480
      %v4513 = vpack.c.bf16 %v4481, %v4481
      %v4514 = vpack.c.bf16 %v4482, %v4482
      %v4515 = vpack.c.bf16 %v4483, %v4483
      %v4516 = vpack.c.bf16 %v4484, %v4484
      %4517 = vst [vmem:[%s194] sm:$0xf] %v4485
      %4518 = vst [vmem:[%s194 + $0x4] sm:$0xf] %v4486
      %4519 = vst [vmem:[%s194 + $0x8] sm:$0xf] %v4487
      %4520 = vst [vmem:[%s194 + $0xc] sm:$0xf] %v4488
      %4521 = vst [vmem:[%s194 + $0x10] sm:$0xf] %v4489
      %4522 = vst [vmem:[%s194 + $0x14] sm:$0xf] %v4490
      %4523 = vst [vmem:[%s194 + $0x18] sm:$0xf] %v4491
      %4524 = vst [vmem:[%s194 + $0x1c] sm:$0xf] %v4492
      %4525 = vst [vmem:[%s194 + $0x20] sm:$0xf] %v4493
      %4526 = vst [vmem:[%s194 + $0x24] sm:$0xf] %v4494
      %4527 = vst [vmem:[%s194 + $0x28] sm:$0xf] %v4495
      %4528 = vst [vmem:[%s194 + $0x2c] sm:$0xf] %v4496
      %4529 = vst [vmem:[%s194 + $0x30] sm:$0xf] %v4497
      %4530 = vst [vmem:[%s194 + $0x34] sm:$0xf] %v4498
      %4531 = vst [vmem:[%s194 + $0x38] sm:$0xf] %v4499
      %4532 = vst [vmem:[%s194 + $0x3c] sm:$0xf] %v4500
      %4533 = vst [vmem:[%s194 + $0x40] sm:$0xf] %v4501
      %4534 = vst [vmem:[%s194 + $0x44] sm:$0xf] %v4502
      %4535 = vst [vmem:[%s194 + $0x48] sm:$0xf] %v4503
      %4536 = vst [vmem:[%s194 + $0x4c] sm:$0xf] %v4504
      %4537 = vst [vmem:[%s194 + $0x50] sm:$0xf] %v4505
      %4538 = vst [vmem:[%s194 + $0x54] sm:$0xf] %v4506
      %4539 = vst [vmem:[%s194 + $0x58] sm:$0xf] %v4507
      %4540 = vst [vmem:[%s194 + $0x5c] sm:$0xf] %v4508
      %4541 = vst [vmem:[%s194 + $0x60] sm:$0xf] %v4509
      %4542 = vst [vmem:[%s194 + $0x64] sm:$0xf] %v4510
      %4543 = vst [vmem:[%s194 + $0x68] sm:$0xf] %v4511
      %4544 = vst [vmem:[%s194 + $0x6c] sm:$0xf] %v4512
      %4545 = vst [vmem:[%s194 + $0x70] sm:$0xf] %v4513
      %4546 = vst [vmem:[%s194 + $0x74] sm:$0xf] %v4514
      %4547 = vst [vmem:[%s194 + $0x78] sm:$0xf] %v4515
      %4548 = vst [vmem:[%s194 + $0x7c] sm:$0xf] %v4516
      %s4549 = smul.u32 16, %s19
      %p4550 = scmp.lt.s32.totalorder %s18, 1
      %s4551 = scalar_select %p4550, %s18, 1
      %p4552 = scmp.lt.s32.totalorder %s4549, 15
      %s4553 = scalar_select %p4552, %s4549, 15
      %s4554 = smul.addr %s4553, 2
      %s4555 = smul.addr %s4551, 32
      %s4556 = sadd.s32 %s4554, %s4555
      %s4557 = smul.addr %s4556, 4
      %s4558 = scalar_lea.vmem %s3, %s4557
      // Predicated region
      $region33: #{custom_grouped_conv2d.1} parent=31 // pred_check
        %p4559 = pneg %p114
      $region34: #{custom_grouped_conv2d.1} parent=31 // pred_check_branch
        %4561 = sbr.rel (%p4559) target = $region36
      $region35: #{custom_grouped_conv2d.1} parent=31 // pred_region
        %s4562 = smul.u32 16, %s19
      $region36: #{custom_grouped_conv2d.1} parent=31 // pred_fallthru
        _
    $region32: #{custom_grouped_conv2d.1} parent=5 // pred_fallthru
      _
    %p4563 = scmp.le.s32.totalorder 2, %s9
    // Predicated region
    $region37: #{custom_grouped_conv2d.1} parent=5 // pred_check
      %p4564 = pneg %p4563
    $region38: #{custom_grouped_conv2d.1} parent=5 // pred_check_branch
      %4566 = sbr.rel (%p4564) target = $region40
    $region39: #{custom_grouped_conv2d.1} parent=5 // pred_region
      %s4567 = ssub.s32 %s9, 2
      // Predicated region
      $region41: #{custom_grouped_conv2d.1} parent=39 // pred_check
        %p4568 = pneg %p120
      $region42: #{custom_grouped_conv2d.1} parent=39 // pred_check_branch
        %4570 = sbr.rel (%p4568) target = $region44
      $region43: #{custom_grouped_conv2d.1} parent=39 // pred_region
        %s4571 = smul.u32 16, %s21
        %p4572 = scmp.lt.s32.totalorder %s20, 1
        %s4573 = scalar_select %p4572, %s20, 1
        %p4574 = scmp.lt.s32.totalorder %s4571, 15
        %s4575 = scalar_select %p4574, %s4571, 15
        %s4576 = smul.addr %s4575, 2
        %s4577 = smul.addr %s4573, 32
        %s4578 = sadd.s32 %s4576, %s4577
        %s4579 = smul.addr %s4578, 4
        %s4580 = scalar_lea.vmem %s3, %s4579
      $region44: #{custom_grouped_conv2d.1} parent=39 // pred_fallthru
        _
    $region40: #{custom_grouped_conv2d.1} parent=5 // pred_fallthru
      _
  $region6: #{custom_grouped_conv2d.1} parent=0 // loop_footer
    %s13 = sadd.s32 1, %s9
  $region7: #{custom_grouped_conv2d.1} parent=0 // loop_footer_branch
    %8 = sbr.rel target = $region3
  $region8: #{custom_grouped_conv2d.1} parent=0 // loop_exit
    _

</llo_original>
